<compile_context>
chip_gen: v6e
topology: v6e:2x2x1
jax: 0.10.0
libtpu: 0.0.40
codegen_flags: <defaults>
</compile_context>

<pallas_src>
import functools

import numpy as np
import jax
import jax.numpy as jnp
from jax.experimental import pallas as pl
from jax.experimental.pallas import tpu as pltpu

LN_EPS = 1e-5  # torch.nn.LayerNorm default


def _round_up(x, m):
    return ((x + m - 1) // m) * m


# ---------------------------------------------------------------------------
# Kernel 1: multi-head cross-attention (block_b batch elements per grid step)
# ---------------------------------------------------------------------------
def mha_kernel(q_ref, kv_ref, wq_ref, bq_ref, wk_ref, bk_ref, wv_ref, bv_ref,
               wo_ref, bo_ref, o_ref, ctx_ref, *, num_heads):
    Bb, Sq, D = q_ref.shape
    Sk = kv_ref.shape[1]
    d = D // num_heads
    scale = 1.0 / float(np.sqrt(d))

    # Flatten the batch block so the projection matmuls get M = Bb*S rows.
    x_q = q_ref[...].reshape(Bb * Sq, D).astype(jnp.bfloat16)
    x_kv = kv_ref[...].reshape(Bb * Sk, D).astype(jnp.bfloat16)

    # Weights are already bf16 (cast in the wrapper); biases stay f32.
    wq, wk, wv, wo = wq_ref[...], wk_ref[...], wv_ref[...], wo_ref[...]
    bq, bk, bv, bo = bq_ref[...], bk_ref[...], bv_ref[...], bo_ref[...]

    q = jnp.dot(x_q, wq, preferred_element_type=jnp.float32) + bq    # (Bb*Sq, D)
    k = jnp.dot(x_kv, wk, preferred_element_type=jnp.float32) + bk   # (Bb*Sk, D)
    v = jnp.dot(x_kv, wv, preferred_element_type=jnp.float32) + bv   # (Bb*Sk, D)

    # Fold the 1/sqrt(d) scale into q once (cheaper than scaling (Sq,Sk)).
    q = q * scale

    qb = q.astype(jnp.bfloat16)
    kb = k.astype(jnp.bfloat16)
    vb = v.astype(jnp.bfloat16)

    # Per-(batch, head) attention; each batch element's full-width context is
    # written into the VMEM scratch so the per-head temporaries die early.
    for b in range(Bb):
        rq = slice(b * Sq, (b + 1) * Sq)
        rk = slice(b * Sk, (b + 1) * Sk)
        ctx_pieces = []
        for h in range(num_heads):
            cols = slice(h * d, (h + 1) * d)
            qh = qb[rq, cols]                                      # (Sq, d)
            kh = kb[rk, cols]                                      # (Sk, d)
            vh = vb[rk, cols]                                      # (Sk, d)
            s = jnp.einsum('qd,kd->qk', qh, kh,
                           preferred_element_type=jnp.float32)     # (Sq, Sk)
            s = s - jnp.max(s, axis=-1, keepdims=True)
            p = jnp.exp(s)
            denom = jnp.sum(p, axis=-1, keepdims=True)
            p = p * pl.reciprocal(denom, approx=False)
            # attention dropout (eval mode) = identity
            ctx_pieces.append(
                jnp.dot(p.astype(jnp.bfloat16), vh,
                        preferred_element_type=jnp.float32))       # (Sq, d)
        ctx_ref[rq, :] = jnp.concatenate(ctx_pieces, axis=-1)      # (Sq, D)

    # Single K=D output projection (feeds the full MXU systolic depth).
    ctx = ctx_ref[...].astype(jnp.bfloat16)                        # (Bb*Sq, D)
    out = jnp.dot(ctx, wo, preferred_element_type=jnp.float32) + bo
    o_ref[...] = out.reshape(Bb, Sq, D).astype(o_ref.dtype)


def _pick_block_b(B, Sq, Sk, max_rows=512):
    """Largest divisor of B s.t. (a) the parallel grid keeps >= 2 steps when
    B >= 2 (megacore / v7x), and (b) block rows stay bounded for VMEM."""
    best = 1
    for bb in range(1, B + 1):
        if B % bb:
            continue
        if B >= 2 and B // bb < 2:
            continue
        if bb * max(Sq, Sk) > max_rows:
            continue
        best = bb
    return best


def multi_head_attention(q_in, kv_in, wq, bq, wk, bk, wv, bv, wo, bo,
                         *, num_heads):
    """q_in: (B, Sq, D); kv_in: (B, Sk, D); weights in (in, out) math layout."""
    B, Sq, D = q_in.shape
    Sk = kv_in.shape[1]
    block_b = _pick_block_b(B, Sq, Sk)

    flops = 2 * B * D * D * (2 * Sq + 2 * Sk) + 4 * B * Sq * Sk * D
    transc = B * num_heads * Sq * Sk
    bytes_acc = 4 * (2 * B * Sq * D + B * Sk * D) + 2 * (4 * D * D) + 4 * 4 * D

    kernel = functools.partial(mha_kernel, num_heads=num_heads)
    wdt = jnp.bfloat16
    return pl.pallas_call(
        kernel,
        out_shape=jax.ShapeDtypeStruct((B, Sq, D), q_in.dtype),
        grid_spec=pltpu.PrefetchScalarGridSpec(
            num_scalar_prefetch=0,
            grid=(B // block_b,),
            in_specs=[
                pl.BlockSpec((block_b, Sq, D), lambda b: (b, 0, 0)),  # queries
                pl.BlockSpec((block_b, Sk, D), lambda b: (b, 0, 0)),  # keys/values
                pl.BlockSpec((D, D), lambda b: (0, 0)),               # Wq (resident)
                pl.BlockSpec((1, D), lambda b: (0, 0)),               # bq
                pl.BlockSpec((D, D), lambda b: (0, 0)),               # Wk
                pl.BlockSpec((1, D), lambda b: (0, 0)),               # bk
                pl.BlockSpec((D, D), lambda b: (0, 0)),               # Wv
                pl.BlockSpec((1, D), lambda b: (0, 0)),               # bv
                pl.BlockSpec((D, D), lambda b: (0, 0)),               # Wo
                pl.BlockSpec((1, D), lambda b: (0, 0)),               # bo
            ],
            out_specs=pl.BlockSpec((block_b, Sq, D), lambda b: (b, 0, 0)),
            scratch_shapes=[pltpu.VMEM((block_b * Sq, D), jnp.float32)],
        ),
        compiler_params=pltpu.CompilerParams(
            dimension_semantics=("parallel",),
            vmem_limit_bytes=32 * 1024 * 1024),
        cost_estimate=pl.CostEstimate(flops=flops, transcendentals=transc,
                                      bytes_accessed=bytes_acc),
    )(q_in, kv_in,
      wq.astype(wdt), bq.reshape(1, D), wk.astype(wdt), bk.reshape(1, D),
      wv.astype(wdt), bv.reshape(1, D), wo.astype(wdt), bo.reshape(1, D))


# ---------------------------------------------------------------------------
# Kernel 2: shared Linear(2D -> D) + LayerNorm over a padded token slab.
# concat([a, b], -1) @ W_lo is computed as a @ W_a + b @ W_b with
# W_a = W_lo[:D], W_b = W_lo[D:], keeping every block lane-dense.
# ---------------------------------------------------------------------------
def combine_ln_kernel(a_ref, b_ref, wa_ref, wb_ref, bias_ref, g_ref, beta_ref,
                      o_ref):
    a = a_ref[...].astype(jnp.bfloat16)          # (tm, D)
    b = b_ref[...].astype(jnp.bfloat16)          # (tm, D)
    bias = bias_ref[...]                         # (1, D) f32 — read once
    gamma = g_ref[...]
    beta = beta_ref[...]

    y = (jnp.dot(a, wa_ref[...], preferred_element_type=jnp.float32)
         + jnp.dot(b, wb_ref[...], preferred_element_type=jnp.float32)
         + bias)

    # dropout (eval mode) = identity, then LayerNorm (biased variance).
    mean = jnp.mean(y, axis=-1, keepdims=True)
    var = jnp.mean((y - mean) ** 2, axis=-1, keepdims=True)
    y = (y - mean) * jax.lax.rsqrt(var + LN_EPS)
    o_ref[...] = (y * gamma + beta).astype(o_ref.dtype)


def combine_linear_layernorm(a2d, b2d, w_lo, b_lo, gamma, beta, *, max_tm=512):
    """a2d, b2d: (T, D); w_lo: (2D, D).  Returns LayerNorm([a|b] @ w_lo + b_lo).

    T is padded up to a multiple of the row tile (multiple of 8, <= max_tm);
    padded rows are computed (finite: LN of the bias row) and sliced off."""
    T, D = a2d.shape
    wa = w_lo[:D, :].astype(jnp.bfloat16)
    wb = w_lo[D:, :].astype(jnp.bfloat16)

    tm = min(max_tm, _round_up(T, 8))
    t_pad = _round_up(T, tm)
    if t_pad != T:
        pad = ((0, t_pad - T), (0, 0))
        a2d = jnp.pad(a2d, pad)
        b2d = jnp.pad(b2d, pad)

    flops = 4 * t_pad * D * D
    bytes_acc = 4 * 3 * t_pad * D + 2 * 2 * D * D + 4 * 3 * D

    out = pl.pallas_call(
        combine_ln_kernel,
        out_shape=jax.ShapeDtypeStruct((t_pad, D), a2d.dtype),
        grid_spec=pltpu.PrefetchScalarGridSpec(
            num_scalar_prefetch=0,
            grid=(t_pad // tm,),
            in_specs=[
                pl.BlockSpec((tm, D), lambda i: (i, 0)),   # attn1-side rows
                pl.BlockSpec((tm, D), lambda i: (i, 0)),   # attn2-side rows
                pl.BlockSpec((D, D), lambda i: (0, 0)),    # W_lo[:D]  (resident)
                pl.BlockSpec((D, D), lambda i: (0, 0)),    # W_lo[D:]  (resident)
                pl.BlockSpec((1, D), lambda i: (0, 0)),    # bias
                pl.BlockSpec((1, D), lambda i: (0, 0)),    # gamma
                pl.BlockSpec((1, D), lambda i: (0, 0)),    # beta
            ],
            out_specs=pl.BlockSpec((tm, D), lambda i: (i, 0)),
        ),
        compiler_params=pltpu.CompilerParams(
            dimension_semantics=("parallel",),
            vmem_limit_bytes=32 * 1024 * 1024),
        cost_estimate=pl.CostEstimate(flops=flops, transcendentals=t_pad,
                                      bytes_accessed=bytes_acc),
    )(a2d, b2d, wa, wb, b_lo.reshape(1, D), gamma.reshape(1, D),
      beta.reshape(1, D))
    return out[:T]


# ---------------------------------------------------------------------------
# adaptive_resize == F.adaptive_avg_pool2d(x.transpose(1,2), (S1, D)) on a
# 3-D tensor: pools the *feature* axis (D) to S1 and the seq axis (S2) to D.
# Expressed as two static averaging matrices (built at trace time) + einsum.
# ---------------------------------------------------------------------------
def _adaptive_pool_matrix(out_size, in_size):
    m = np.zeros((out_size, in_size), dtype=np.float32)
    for i in range(out_size):
        start = (i * in_size) // out_size
        end = ((i + 1) * in_size + out_size - 1) // out_size
        m[i, start:end] = 1.0 / (end - start)
    return m


def adaptive_resize(x, target_len):
    """x: (B, S2, D) -> (B, target_len, D), matching the PyTorch helper."""
    B, S2, D = x.shape
    ph = jnp.asarray(_adaptive_pool_matrix(target_len, D))  # bins over feature
    pw = jnp.asarray(_adaptive_pool_matrix(D, S2))          # bins over seq
    return jnp.einsum('ih,bwh,jw->bij', ph, x, pw)


# ---------------------------------------------------------------------------
# Full CoAttention forward
# ---------------------------------------------------------------------------
@functools.partial(jax.jit, static_argnames=("num_heads",))
def coattention_forward(x1, x2, params, *, num_heads):
    attn1 = multi_head_attention(
        x1, x2, params["wq1"], params["bq1"], params["wk1"], params["bk1"],
        params["wv1"], params["bv1"], params["wo1"], params["bo1"],
        num_heads=num_heads)
    attn2 = multi_head_attention(
        x2, x1, params["wq2"], params["bq2"], params["wk2"], params["bk2"],
        params["wv2"], params["bv2"], params["wo2"], params["bo2"],
        num_heads=num_heads)

    B, S1, D = attn1.shape
    attn2_res = adaptive_resize(attn2, S1)

    # Single fused combine + LayerNorm over [pooled rows (B) ; token rows (B*S1)].
    a_all = jnp.concatenate(
        [jnp.mean(attn1, axis=1), attn1.reshape(B * S1, D)], axis=0)
    b_all = jnp.concatenate(
        [jnp.mean(attn2, axis=1), attn2_res.reshape(B * S1, D)], axis=0)

    y = combine_linear_layernorm(
        a_all, b_all, params["w_lo"], params["b_lo"],
        params["gamma"], params["beta"])

    out1 = y[:B]                                  # (B, D)
    out2 = y[B:].reshape(B, S1, D)                # (B, S1, D)
    return out1, out2


# ---------------------------------------------------------------------------
# Plain-JAX reference (mirrors the PyTorch forward, dropout = identity)
# ---------------------------------------------------------------------------
def reference_coattention(x1, x2, p, *, num_heads):
    def mha(q_in, kv_in, wq, bq, wk, bk, wv, bv, wo, bo):
        q = q_in @ wq + bq
        k = kv_in @ wk + bk
        v = kv_in @ wv + bv
        B, Sq, D = q.shape
        Sk = k.shape[1]
        d = D // num_heads
        qh = q.reshape(B, Sq, num_heads, d).transpose(0, 2, 1, 3)
        kh = k.reshape(B, Sk, num_heads, d).transpose(0, 2, 1, 3)
        vh = v.reshape(B, Sk, num_heads, d).transpose(0, 2, 1, 3)
        s = jnp.einsum('bhqd,bhkd->bhqk', qh, kh) / np.sqrt(d)
        a = jax.nn.softmax(s, axis=-1)
        ctx = jnp.einsum('bhqk,bhkd->bhqd', a, vh)
        ctx = ctx.transpose(0, 2, 1, 3).reshape(B, Sq, D)
        return ctx @ wo + bo

    def layer_norm(y):
        mean = jnp.mean(y, axis=-1, keepdims=True)
        var = jnp.mean((y - mean) ** 2, axis=-1, keepdims=True)
        return (y - mean) / jnp.sqrt(var + LN_EPS) * p["gamma"] + p["beta"]

    attn1 = mha(x1, x2, p["wq1"], p["bq1"], p["wk1"], p["bk1"],
                p["wv1"], p["bv1"], p["wo1"], p["bo1"])
    attn2 = mha(x2, x1, p["wq2"], p["bq2"], p["wk2"], p["bk2"],
                p["wv2"], p["bv2"], p["wo2"], p["bo2"])

    combined_1 = jnp.concatenate([attn1.mean(axis=1), attn2.mean(axis=1)], -1)
    out1 = layer_norm(combined_1 @ p["w_lo"] + p["b_lo"])

    attn2_new = adaptive_resize(attn2, x1.shape[1])
    combined_2 = jnp.concatenate([attn1, attn2_new], -1)
    out2 = layer_norm(combined_2 @ p["w_lo"] + p["b_lo"])
    return out1, out2


def _linear_params(key, fan_in, fan_out):
    kw, kb = jax.random.split(key)
    w = jax.random.normal(kw, (fan_in, fan_out), jnp.float32) / np.sqrt(fan_in)
    b = jax.random.normal(kb, (fan_out,), jnp.float32) * 0.01
    return w, b


if __name__ == "__main__":
    # Small shapes consistent with the module; D=128 keeps the feature axis
    # lane-dense, num_heads=8 -> dim_per_head=16.
    B, S1, S2, D, H = 2, 8, 16, 128, 8

    keys = jax.random.split(jax.random.PRNGKey(0), 16)
    x1 = jax.random.normal(keys[0], (B, S1, D), jnp.float32)
    x2 = jax.random.normal(keys[1], (B, S2, D), jnp.float32)

    wq1, bq1 = _linear_params(keys[2], D, D)
    wk1, bk1 = _linear_params(keys[3], D, D)
    wv1, bv1 = _linear_params(keys[4], D, D)
    wo1, bo1 = _linear_params(keys[5], D, D)
    wq2, bq2 = _linear_params(keys[6], D, D)
    wk2, bk2 = _linear_params(keys[7], D, D)
    wv2, bv2 = _linear_params(keys[8], D, D)
    wo2, bo2 = _linear_params(keys[9], D, D)
    w_lo, b_lo = _linear_params(keys[10], 2 * D, D)
    gamma = 1.0 + 0.1 * jax.random.normal(keys[11], (D,), jnp.float32)
    beta = 0.1 * jax.random.normal(keys[12], (D,), jnp.float32)

    params = dict(
        wq1=wq1, bq1=bq1, wk1=wk1, bk1=bk1, wv1=wv1, bv1=bv1, wo1=wo1, bo1=bo1,
        wq2=wq2, bq2=bq2, wk2=wk2, bk2=bk2, wv2=wv2, bv2=bv2, wo2=wo2, bo2=bo2,
        w_lo=w_lo, b_lo=b_lo, gamma=gamma, beta=beta)

    out1, out2 = coattention_forward(x1, x2, params, num_heads=H)
    out1, out2 = jax.block_until_ready((out1, out2))

    ref1, ref2 = reference_coattention(x1, x2, params, num_heads=H)

    assert out1.shape == (B, D)
    assert out2.shape == (B, S1, D)
    # bf16 MXU operands (per perf review) vs. an f32 reference -> loosened
    # tolerance compared with the earlier all-f32 kernel.
    assert jnp.allclose(out1, ref1, atol=5e-2, rtol=5e-2), "output_1 mismatch"
    assert jnp.allclose(out2, ref2, atol=5e-2, rtol=5e-2), "output_2 mismatch"

    print("KERNEL_OK")
</pallas_src>

<mosaic_0001>
module attributes {stable_mosaic.version = 11 : i64} {
  func.func @mha_kernel(%arg0: i32, %arg1: memref<1x16x128xf32, #tpu.memory_space<vmem>>, %arg2: memref<1x8x128xf32, #tpu.memory_space<vmem>>, %arg3: memref<128x128xbf16, #tpu.memory_space<vmem>>, %arg4: memref<1x128xf32, #tpu.memory_space<vmem>>, %arg5: memref<128x128xbf16, #tpu.memory_space<vmem>>, %arg6: memref<1x128xf32, #tpu.memory_space<vmem>>, %arg7: memref<128x128xbf16, #tpu.memory_space<vmem>>, %arg8: memref<1x128xf32, #tpu.memory_space<vmem>>, %arg9: memref<128x128xbf16, #tpu.memory_space<vmem>>, %arg10: memref<1x128xf32, #tpu.memory_space<vmem>>, %arg11: memref<1x16x128xf32, #tpu.memory_space<vmem>>, %arg12: memref<16x128xf32, #tpu.memory_space<vmem>>) attributes {dimension_semantics = [#tpu.dimension_semantics<parallel>], iteration_bounds = array<i64: 2>, scalar_prefetch = 0 : i64, scratch_operands = 1 : i64, tpu.core_type = #tpu.core_type<tc>, window_params = [{transform_indices = @transform_0, window_bounds = array<i64: 1, 16, 128>}, {transform_indices = @transform_1, window_bounds = array<i64: 1, 8, 128>}, {pipeline_mode = #tpu.pipeline_mode<synchronous>, transform_indices = @transform_2, window_bounds = array<i64: 128, 128>}, {pipeline_mode = #tpu.pipeline_mode<synchronous>, transform_indices = @transform_3, window_bounds = array<i64: 1, 128>}, {pipeline_mode = #tpu.pipeline_mode<synchronous>, transform_indices = @transform_4, window_bounds = array<i64: 128, 128>}, {pipeline_mode = #tpu.pipeline_mode<synchronous>, transform_indices = @transform_5, window_bounds = array<i64: 1, 128>}, {pipeline_mode = #tpu.pipeline_mode<synchronous>, transform_indices = @transform_6, window_bounds = array<i64: 128, 128>}, {pipeline_mode = #tpu.pipeline_mode<synchronous>, transform_indices = @transform_7, window_bounds = array<i64: 1, 128>}, {pipeline_mode = #tpu.pipeline_mode<synchronous>, transform_indices = @transform_8, window_bounds = array<i64: 128, 128>}, {pipeline_mode = #tpu.pipeline_mode<synchronous>, transform_indices = @transform_9, window_bounds = array<i64: 1, 128>}, {transform_indices = @transform_10, window_bounds = array<i64: 1, 16, 128>}]} {
    %c0 = arith.constant 0 : index
    %c0_0 = arith.constant 0 : index
    %c0_1 = arith.constant 0 : index
    %0 = vector.load %arg1[%c0, %c0_0, %c0_1] : memref<1x16x128xf32, #tpu.memory_space<vmem>>, vector<1x16x128xf32>
    %1 = vector.shape_cast %0 : vector<1x16x128xf32> to vector<16x128xf32>
    %2 = arith.truncf %1 : vector<16x128xf32> to vector<16x128xbf16>
    %c0_2 = arith.constant 0 : index
    %c0_3 = arith.constant 0 : index
    %c0_4 = arith.constant 0 : index
    %3 = vector.load %arg2[%c0_2, %c0_3, %c0_4] : memref<1x8x128xf32, #tpu.memory_space<vmem>>, vector<1x8x128xf32>
    %4 = vector.shape_cast %3 : vector<1x8x128xf32> to vector<8x128xf32>
    %5 = arith.truncf %4 : vector<8x128xf32> to vector<8x128xbf16>
    %c0_5 = arith.constant 0 : index
    %c0_6 = arith.constant 0 : index
    %6 = vector.load %arg3[%c0_5, %c0_6] : memref<128x128xbf16, #tpu.memory_space<vmem>>, vector<128x128xbf16>
    %c0_7 = arith.constant 0 : index
    %c0_8 = arith.constant 0 : index
    %7 = vector.load %arg5[%c0_7, %c0_8] : memref<128x128xbf16, #tpu.memory_space<vmem>>, vector<128x128xbf16>
    %c0_9 = arith.constant 0 : index
    %c0_10 = arith.constant 0 : index
    %8 = vector.load %arg7[%c0_9, %c0_10] : memref<128x128xbf16, #tpu.memory_space<vmem>>, vector<128x128xbf16>
    %c0_11 = arith.constant 0 : index
    %c0_12 = arith.constant 0 : index
    %9 = vector.load %arg9[%c0_11, %c0_12] : memref<128x128xbf16, #tpu.memory_space<vmem>>, vector<128x128xbf16>
    %c0_13 = arith.constant 0 : index
    %c0_14 = arith.constant 0 : index
    %10 = vector.load %arg4[%c0_13, %c0_14] : memref<1x128xf32, #tpu.memory_space<vmem>>, vector<1x128xf32>
    %c0_15 = arith.constant 0 : index
    %c0_16 = arith.constant 0 : index
    %11 = vector.load %arg6[%c0_15, %c0_16] : memref<1x128xf32, #tpu.memory_space<vmem>>, vector<1x128xf32>
    %c0_17 = arith.constant 0 : index
    %c0_18 = arith.constant 0 : index
    %12 = vector.load %arg8[%c0_17, %c0_18] : memref<1x128xf32, #tpu.memory_space<vmem>>, vector<1x128xf32>
    %c0_19 = arith.constant 0 : index
    %c0_20 = arith.constant 0 : index
    %13 = vector.load %arg10[%c0_19, %c0_20] : memref<1x128xf32, #tpu.memory_space<vmem>>, vector<1x128xf32>
    %cst = arith.constant dense<0.000000e+00> : vector<16x128xf32>
    %14 = tpu.matmul %2, %6, %cst {dimension_numbers = #tpu.dot_dimension_numbers<[1], [0], [0], [1], [0, 0, 1, 1], [], []>} : vector<16x128xbf16>, vector<128x128xbf16>, vector<16x128xf32> -> vector<16x128xf32>
    %15 = vector.broadcast %10 : vector<1x128xf32> to vector<16x128xf32>
    %16 = arith.addf %14, %15 : vector<16x128xf32>
    %cst_21 = arith.constant dense<0.000000e+00> : vector<8x128xf32>
    %17 = tpu.matmul %5, %7, %cst_21 {dimension_numbers = #tpu.dot_dimension_numbers<[1], [0], [0], [1], [0, 0, 1, 1], [], []>} : vector<8x128xbf16>, vector<128x128xbf16>, vector<8x128xf32> -> vector<8x128xf32>
    %18 = vector.broadcast %11 : vector<1x128xf32> to vector<8x128xf32>
    %19 = arith.addf %17, %18 : vector<8x128xf32>
    %cst_22 = arith.constant dense<0.000000e+00> : vector<8x128xf32>
    %20 = tpu.matmul %5, %8, %cst_22 {dimension_numbers = #tpu.dot_dimension_numbers<[1], [0], [0], [1], [0, 0, 1, 1], [], []>} : vector<8x128xbf16>, vector<128x128xbf16>, vector<8x128xf32> -> vector<8x128xf32>
    %21 = vector.broadcast %12 : vector<1x128xf32> to vector<8x128xf32>
    %22 = arith.addf %20, %21 : vector<8x128xf32>
    %cst_23 = arith.constant 2.500000e-01 : f32
    %23 = vector.broadcast %cst_23 : f32 to vector<16x128xf32>
    %24 = arith.mulf %16, %23 : vector<16x128xf32>
    %25 = arith.truncf %24 : vector<16x128xf32> to vector<16x128xbf16>
    %26 = arith.truncf %19 : vector<8x128xf32> to vector<8x128xbf16>
    %27 = arith.truncf %22 : vector<8x128xf32> to vector<8x128xbf16>
    %28 = vector.extract_strided_slice %25 {offsets = [0, 0], sizes = [16, 16], strides = [1, 1]} : vector<16x128xbf16> to vector<16x16xbf16>
    %29 = vector.extract_strided_slice %26 {offsets = [0, 0], sizes = [8, 16], strides = [1, 1]} : vector<8x128xbf16> to vector<8x16xbf16>
    %30 = vector.extract_strided_slice %27 {offsets = [0, 0], sizes = [8, 16], strides = [1, 1]} : vector<8x128xbf16> to vector<8x16xbf16>
    "tpu.trace_start"() <{level = 10 : i32, message = "qd,kd->qk"}> : () -> ()
    %cst_24 = arith.constant dense<0.000000e+00> : vector<16x8xf32>
    %31 = tpu.matmul %28, %29, %cst_24 {dimension_numbers = #tpu.dot_dimension_numbers<[1], [1], [0], [0], [0, 0, 1, 0], [], []>} : vector<16x16xbf16>, vector<8x16xbf16>, vector<16x8xf32> -> vector<16x8xf32>
    "tpu.trace_stop"() : () -> ()
    %cst_25 = arith.constant dense<0xFF800000> : vector<16xf32>
    %32 = vector.multi_reduction <maximumf>, %31, %cst_25 [1] : vector<16x8xf32> to vector<16xf32>
    %33 = vector.shape_cast %32 : vector<16xf32> to vector<16x1xf32>
    %34 = vector.broadcast %33 : vector<16x1xf32> to vector<16x8xf32>
    %35 = arith.subf %31, %34 : vector<16x8xf32>
    %36 = math.exp %35 : vector<16x8xf32>
    %cst_26 = arith.constant dense<0.000000e+00> : vector<16xf32>
    %37 = vector.multi_reduction <add>, %36, %cst_26 [1] : vector<16x8xf32> to vector<16xf32>
    %38 = vector.shape_cast %37 : vector<16xf32> to vector<16x1xf32>
    %39 = tpu.reciprocal %38 : vector<16x1xf32> -> vector<16x1xf32>
    %40 = vector.broadcast %39 : vector<16x1xf32> to vector<16x8xf32>
    %41 = arith.mulf %36, %40 : vector<16x8xf32>
    %42 = arith.truncf %41 : vector<16x8xf32> to vector<16x8xbf16>
    %cst_27 = arith.constant dense<0.000000e+00> : vector<16x16xf32>
    %43 = tpu.matmul %42, %30, %cst_27 {dimension_numbers = #tpu.dot_dimension_numbers<[1], [0], [0], [1], [0, 0, 1, 1], [], []>} : vector<16x8xbf16>, vector<8x16xbf16>, vector<16x16xf32> -> vector<16x16xf32>
    %44 = vector.extract_strided_slice %25 {offsets = [0, 16], sizes = [16, 16], strides = [1, 1]} : vector<16x128xbf16> to vector<16x16xbf16>
    %45 = vector.extract_strided_slice %26 {offsets = [0, 16], sizes = [8, 16], strides = [1, 1]} : vector<8x128xbf16> to vector<8x16xbf16>
    %46 = vector.extract_strided_slice %27 {offsets = [0, 16], sizes = [8, 16], strides = [1, 1]} : vector<8x128xbf16> to vector<8x16xbf16>
    "tpu.trace_start"() <{level = 10 : i32, message = "qd,kd->qk"}> : () -> ()
    %cst_28 = arith.constant dense<0.000000e+00> : vector<16x8xf32>
    %47 = tpu.matmul %44, %45, %cst_28 {dimension_numbers = #tpu.dot_dimension_numbers<[1], [1], [0], [0], [0, 0, 1, 0], [], []>} : vector<16x16xbf16>, vector<8x16xbf16>, vector<16x8xf32> -> vector<16x8xf32>
    "tpu.trace_stop"() : () -> ()
    %cst_29 = arith.constant dense<0xFF800000> : vector<16xf32>
    %48 = vector.multi_reduction <maximumf>, %47, %cst_29 [1] : vector<16x8xf32> to vector<16xf32>
    %49 = vector.shape_cast %48 : vector<16xf32> to vector<16x1xf32>
    %50 = vector.broadcast %49 : vector<16x1xf32> to vector<16x8xf32>
    %51 = arith.subf %47, %50 : vector<16x8xf32>
    %52 = math.exp %51 : vector<16x8xf32>
    %cst_30 = arith.constant dense<0.000000e+00> : vector<16xf32>
    %53 = vector.multi_reduction <add>, %52, %cst_30 [1] : vector<16x8xf32> to vector<16xf32>
    %54 = vector.shape_cast %53 : vector<16xf32> to vector<16x1xf32>
    %55 = tpu.reciprocal %54 : vector<16x1xf32> -> vector<16x1xf32>
    %56 = vector.broadcast %55 : vector<16x1xf32> to vector<16x8xf32>
    %57 = arith.mulf %52, %56 : vector<16x8xf32>
    %58 = arith.truncf %57 : vector<16x8xf32> to vector<16x8xbf16>
    %cst_31 = arith.constant dense<0.000000e+00> : vector<16x16xf32>
    %59 = tpu.matmul %58, %46, %cst_31 {dimension_numbers = #tpu.dot_dimension_numbers<[1], [0], [0], [1], [0, 0, 1, 1], [], []>} : vector<16x8xbf16>, vector<8x16xbf16>, vector<16x16xf32> -> vector<16x16xf32>
    %60 = vector.extract_strided_slice %25 {offsets = [0, 32], sizes = [16, 16], strides = [1, 1]} : vector<16x128xbf16> to vector<16x16xbf16>
    %61 = vector.extract_strided_slice %26 {offsets = [0, 32], sizes = [8, 16], strides = [1, 1]} : vector<8x128xbf16> to vector<8x16xbf16>
    %62 = vector.extract_strided_slice %27 {offsets = [0, 32], sizes = [8, 16], strides = [1, 1]} : vector<8x128xbf16> to vector<8x16xbf16>
    "tpu.trace_start"() <{level = 10 : i32, message = "qd,kd->qk"}> : () -> ()
    %cst_32 = arith.constant dense<0.000000e+00> : vector<16x8xf32>
    %63 = tpu.matmul %60, %61, %cst_32 {dimension_numbers = #tpu.dot_dimension_numbers<[1], [1], [0], [0], [0, 0, 1, 0], [], []>} : vector<16x16xbf16>, vector<8x16xbf16>, vector<16x8xf32> -> vector<16x8xf32>
    "tpu.trace_stop"() : () -> ()
    %cst_33 = arith.constant dense<0xFF800000> : vector<16xf32>
    %64 = vector.multi_reduction <maximumf>, %63, %cst_33 [1] : vector<16x8xf32> to vector<16xf32>
    %65 = vector.shape_cast %64 : vector<16xf32> to vector<16x1xf32>
    %66 = vector.broadcast %65 : vector<16x1xf32> to vector<16x8xf32>
    %67 = arith.subf %63, %66 : vector<16x8xf32>
    %68 = math.exp %67 : vector<16x8xf32>
    %cst_34 = arith.constant dense<0.000000e+00> : vector<16xf32>
    %69 = vector.multi_reduction <add>, %68, %cst_34 [1] : vector<16x8xf32> to vector<16xf32>
    %70 = vector.shape_cast %69 : vector<16xf32> to vector<16x1xf32>
    %71 = tpu.reciprocal %70 : vector<16x1xf32> -> vector<16x1xf32>
    %72 = vector.broadcast %71 : vector<16x1xf32> to vector<16x8xf32>
    %73 = arith.mulf %68, %72 : vector<16x8xf32>
    %74 = arith.truncf %73 : vector<16x8xf32> to vector<16x8xbf16>
    %cst_35 = arith.constant dense<0.000000e+00> : vector<16x16xf32>
    %75 = tpu.matmul %74, %62, %cst_35 {dimension_numbers = #tpu.dot_dimension_numbers<[1], [0], [0], [1], [0, 0, 1, 1], [], []>} : vector<16x8xbf16>, vector<8x16xbf16>, vector<16x16xf32> -> vector<16x16xf32>
    %76 = vector.extract_strided_slice %25 {offsets = [0, 48], sizes = [16, 16], strides = [1, 1]} : vector<16x128xbf16> to vector<16x16xbf16>
    %77 = vector.extract_strided_slice %26 {offsets = [0, 48], sizes = [8, 16], strides = [1, 1]} : vector<8x128xbf16> to vector<8x16xbf16>
    %78 = vector.extract_strided_slice %27 {offsets = [0, 48], sizes = [8, 16], strides = [1, 1]} : vector<8x128xbf16> to vector<8x16xbf16>
    "tpu.trace_start"() <{level = 10 : i32, message = "qd,kd->qk"}> : () -> ()
    %cst_36 = arith.constant dense<0.000000e+00> : vector<16x8xf32>
    %79 = tpu.matmul %76, %77, %cst_36 {dimension_numbers = #tpu.dot_dimension_numbers<[1], [1], [0], [0], [0, 0, 1, 0], [], []>} : vector<16x16xbf16>, vector<8x16xbf16>, vector<16x8xf32> -> vector<16x8xf32>
    "tpu.trace_stop"() : () -> ()
    %cst_37 = arith.constant dense<0xFF800000> : vector<16xf32>
    %80 = vector.multi_reduction <maximumf>, %79, %cst_37 [1] : vector<16x8xf32> to vector<16xf32>
    %81 = vector.shape_cast %80 : vector<16xf32> to vector<16x1xf32>
    %82 = vector.broadcast %81 : vector<16x1xf32> to vector<16x8xf32>
    %83 = arith.subf %79, %82 : vector<16x8xf32>
    %84 = math.exp %83 : vector<16x8xf32>
    %cst_38 = arith.constant dense<0.000000e+00> : vector<16xf32>
    %85 = vector.multi_reduction <add>, %84, %cst_38 [1] : vector<16x8xf32> to vector<16xf32>
    %86 = vector.shape_cast %85 : vector<16xf32> to vector<16x1xf32>
    %87 = tpu.reciprocal %86 : vector<16x1xf32> -> vector<16x1xf32>
    %88 = vector.broadcast %87 : vector<16x1xf32> to vector<16x8xf32>
    %89 = arith.mulf %84, %88 : vector<16x8xf32>
    %90 = arith.truncf %89 : vector<16x8xf32> to vector<16x8xbf16>
    %cst_39 = arith.constant dense<0.000000e+00> : vector<16x16xf32>
    %91 = tpu.matmul %90, %78, %cst_39 {dimension_numbers = #tpu.dot_dimension_numbers<[1], [0], [0], [1], [0, 0, 1, 1], [], []>} : vector<16x8xbf16>, vector<8x16xbf16>, vector<16x16xf32> -> vector<16x16xf32>
    %92 = vector.extract_strided_slice %25 {offsets = [0, 64], sizes = [16, 16], strides = [1, 1]} : vector<16x128xbf16> to vector<16x16xbf16>
    %93 = vector.extract_strided_slice %26 {offsets = [0, 64], sizes = [8, 16], strides = [1, 1]} : vector<8x128xbf16> to vector<8x16xbf16>
    %94 = vector.extract_strided_slice %27 {offsets = [0, 64], sizes = [8, 16], strides = [1, 1]} : vector<8x128xbf16> to vector<8x16xbf16>
    "tpu.trace_start"() <{level = 10 : i32, message = "qd,kd->qk"}> : () -> ()
    %cst_40 = arith.constant dense<0.000000e+00> : vector<16x8xf32>
    %95 = tpu.matmul %92, %93, %cst_40 {dimension_numbers = #tpu.dot_dimension_numbers<[1], [1], [0], [0], [0, 0, 1, 0], [], []>} : vector<16x16xbf16>, vector<8x16xbf16>, vector<16x8xf32> -> vector<16x8xf32>
    "tpu.trace_stop"() : () -> ()
    %cst_41 = arith.constant dense<0xFF800000> : vector<16xf32>
    %96 = vector.multi_reduction <maximumf>, %95, %cst_41 [1] : vector<16x8xf32> to vector<16xf32>
    %97 = vector.shape_cast %96 : vector<16xf32> to vector<16x1xf32>
    %98 = vector.broadcast %97 : vector<16x1xf32> to vector<16x8xf32>
    %99 = arith.subf %95, %98 : vector<16x8xf32>
    %100 = math.exp %99 : vector<16x8xf32>
    %cst_42 = arith.constant dense<0.000000e+00> : vector<16xf32>
    %101 = vector.multi_reduction <add>, %100, %cst_42 [1] : vector<16x8xf32> to vector<16xf32>
    %102 = vector.shape_cast %101 : vector<16xf32> to vector<16x1xf32>
    %103 = tpu.reciprocal %102 : vector<16x1xf32> -> vector<16x1xf32>
    %104 = vector.broadcast %103 : vector<16x1xf32> to vector<16x8xf32>
    %105 = arith.mulf %100, %104 : vector<16x8xf32>
    %106 = arith.truncf %105 : vector<16x8xf32> to vector<16x8xbf16>
    %cst_43 = arith.constant dense<0.000000e+00> : vector<16x16xf32>
    %107 = tpu.matmul %106, %94, %cst_43 {dimension_numbers = #tpu.dot_dimension_numbers<[1], [0], [0], [1], [0, 0, 1, 1], [], []>} : vector<16x8xbf16>, vector<8x16xbf16>, vector<16x16xf32> -> vector<16x16xf32>
    %108 = vector.extract_strided_slice %25 {offsets = [0, 80], sizes = [16, 16], strides = [1, 1]} : vector<16x128xbf16> to vector<16x16xbf16>
    %109 = vector.extract_strided_slice %26 {offsets = [0, 80], sizes = [8, 16], strides = [1, 1]} : vector<8x128xbf16> to vector<8x16xbf16>
    %110 = vector.extract_strided_slice %27 {offsets = [0, 80], sizes = [8, 16], strides = [1, 1]} : vector<8x128xbf16> to vector<8x16xbf16>
    "tpu.trace_start"() <{level = 10 : i32, message = "qd,kd->qk"}> : () -> ()
    %cst_44 = arith.constant dense<0.000000e+00> : vector<16x8xf32>
    %111 = tpu.matmul %108, %109, %cst_44 {dimension_numbers = #tpu.dot_dimension_numbers<[1], [1], [0], [0], [0, 0, 1, 0], [], []>} : vector<16x16xbf16>, vector<8x16xbf16>, vector<16x8xf32> -> vector<16x8xf32>
    "tpu.trace_stop"() : () -> ()
    %cst_45 = arith.constant dense<0xFF800000> : vector<16xf32>
    %112 = vector.multi_reduction <maximumf>, %111, %cst_45 [1] : vector<16x8xf32> to vector<16xf32>
    %113 = vector.shape_cast %112 : vector<16xf32> to vector<16x1xf32>
    %114 = vector.broadcast %113 : vector<16x1xf32> to vector<16x8xf32>
    %115 = arith.subf %111, %114 : vector<16x8xf32>
    %116 = math.exp %115 : vector<16x8xf32>
    %cst_46 = arith.constant dense<0.000000e+00> : vector<16xf32>
    %117 = vector.multi_reduction <add>, %116, %cst_46 [1] : vector<16x8xf32> to vector<16xf32>
    %118 = vector.shape_cast %117 : vector<16xf32> to vector<16x1xf32>
    %119 = tpu.reciprocal %118 : vector<16x1xf32> -> vector<16x1xf32>
    %120 = vector.broadcast %119 : vector<16x1xf32> to vector<16x8xf32>
    %121 = arith.mulf %116, %120 : vector<16x8xf32>
    %122 = arith.truncf %121 : vector<16x8xf32> to vector<16x8xbf16>
    %cst_47 = arith.constant dense<0.000000e+00> : vector<16x16xf32>
    %123 = tpu.matmul %122, %110, %cst_47 {dimension_numbers = #tpu.dot_dimension_numbers<[1], [0], [0], [1], [0, 0, 1, 1], [], []>} : vector<16x8xbf16>, vector<8x16xbf16>, vector<16x16xf32> -> vector<16x16xf32>
    %124 = vector.extract_strided_slice %25 {offsets = [0, 96], sizes = [16, 16], strides = [1, 1]} : vector<16x128xbf16> to vector<16x16xbf16>
    %125 = vector.extract_strided_slice %26 {offsets = [0, 96], sizes = [8, 16], strides = [1, 1]} : vector<8x128xbf16> to vector<8x16xbf16>
    %126 = vector.extract_strided_slice %27 {offsets = [0, 96], sizes = [8, 16], strides = [1, 1]} : vector<8x128xbf16> to vector<8x16xbf16>
    "tpu.trace_start"() <{level = 10 : i32, message = "qd,kd->qk"}> : () -> ()
    %cst_48 = arith.constant dense<0.000000e+00> : vector<16x8xf32>
    %127 = tpu.matmul %124, %125, %cst_48 {dimension_numbers = #tpu.dot_dimension_numbers<[1], [1], [0], [0], [0, 0, 1, 0], [], []>} : vector<16x16xbf16>, vector<8x16xbf16>, vector<16x8xf32> -> vector<16x8xf32>
    "tpu.trace_stop"() : () -> ()
    %cst_49 = arith.constant dense<0xFF800000> : vector<16xf32>
    %128 = vector.multi_reduction <maximumf>, %127, %cst_49 [1] : vector<16x8xf32> to vector<16xf32>
    %129 = vector.shape_cast %128 : vector<16xf32> to vector<16x1xf32>
    %130 = vector.broadcast %129 : vector<16x1xf32> to vector<16x8xf32>
    %131 = arith.subf %127, %130 : vector<16x8xf32>
    %132 = math.exp %131 : vector<16x8xf32>
    %cst_50 = arith.constant dense<0.000000e+00> : vector<16xf32>
    %133 = vector.multi_reduction <add>, %132, %cst_50 [1] : vector<16x8xf32> to vector<16xf32>
    %134 = vector.shape_cast %133 : vector<16xf32> to vector<16x1xf32>
    %135 = tpu.reciprocal %134 : vector<16x1xf32> -> vector<16x1xf32>
    %136 = vector.broadcast %135 : vector<16x1xf32> to vector<16x8xf32>
    %137 = arith.mulf %132, %136 : vector<16x8xf32>
    %138 = arith.truncf %137 : vector<16x8xf32> to vector<16x8xbf16>
    %cst_51 = arith.constant dense<0.000000e+00> : vector<16x16xf32>
    %139 = tpu.matmul %138, %126, %cst_51 {dimension_numbers = #tpu.dot_dimension_numbers<[1], [0], [0], [1], [0, 0, 1, 1], [], []>} : vector<16x8xbf16>, vector<8x16xbf16>, vector<16x16xf32> -> vector<16x16xf32>
    %140 = vector.extract_strided_slice %25 {offsets = [0, 112], sizes = [16, 16], strides = [1, 1]} : vector<16x128xbf16> to vector<16x16xbf16>
    %141 = vector.extract_strided_slice %26 {offsets = [0, 112], sizes = [8, 16], strides = [1, 1]} : vector<8x128xbf16> to vector<8x16xbf16>
    %142 = vector.extract_strided_slice %27 {offsets = [0, 112], sizes = [8, 16], strides = [1, 1]} : vector<8x128xbf16> to vector<8x16xbf16>
    "tpu.trace_start"() <{level = 10 : i32, message = "qd,kd->qk"}> : () -> ()
    %cst_52 = arith.constant dense<0.000000e+00> : vector<16x8xf32>
    %143 = tpu.matmul %140, %141, %cst_52 {dimension_numbers = #tpu.dot_dimension_numbers<[1], [1], [0], [0], [0, 0, 1, 0], [], []>} : vector<16x16xbf16>, vector<8x16xbf16>, vector<16x8xf32> -> vector<16x8xf32>
    "tpu.trace_stop"() : () -> ()
    %cst_53 = arith.constant dense<0xFF800000> : vector<16xf32>
    %144 = vector.multi_reduction <maximumf>, %143, %cst_53 [1] : vector<16x8xf32> to vector<16xf32>
    %145 = vector.shape_cast %144 : vector<16xf32> to vector<16x1xf32>
    %146 = vector.broadcast %145 : vector<16x1xf32> to vector<16x8xf32>
    %147 = arith.subf %143, %146 : vector<16x8xf32>
    %148 = math.exp %147 : vector<16x8xf32>
    %cst_54 = arith.constant dense<0.000000e+00> : vector<16xf32>
    %149 = vector.multi_reduction <add>, %148, %cst_54 [1] : vector<16x8xf32> to vector<16xf32>
    %150 = vector.shape_cast %149 : vector<16xf32> to vector<16x1xf32>
    %151 = tpu.reciprocal %150 : vector<16x1xf32> -> vector<16x1xf32>
    %152 = vector.broadcast %151 : vector<16x1xf32> to vector<16x8xf32>
    %153 = arith.mulf %148, %152 : vector<16x8xf32>
    %154 = arith.truncf %153 : vector<16x8xf32> to vector<16x8xbf16>
    %cst_55 = arith.constant dense<0.000000e+00> : vector<16x16xf32>
    %155 = tpu.matmul %154, %142, %cst_55 {dimension_numbers = #tpu.dot_dimension_numbers<[1], [0], [0], [1], [0, 0, 1, 1], [], []>} : vector<16x8xbf16>, vector<8x16xbf16>, vector<16x16xf32> -> vector<16x16xf32>
    %156 = tpu.concatenate %43, %59, %75, %91, %107, %123, %139, %155 in 1 : vector<16x16xf32>, vector<16x16xf32>, vector<16x16xf32>, vector<16x16xf32>, vector<16x16xf32>, vector<16x16xf32>, vector<16x16xf32>, vector<16x16xf32> -> vector<16x128xf32>
    %c0_56 = arith.constant 0 : index
    %c0_57 = arith.constant 0 : index
    %157 = vector.load %arg12[%c0_56, %c0_57] : memref<16x128xf32, #tpu.memory_space<vmem>>, vector<16x128xf32>
    tpu.vector_store %arg12[%c0_56, %c0_57], %156 {strides = array<i32>} : memref<16x128xf32, #tpu.memory_space<vmem>>, vector<16x128xf32>,
    %c0_58 = arith.constant 0 : index
    %c0_59 = arith.constant 0 : index
    %158 = vector.load %arg12[%c0_58, %c0_59] : memref<16x128xf32, #tpu.memory_space<vmem>>, vector<16x128xf32>
    %159 = arith.truncf %158 : vector<16x128xf32> to vector<16x128xbf16>
    %cst_60 = arith.constant dense<0.000000e+00> : vector<16x128xf32>
    %160 = tpu.matmul %159, %9, %cst_60 {dimension_numbers = #tpu.dot_dimension_numbers<[1], [0], [0], [1], [0, 0, 1, 1], [], []>} : vector<16x128xbf16>, vector<128x128xbf16>, vector<16x128xf32> -> vector<16x128xf32>
    %161 = vector.broadcast %13 : vector<1x128xf32> to vector<16x128xf32>
    %162 = arith.addf %160, %161 : vector<16x128xf32>
    %163 = vector.shape_cast %162 : vector<16x128xf32> to vector<1x16x128xf32>
    %c0_61 = arith.constant 0 : index
    %c0_62 = arith.constant 0 : index
    %c0_63 = arith.constant 0 : index
    %164 = vector.load %arg11[%c0_61, %c0_62, %c0_63] : memref<1x16x128xf32, #tpu.memory_space<vmem>>, vector<1x16x128xf32>
    tpu.vector_store %arg11[%c0_61, %c0_62, %c0_63], %163 {strides = array<i32>} : memref<1x16x128xf32, #tpu.memory_space<vmem>>, vector<1x16x128xf32>,
    return
  }
  func.func @transform_0(%arg0: i32) -> (i32, i32, i32) {
    %c0_i32 = arith.constant 0 : i32
    %c0_i32_0 = arith.constant 0 : i32
    %c0_i32_1 = arith.constant 0 : i32
    return %arg0, %c0_i32, %c0_i32_0 : i32, i32, i32
  }
  func.func @transform_1(%arg0: i32) -> (i32, i32, i32) {
    %c0_i32 = arith.constant 0 : i32
    %c0_i32_0 = arith.constant 0 : i32
    %c0_i32_1 = arith.constant 0 : i32
    return %arg0, %c0_i32, %c0_i32_0 : i32, i32, i32
  }
  func.func @transform_2(%arg0: i32) -> (i32, i32) {
    %c0_i32 = arith.constant 0 : i32
    %c0_i32_0 = arith.constant 0 : i32
    %c0_i32_1 = arith.constant 0 : i32
    return %c0_i32, %c0_i32_0 : i32, i32
  }
  func.func @transform_3(%arg0: i32) -> (i32, i32) {
    %c0_i32 = arith.constant 0 : i32
    %c0_i32_0 = arith.constant 0 : i32
    %c0_i32_1 = arith.constant 0 : i32
    return %c0_i32, %c0_i32_0 : i32, i32
  }
  func.func @transform_4(%arg0: i32) -> (i32, i32) {
    %c0_i32 = arith.constant 0 : i32
    %c0_i32_0 = arith.constant 0 : i32
    %c0_i32_1 = arith.constant 0 : i32
    return %c0_i32, %c0_i32_0 : i32, i32
  }
  func.func @transform_5(%arg0: i32) -> (i32, i32) {
    %c0_i32 = arith.constant 0 : i32
    %c0_i32_0 = arith.constant 0 : i32
    %c0_i32_1 = arith.constant 0 : i32
    return %c0_i32, %c0_i32_0 : i32, i32
  }
  func.func @transform_6(%arg0: i32) -> (i32, i32) {
    %c0_i32 = arith.constant 0 : i32
    %c0_i32_0 = arith.constant 0 : i32
    %c0_i32_1 = arith.constant 0 : i32
    return %c0_i32, %c0_i32_0 : i32, i32
  }
  func.func @transform_7(%arg0: i32) -> (i32, i32) {
    %c0_i32 = arith.constant 0 : i32
    %c0_i32_0 = arith.constant 0 : i32
    %c0_i32_1 = arith.constant 0 : i32
    return %c0_i32, %c0_i32_0 : i32, i32
  }
  func.func @transform_8(%arg0: i32) -> (i32, i32) {
    %c0_i32 = arith.constant 0 : i32
    %c0_i32_0 = arith.constant 0 : i32
    %c0_i32_1 = arith.constant 0 : i32
    return %c0_i32, %c0_i32_0 : i32, i32
  }
  func.func @transform_9(%arg0: i32) -> (i32, i32) {
    %c0_i32 = arith.constant 0 : i32
    %c0_i32_0 = arith.constant 0 : i32
    %c0_i32_1 = arith.constant 0 : i32
    return %c0_i32, %c0_i32_0 : i32, i32
  }
  func.func @transform_10(%arg0: i32) -> (i32, i32, i32) {
    %c0_i32 = arith.constant 0 : i32
    %c0_i32_0 = arith.constant 0 : i32
    %c0_i32_1 = arith.constant 0 : i32
    return %arg0, %c0_i32, %c0_i32_0 : i32, i32, i32
  }
}

module attributes {stable_mosaic.version = 11 : i64} {
  func.func @mha_kernel(%arg0: i32, %arg1: memref<1x8x128xf32, #tpu.memory_space<vmem>>, %arg2: memref<1x16x128xf32, #tpu.memory_space<vmem>>, %arg3: memref<128x128xbf16, #tpu.memory_space<vmem>>, %arg4: memref<1x128xf32, #tpu.memory_space<vmem>>, %arg5: memref<128x128xbf16, #tpu.memory_space<vmem>>, %arg6: memref<1x128xf32, #tpu.memory_space<vmem>>, %arg7: memref<128x128xbf16, #tpu.memory_space<vmem>>, %arg8: memref<1x128xf32, #tpu.memory_space<vmem>>, %arg9: memref<128x128xbf16, #tpu.memory_space<vmem>>, %arg10: memref<1x128xf32, #tpu.memory_space<vmem>>, %arg11: memref<1x8x128xf32, #tpu.memory_space<vmem>>, %arg12: memref<8x128xf32, #tpu.memory_space<vmem>>) attributes {dimension_semantics = [#tpu.dimension_semantics<parallel>], iteration_bounds = array<i64: 2>, scalar_prefetch = 0 : i64, scratch_operands = 1 : i64, tpu.core_type = #tpu.core_type<tc>, window_params = [{transform_indices = @transform_0, window_bounds = array<i64: 1, 8, 128>}, {transform_indices = @transform_1, window_bounds = array<i64: 1, 16, 128>}, {pipeline_mode = #tpu.pipeline_mode<synchronous>, transform_indices = @transform_2, window_bounds = array<i64: 128, 128>}, {pipeline_mode = #tpu.pipeline_mode<synchronous>, transform_indices = @transform_3, window_bounds = array<i64: 1, 128>}, {pipeline_mode = #tpu.pipeline_mode<synchronous>, transform_indices = @transform_4, window_bounds = array<i64: 128, 128>}, {pipeline_mode = #tpu.pipeline_mode<synchronous>, transform_indices = @transform_5, window_bounds = array<i64: 1, 128>}, {pipeline_mode = #tpu.pipeline_mode<synchronous>, transform_indices = @transform_6, window_bounds = array<i64: 128, 128>}, {pipeline_mode = #tpu.pipeline_mode<synchronous>, transform_indices = @transform_7, window_bounds = array<i64: 1, 128>}, {pipeline_mode = #tpu.pipeline_mode<synchronous>, transform_indices = @transform_8, window_bounds = array<i64: 128, 128>}, {pipeline_mode = #tpu.pipeline_mode<synchronous>, transform_indices = @transform_9, window_bounds = array<i64: 1, 128>}, {transform_indices = @transform_10, window_bounds = array<i64: 1, 8, 128>}]} {
    %c0 = arith.constant 0 : index
    %c0_0 = arith.constant 0 : index
    %c0_1 = arith.constant 0 : index
    %0 = vector.load %arg1[%c0, %c0_0, %c0_1] : memref<1x8x128xf32, #tpu.memory_space<vmem>>, vector<1x8x128xf32>
    %1 = vector.shape_cast %0 : vector<1x8x128xf32> to vector<8x128xf32>
    %2 = arith.truncf %1 : vector<8x128xf32> to vector<8x128xbf16>
    %c0_2 = arith.constant 0 : index
    %c0_3 = arith.constant 0 : index
    %c0_4 = arith.constant 0 : index
    %3 = vector.load %arg2[%c0_2, %c0_3, %c0_4] : memref<1x16x128xf32, #tpu.memory_space<vmem>>, vector<1x16x128xf32>
    %4 = vector.shape_cast %3 : vector<1x16x128xf32> to vector<16x128xf32>
    %5 = arith.truncf %4 : vector<16x128xf32> to vector<16x128xbf16>
    %c0_5 = arith.constant 0 : index
    %c0_6 = arith.constant 0 : index
    %6 = vector.load %arg3[%c0_5, %c0_6] : memref<128x128xbf16, #tpu.memory_space<vmem>>, vector<128x128xbf16>
    %c0_7 = arith.constant 0 : index
    %c0_8 = arith.constant 0 : index
    %7 = vector.load %arg5[%c0_7, %c0_8] : memref<128x128xbf16, #tpu.memory_space<vmem>>, vector<128x128xbf16>
    %c0_9 = arith.constant 0 : index
    %c0_10 = arith.constant 0 : index
    %8 = vector.load %arg7[%c0_9, %c0_10] : memref<128x128xbf16, #tpu.memory_space<vmem>>, vector<128x128xbf16>
    %c0_11 = arith.constant 0 : index
    %c0_12 = arith.constant 0 : index
    %9 = vector.load %arg9[%c0_11, %c0_12] : memref<128x128xbf16, #tpu.memory_space<vmem>>, vector<128x128xbf16>
    %c0_13 = arith.constant 0 : index
    %c0_14 = arith.constant 0 : index
    %10 = vector.load %arg4[%c0_13, %c0_14] : memref<1x128xf32, #tpu.memory_space<vmem>>, vector<1x128xf32>
    %c0_15 = arith.constant 0 : index
    %c0_16 = arith.constant 0 : index
    %11 = vector.load %arg6[%c0_15, %c0_16] : memref<1x128xf32, #tpu.memory_space<vmem>>, vector<1x128xf32>
    %c0_17 = arith.constant 0 : index
    %c0_18 = arith.constant 0 : index
    %12 = vector.load %arg8[%c0_17, %c0_18] : memref<1x128xf32, #tpu.memory_space<vmem>>, vector<1x128xf32>
    %c0_19 = arith.constant 0 : index
    %c0_20 = arith.constant 0 : index
    %13 = vector.load %arg10[%c0_19, %c0_20] : memref<1x128xf32, #tpu.memory_space<vmem>>, vector<1x128xf32>
    %cst = arith.constant dense<0.000000e+00> : vector<8x128xf32>
    %14 = tpu.matmul %2, %6, %cst {dimension_numbers = #tpu.dot_dimension_numbers<[1], [0], [0], [1], [0, 0, 1, 1], [], []>} : vector<8x128xbf16>, vector<128x128xbf16>, vector<8x128xf32> -> vector<8x128xf32>
    %15 = vector.broadcast %10 : vector<1x128xf32> to vector<8x128xf32>
    %16 = arith.addf %14, %15 : vector<8x128xf32>
    %cst_21 = arith.constant dense<0.000000e+00> : vector<16x128xf32>
    %17 = tpu.matmul %5, %7, %cst_21 {dimension_numbers = #tpu.dot_dimension_numbers<[1], [0], [0], [1], [0, 0, 1, 1], [], []>} : vector<16x128xbf16>, vector<128x128xbf16>, vector<16x128xf32> -> vector<16x128xf32>
    %18 = vector.broadcast %11 : vector<1x128xf32> to vector<16x128xf32>
    %19 = arith.addf %17, %18 : vector<16x128xf32>
    %cst_22 = arith.constant dense<0.000000e+00> : vector<16x128xf32>
    %20 = tpu.matmul %5, %8, %cst_22 {dimension_numbers = #tpu.dot_dimension_numbers<[1], [0], [0], [1], [0, 0, 1, 1], [], []>} : vector<16x128xbf16>, vector<128x128xbf16>, vector<16x128xf32> -> vector<16x128xf32>
    %21 = vector.broadcast %12 : vector<1x128xf32> to vector<16x128xf32>
    %22 = arith.addf %20, %21 : vector<16x128xf32>
    %cst_23 = arith.constant 2.500000e-01 : f32
    %23 = vector.broadcast %cst_23 : f32 to vector<8x128xf32>
    %24 = arith.mulf %16, %23 : vector<8x128xf32>
    %25 = arith.truncf %24 : vector<8x128xf32> to vector<8x128xbf16>
    %26 = arith.truncf %19 : vector<16x128xf32> to vector<16x128xbf16>
    %27 = arith.truncf %22 : vector<16x128xf32> to vector<16x128xbf16>
    %28 = vector.extract_strided_slice %25 {offsets = [0, 0], sizes = [8, 16], strides = [1, 1]} : vector<8x128xbf16> to vector<8x16xbf16>
    %29 = vector.extract_strided_slice %26 {offsets = [0, 0], sizes = [16, 16], strides = [1, 1]} : vector<16x128xbf16> to vector<16x16xbf16>
    %30 = vector.extract_strided_slice %27 {offsets = [0, 0], sizes = [16, 16], strides = [1, 1]} : vector<16x128xbf16> to vector<16x16xbf16>
    "tpu.trace_start"() <{level = 10 : i32, message = "qd,kd->qk"}> : () -> ()
    %cst_24 = arith.constant dense<0.000000e+00> : vector<8x16xf32>
    %31 = tpu.matmul %28, %29, %cst_24 {dimension_numbers = #tpu.dot_dimension_numbers<[1], [1], [0], [0], [0, 0, 1, 0], [], []>} : vector<8x16xbf16>, vector<16x16xbf16>, vector<8x16xf32> -> vector<8x16xf32>
    "tpu.trace_stop"() : () -> ()
    %cst_25 = arith.constant dense<0xFF800000> : vector<8xf32>
    %32 = vector.multi_reduction <maximumf>, %31, %cst_25 [1] : vector<8x16xf32> to vector<8xf32>
    %33 = vector.shape_cast %32 : vector<8xf32> to vector<8x1xf32>
    %34 = vector.broadcast %33 : vector<8x1xf32> to vector<8x16xf32>
    %35 = arith.subf %31, %34 : vector<8x16xf32>
    %36 = math.exp %35 : vector<8x16xf32>
    %cst_26 = arith.constant dense<0.000000e+00> : vector<8xf32>
    %37 = vector.multi_reduction <add>, %36, %cst_26 [1] : vector<8x16xf32> to vector<8xf32>
    %38 = vector.shape_cast %37 : vector<8xf32> to vector<8x1xf32>
    %39 = tpu.reciprocal %38 : vector<8x1xf32> -> vector<8x1xf32>
    %40 = vector.broadcast %39 : vector<8x1xf32> to vector<8x16xf32>
    %41 = arith.mulf %36, %40 : vector<8x16xf32>
    %42 = arith.truncf %41 : vector<8x16xf32> to vector<8x16xbf16>
    %cst_27 = arith.constant dense<0.000000e+00> : vector<8x16xf32>
    %43 = tpu.matmul %42, %30, %cst_27 {dimension_numbers = #tpu.dot_dimension_numbers<[1], [0], [0], [1], [0, 0, 1, 1], [], []>} : vector<8x16xbf16>, vector<16x16xbf16>, vector<8x16xf32> -> vector<8x16xf32>
    %44 = vector.extract_strided_slice %25 {offsets = [0, 16], sizes = [8, 16], strides = [1, 1]} : vector<8x128xbf16> to vector<8x16xbf16>
    %45 = vector.extract_strided_slice %26 {offsets = [0, 16], sizes = [16, 16], strides = [1, 1]} : vector<16x128xbf16> to vector<16x16xbf16>
    %46 = vector.extract_strided_slice %27 {offsets = [0, 16], sizes = [16, 16], strides = [1, 1]} : vector<16x128xbf16> to vector<16x16xbf16>
    "tpu.trace_start"() <{level = 10 : i32, message = "qd,kd->qk"}> : () -> ()
    %cst_28 = arith.constant dense<0.000000e+00> : vector<8x16xf32>
    %47 = tpu.matmul %44, %45, %cst_28 {dimension_numbers = #tpu.dot_dimension_numbers<[1], [1], [0], [0], [0, 0, 1, 0], [], []>} : vector<8x16xbf16>, vector<16x16xbf16>, vector<8x16xf32> -> vector<8x16xf32>
    "tpu.trace_stop"() : () -> ()
    %cst_29 = arith.constant dense<0xFF800000> : vector<8xf32>
    %48 = vector.multi_reduction <maximumf>, %47, %cst_29 [1] : vector<8x16xf32> to vector<8xf32>
    %49 = vector.shape_cast %48 : vector<8xf32> to vector<8x1xf32>
    %50 = vector.broadcast %49 : vector<8x1xf32> to vector<8x16xf32>
    %51 = arith.subf %47, %50 : vector<8x16xf32>
    %52 = math.exp %51 : vector<8x16xf32>
    %cst_30 = arith.constant dense<0.000000e+00> : vector<8xf32>
    %53 = vector.multi_reduction <add>, %52, %cst_30 [1] : vector<8x16xf32> to vector<8xf32>
    %54 = vector.shape_cast %53 : vector<8xf32> to vector<8x1xf32>
    %55 = tpu.reciprocal %54 : vector<8x1xf32> -> vector<8x1xf32>
    %56 = vector.broadcast %55 : vector<8x1xf32> to vector<8x16xf32>
    %57 = arith.mulf %52, %56 : vector<8x16xf32>
    %58 = arith.truncf %57 : vector<8x16xf32> to vector<8x16xbf16>
    %cst_31 = arith.constant dense<0.000000e+00> : vector<8x16xf32>
    %59 = tpu.matmul %58, %46, %cst_31 {dimension_numbers = #tpu.dot_dimension_numbers<[1], [0], [0], [1], [0, 0, 1, 1], [], []>} : vector<8x16xbf16>, vector<16x16xbf16>, vector<8x16xf32> -> vector<8x16xf32>
    %60 = vector.extract_strided_slice %25 {offsets = [0, 32], sizes = [8, 16], strides = [1, 1]} : vector<8x128xbf16> to vector<8x16xbf16>
    %61 = vector.extract_strided_slice %26 {offsets = [0, 32], sizes = [16, 16], strides = [1, 1]} : vector<16x128xbf16> to vector<16x16xbf16>
    %62 = vector.extract_strided_slice %27 {offsets = [0, 32], sizes = [16, 16], strides = [1, 1]} : vector<16x128xbf16> to vector<16x16xbf16>
    "tpu.trace_start"() <{level = 10 : i32, message = "qd,kd->qk"}> : () -> ()
    %cst_32 = arith.constant dense<0.000000e+00> : vector<8x16xf32>
    %63 = tpu.matmul %60, %61, %cst_32 {dimension_numbers = #tpu.dot_dimension_numbers<[1], [1], [0], [0], [0, 0, 1, 0], [], []>} : vector<8x16xbf16>, vector<16x16xbf16>, vector<8x16xf32> -> vector<8x16xf32>
    "tpu.trace_stop"() : () -> ()
    %cst_33 = arith.constant dense<0xFF800000> : vector<8xf32>
    %64 = vector.multi_reduction <maximumf>, %63, %cst_33 [1] : vector<8x16xf32> to vector<8xf32>
    %65 = vector.shape_cast %64 : vector<8xf32> to vector<8x1xf32>
    %66 = vector.broadcast %65 : vector<8x1xf32> to vector<8x16xf32>
    %67 = arith.subf %63, %66 : vector<8x16xf32>
    %68 = math.exp %67 : vector<8x16xf32>
    %cst_34 = arith.constant dense<0.000000e+00> : vector<8xf32>
    %69 = vector.multi_reduction <add>, %68, %cst_34 [1] : vector<8x16xf32> to vector<8xf32>
    %70 = vector.shape_cast %69 : vector<8xf32> to vector<8x1xf32>
    %71 = tpu.reciprocal %70 : vector<8x1xf32> -> vector<8x1xf32>
    %72 = vector.broadcast %71 : vector<8x1xf32> to vector<8x16xf32>
    %73 = arith.mulf %68, %72 : vector<8x16xf32>
    %74 = arith.truncf %73 : vector<8x16xf32> to vector<8x16xbf16>
    %cst_35 = arith.constant dense<0.000000e+00> : vector<8x16xf32>
    %75 = tpu.matmul %74, %62, %cst_35 {dimension_numbers = #tpu.dot_dimension_numbers<[1], [0], [0], [1], [0, 0, 1, 1], [], []>} : vector<8x16xbf16>, vector<16x16xbf16>, vector<8x16xf32> -> vector<8x16xf32>
    %76 = vector.extract_strided_slice %25 {offsets = [0, 48], sizes = [8, 16], strides = [1, 1]} : vector<8x128xbf16> to vector<8x16xbf16>
    %77 = vector.extract_strided_slice %26 {offsets = [0, 48], sizes = [16, 16], strides = [1, 1]} : vector<16x128xbf16> to vector<16x16xbf16>
    %78 = vector.extract_strided_slice %27 {offsets = [0, 48], sizes = [16, 16], strides = [1, 1]} : vector<16x128xbf16> to vector<16x16xbf16>
    "tpu.trace_start"() <{level = 10 : i32, message = "qd,kd->qk"}> : () -> ()
    %cst_36 = arith.constant dense<0.000000e+00> : vector<8x16xf32>
    %79 = tpu.matmul %76, %77, %cst_36 {dimension_numbers = #tpu.dot_dimension_numbers<[1], [1], [0], [0], [0, 0, 1, 0], [], []>} : vector<8x16xbf16>, vector<16x16xbf16>, vector<8x16xf32> -> vector<8x16xf32>
    "tpu.trace_stop"() : () -> ()
    %cst_37 = arith.constant dense<0xFF800000> : vector<8xf32>
    %80 = vector.multi_reduction <maximumf>, %79, %cst_37 [1] : vector<8x16xf32> to vector<8xf32>
    %81 = vector.shape_cast %80 : vector<8xf32> to vector<8x1xf32>
    %82 = vector.broadcast %81 : vector<8x1xf32> to vector<8x16xf32>
    %83 = arith.subf %79, %82 : vector<8x16xf32>
    %84 = math.exp %83 : vector<8x16xf32>
    %cst_38 = arith.constant dense<0.000000e+00> : vector<8xf32>
    %85 = vector.multi_reduction <add>, %84, %cst_38 [1] : vector<8x16xf32> to vector<8xf32>
    %86 = vector.shape_cast %85 : vector<8xf32> to vector<8x1xf32>
    %87 = tpu.reciprocal %86 : vector<8x1xf32> -> vector<8x1xf32>
    %88 = vector.broadcast %87 : vector<8x1xf32> to vector<8x16xf32>
    %89 = arith.mulf %84, %88 : vector<8x16xf32>
    %90 = arith.truncf %89 : vector<8x16xf32> to vector<8x16xbf16>
    %cst_39 = arith.constant dense<0.000000e+00> : vector<8x16xf32>
    %91 = tpu.matmul %90, %78, %cst_39 {dimension_numbers = #tpu.dot_dimension_numbers<[1], [0], [0], [1], [0, 0, 1, 1], [], []>} : vector<8x16xbf16>, vector<16x16xbf16>, vector<8x16xf32> -> vector<8x16xf32>
    %92 = vector.extract_strided_slice %25 {offsets = [0, 64], sizes = [8, 16], strides = [1, 1]} : vector<8x128xbf16> to vector<8x16xbf16>
    %93 = vector.extract_strided_slice %26 {offsets = [0, 64], sizes = [16, 16], strides = [1, 1]} : vector<16x128xbf16> to vector<16x16xbf16>
    %94 = vector.extract_strided_slice %27 {offsets = [0, 64], sizes = [16, 16], strides = [1, 1]} : vector<16x128xbf16> to vector<16x16xbf16>
    "tpu.trace_start"() <{level = 10 : i32, message = "qd,kd->qk"}> : () -> ()
    %cst_40 = arith.constant dense<0.000000e+00> : vector<8x16xf32>
    %95 = tpu.matmul %92, %93, %cst_40 {dimension_numbers = #tpu.dot_dimension_numbers<[1], [1], [0], [0], [0, 0, 1, 0], [], []>} : vector<8x16xbf16>, vector<16x16xbf16>, vector<8x16xf32> -> vector<8x16xf32>
    "tpu.trace_stop"() : () -> ()
    %cst_41 = arith.constant dense<0xFF800000> : vector<8xf32>
    %96 = vector.multi_reduction <maximumf>, %95, %cst_41 [1] : vector<8x16xf32> to vector<8xf32>
    %97 = vector.shape_cast %96 : vector<8xf32> to vector<8x1xf32>
    %98 = vector.broadcast %97 : vector<8x1xf32> to vector<8x16xf32>
    %99 = arith.subf %95, %98 : vector<8x16xf32>
    %100 = math.exp %99 : vector<8x16xf32>
    %cst_42 = arith.constant dense<0.000000e+00> : vector<8xf32>
    %101 = vector.multi_reduction <add>, %100, %cst_42 [1] : vector<8x16xf32> to vector<8xf32>
    %102 = vector.shape_cast %101 : vector<8xf32> to vector<8x1xf32>
    %103 = tpu.reciprocal %102 : vector<8x1xf32> -> vector<8x1xf32>
    %104 = vector.broadcast %103 : vector<8x1xf32> to vector<8x16xf32>
    %105 = arith.mulf %100, %104 : vector<8x16xf32>
    %106 = arith.truncf %105 : vector<8x16xf32> to vector<8x16xbf16>
    %cst_43 = arith.constant dense<0.000000e+00> : vector<8x16xf32>
    %107 = tpu.matmul %106, %94, %cst_43 {dimension_numbers = #tpu.dot_dimension_numbers<[1], [0], [0], [1], [0, 0, 1, 1], [], []>} : vector<8x16xbf16>, vector<16x16xbf16>, vector<8x16xf32> -> vector<8x16xf32>
    %108 = vector.extract_strided_slice %25 {offsets = [0, 80], sizes = [8, 16], strides = [1, 1]} : vector<8x128xbf16> to vector<8x16xbf16>
    %109 = vector.extract_strided_slice %26 {offsets = [0, 80], sizes = [16, 16], strides = [1, 1]} : vector<16x128xbf16> to vector<16x16xbf16>
    %110 = vector.extract_strided_slice %27 {offsets = [0, 80], sizes = [16, 16], strides = [1, 1]} : vector<16x128xbf16> to vector<16x16xbf16>
    "tpu.trace_start"() <{level = 10 : i32, message = "qd,kd->qk"}> : () -> ()
    %cst_44 = arith.constant dense<0.000000e+00> : vector<8x16xf32>
    %111 = tpu.matmul %108, %109, %cst_44 {dimension_numbers = #tpu.dot_dimension_numbers<[1], [1], [0], [0], [0, 0, 1, 0], [], []>} : vector<8x16xbf16>, vector<16x16xbf16>, vector<8x16xf32> -> vector<8x16xf32>
    "tpu.trace_stop"() : () -> ()
    %cst_45 = arith.constant dense<0xFF800000> : vector<8xf32>
    %112 = vector.multi_reduction <maximumf>, %111, %cst_45 [1] : vector<8x16xf32> to vector<8xf32>
    %113 = vector.shape_cast %112 : vector<8xf32> to vector<8x1xf32>
    %114 = vector.broadcast %113 : vector<8x1xf32> to vector<8x16xf32>
    %115 = arith.subf %111, %114 : vector<8x16xf32>
    %116 = math.exp %115 : vector<8x16xf32>
    %cst_46 = arith.constant dense<0.000000e+00> : vector<8xf32>
    %117 = vector.multi_reduction <add>, %116, %cst_46 [1] : vector<8x16xf32> to vector<8xf32>
    %118 = vector.shape_cast %117 : vector<8xf32> to vector<8x1xf32>
    %119 = tpu.reciprocal %118 : vector<8x1xf32> -> vector<8x1xf32>
    %120 = vector.broadcast %119 : vector<8x1xf32> to vector<8x16xf32>
    %121 = arith.mulf %116, %120 : vector<8x16xf32>
    %122 = arith.truncf %121 : vector<8x16xf32> to vector<8x16xbf16>
    %cst_47 = arith.constant dense<0.000000e+00> : vector<8x16xf32>
    %123 = tpu.matmul %122, %110, %cst_47 {dimension_numbers = #tpu.dot_dimension_numbers<[1], [0], [0], [1], [0, 0, 1, 1], [], []>} : vector<8x16xbf16>, vector<16x16xbf16>, vector<8x16xf32> -> vector<8x16xf32>
    %124 = vector.extract_strided_slice %25 {offsets = [0, 96], sizes = [8, 16], strides = [1, 1]} : vector<8x128xbf16> to vector<8x16xbf16>
    %125 = vector.extract_strided_slice %26 {offsets = [0, 96], sizes = [16, 16], strides = [1, 1]} : vector<16x128xbf16> to vector<16x16xbf16>
    %126 = vector.extract_strided_slice %27 {offsets = [0, 96], sizes = [16, 16], strides = [1, 1]} : vector<16x128xbf16> to vector<16x16xbf16>
    "tpu.trace_start"() <{level = 10 : i32, message = "qd,kd->qk"}> : () -> ()
    %cst_48 = arith.constant dense<0.000000e+00> : vector<8x16xf32>
    %127 = tpu.matmul %124, %125, %cst_48 {dimension_numbers = #tpu.dot_dimension_numbers<[1], [1], [0], [0], [0, 0, 1, 0], [], []>} : vector<8x16xbf16>, vector<16x16xbf16>, vector<8x16xf32> -> vector<8x16xf32>
    "tpu.trace_stop"() : () -> ()
    %cst_49 = arith.constant dense<0xFF800000> : vector<8xf32>
    %128 = vector.multi_reduction <maximumf>, %127, %cst_49 [1] : vector<8x16xf32> to vector<8xf32>
    %129 = vector.shape_cast %128 : vector<8xf32> to vector<8x1xf32>
    %130 = vector.broadcast %129 : vector<8x1xf32> to vector<8x16xf32>
    %131 = arith.subf %127, %130 : vector<8x16xf32>
    %132 = math.exp %131 : vector<8x16xf32>
    %cst_50 = arith.constant dense<0.000000e+00> : vector<8xf32>
    %133 = vector.multi_reduction <add>, %132, %cst_50 [1] : vector<8x16xf32> to vector<8xf32>
    %134 = vector.shape_cast %133 : vector<8xf32> to vector<8x1xf32>
    %135 = tpu.reciprocal %134 : vector<8x1xf32> -> vector<8x1xf32>
    %136 = vector.broadcast %135 : vector<8x1xf32> to vector<8x16xf32>
    %137 = arith.mulf %132, %136 : vector<8x16xf32>
    %138 = arith.truncf %137 : vector<8x16xf32> to vector<8x16xbf16>
    %cst_51 = arith.constant dense<0.000000e+00> : vector<8x16xf32>
    %139 = tpu.matmul %138, %126, %cst_51 {dimension_numbers = #tpu.dot_dimension_numbers<[1], [0], [0], [1], [0, 0, 1, 1], [], []>} : vector<8x16xbf16>, vector<16x16xbf16>, vector<8x16xf32> -> vector<8x16xf32>
    %140 = vector.extract_strided_slice %25 {offsets = [0, 112], sizes = [8, 16], strides = [1, 1]} : vector<8x128xbf16> to vector<8x16xbf16>
    %141 = vector.extract_strided_slice %26 {offsets = [0, 112], sizes = [16, 16], strides = [1, 1]} : vector<16x128xbf16> to vector<16x16xbf16>
    %142 = vector.extract_strided_slice %27 {offsets = [0, 112], sizes = [16, 16], strides = [1, 1]} : vector<16x128xbf16> to vector<16x16xbf16>
    "tpu.trace_start"() <{level = 10 : i32, message = "qd,kd->qk"}> : () -> ()
    %cst_52 = arith.constant dense<0.000000e+00> : vector<8x16xf32>
    %143 = tpu.matmul %140, %141, %cst_52 {dimension_numbers = #tpu.dot_dimension_numbers<[1], [1], [0], [0], [0, 0, 1, 0], [], []>} : vector<8x16xbf16>, vector<16x16xbf16>, vector<8x16xf32> -> vector<8x16xf32>
    "tpu.trace_stop"() : () -> ()
    %cst_53 = arith.constant dense<0xFF800000> : vector<8xf32>
    %144 = vector.multi_reduction <maximumf>, %143, %cst_53 [1] : vector<8x16xf32> to vector<8xf32>
    %145 = vector.shape_cast %144 : vector<8xf32> to vector<8x1xf32>
    %146 = vector.broadcast %145 : vector<8x1xf32> to vector<8x16xf32>
    %147 = arith.subf %143, %146 : vector<8x16xf32>
    %148 = math.exp %147 : vector<8x16xf32>
    %cst_54 = arith.constant dense<0.000000e+00> : vector<8xf32>
    %149 = vector.multi_reduction <add>, %148, %cst_54 [1] : vector<8x16xf32> to vector<8xf32>
    %150 = vector.shape_cast %149 : vector<8xf32> to vector<8x1xf32>
    %151 = tpu.reciprocal %150 : vector<8x1xf32> -> vector<8x1xf32>
    %152 = vector.broadcast %151 : vector<8x1xf32> to vector<8x16xf32>
    %153 = arith.mulf %148, %152 : vector<8x16xf32>
    %154 = arith.truncf %153 : vector<8x16xf32> to vector<8x16xbf16>
    %cst_55 = arith.constant dense<0.000000e+00> : vector<8x16xf32>
    %155 = tpu.matmul %154, %142, %cst_55 {dimension_numbers = #tpu.dot_dimension_numbers<[1], [0], [0], [1], [0, 0, 1, 1], [], []>} : vector<8x16xbf16>, vector<16x16xbf16>, vector<8x16xf32> -> vector<8x16xf32>
    %156 = tpu.concatenate %43, %59, %75, %91, %107, %123, %139, %155 in 1 : vector<8x16xf32>, vector<8x16xf32>, vector<8x16xf32>, vector<8x16xf32>, vector<8x16xf32>, vector<8x16xf32>, vector<8x16xf32>, vector<8x16xf32> -> vector<8x128xf32>
    %c0_56 = arith.constant 0 : index
    %c0_57 = arith.constant 0 : index
    %157 = vector.load %arg12[%c0_56, %c0_57] : memref<8x128xf32, #tpu.memory_space<vmem>>, vector<8x128xf32>
    tpu.vector_store %arg12[%c0_56, %c0_57], %156 {strides = array<i32>} : memref<8x128xf32, #tpu.memory_space<vmem>>, vector<8x128xf32>,
    %c0_58 = arith.constant 0 : index
    %c0_59 = arith.constant 0 : index
    %158 = vector.load %arg12[%c0_58, %c0_59] : memref<8x128xf32, #tpu.memory_space<vmem>>, vector<8x128xf32>
    %159 = arith.truncf %158 : vector<8x128xf32> to vector<8x128xbf16>
    %cst_60 = arith.constant dense<0.000000e+00> : vector<8x128xf32>
    %160 = tpu.matmul %159, %9, %cst_60 {dimension_numbers = #tpu.dot_dimension_numbers<[1], [0], [0], [1], [0, 0, 1, 1], [], []>} : vector<8x128xbf16>, vector<128x128xbf16>, vector<8x128xf32> -> vector<8x128xf32>
    %161 = vector.broadcast %13 : vector<1x128xf32> to vector<8x128xf32>
    %162 = arith.addf %160, %161 : vector<8x128xf32>
    %163 = vector.shape_cast %162 : vector<8x128xf32> to vector<1x8x128xf32>
    %c0_61 = arith.constant 0 : index
    %c0_62 = arith.constant 0 : index
    %c0_63 = arith.constant 0 : index
    %164 = vector.load %arg11[%c0_61, %c0_62, %c0_63] : memref<1x8x128xf32, #tpu.memory_space<vmem>>, vector<1x8x128xf32>
    tpu.vector_store %arg11[%c0_61, %c0_62, %c0_63], %163 {strides = array<i32>} : memref<1x8x128xf32, #tpu.memory_space<vmem>>, vector<1x8x128xf32>,
    return
  }
  func.func @transform_0(%arg0: i32) -> (i32, i32, i32) {
    %c0_i32 = arith.constant 0 : i32
    %c0_i32_0 = arith.constant 0 : i32
    %c0_i32_1 = arith.constant 0 : i32
    return %arg0, %c0_i32, %c0_i32_0 : i32, i32, i32
  }
  func.func @transform_1(%arg0: i32) -> (i32, i32, i32) {
    %c0_i32 = arith.constant 0 : i32
    %c0_i32_0 = arith.constant 0 : i32
    %c0_i32_1 = arith.constant 0 : i32
    return %arg0, %c0_i32, %c0_i32_0 : i32, i32, i32
  }
  func.func @transform_2(%arg0: i32) -> (i32, i32) {
    %c0_i32 = arith.constant 0 : i32
    %c0_i32_0 = arith.constant 0 : i32
    %c0_i32_1 = arith.constant 0 : i32
    return %c0_i32, %c0_i32_0 : i32, i32
  }
  func.func @transform_3(%arg0: i32) -> (i32, i32) {
    %c0_i32 = arith.constant 0 : i32
    %c0_i32_0 = arith.constant 0 : i32
    %c0_i32_1 = arith.constant 0 : i32
    return %c0_i32, %c0_i32_0 : i32, i32
  }
  func.func @transform_4(%arg0: i32) -> (i32, i32) {
    %c0_i32 = arith.constant 0 : i32
    %c0_i32_0 = arith.constant 0 : i32
    %c0_i32_1 = arith.constant 0 : i32
    return %c0_i32, %c0_i32_0 : i32, i32
  }
  func.func @transform_5(%arg0: i32) -> (i32, i32) {
    %c0_i32 = arith.constant 0 : i32
    %c0_i32_0 = arith.constant 0 : i32
    %c0_i32_1 = arith.constant 0 : i32
    return %c0_i32, %c0_i32_0 : i32, i32
  }
  func.func @transform_6(%arg0: i32) -> (i32, i32) {
    %c0_i32 = arith.constant 0 : i32
    %c0_i32_0 = arith.constant 0 : i32
    %c0_i32_1 = arith.constant 0 : i32
    return %c0_i32, %c0_i32_0 : i32, i32
  }
  func.func @transform_7(%arg0: i32) -> (i32, i32) {
    %c0_i32 = arith.constant 0 : i32
    %c0_i32_0 = arith.constant 0 : i32
    %c0_i32_1 = arith.constant 0 : i32
    return %c0_i32, %c0_i32_0 : i32, i32
  }
  func.func @transform_8(%arg0: i32) -> (i32, i32) {
    %c0_i32 = arith.constant 0 : i32
    %c0_i32_0 = arith.constant 0 : i32
    %c0_i32_1 = arith.constant 0 : i32
    return %c0_i32, %c0_i32_0 : i32, i32
  }
  func.func @transform_9(%arg0: i32) -> (i32, i32) {
    %c0_i32 = arith.constant 0 : i32
    %c0_i32_0 = arith.constant 0 : i32
    %c0_i32_1 = arith.constant 0 : i32
    return %c0_i32, %c0_i32_0 : i32, i32
  }
  func.func @transform_10(%arg0: i32) -> (i32, i32, i32) {
    %c0_i32 = arith.constant 0 : i32
    %c0_i32_0 = arith.constant 0 : i32
    %c0_i32_1 = arith.constant 0 : i32
    return %arg0, %c0_i32, %c0_i32_0 : i32, i32, i32
  }
}

module attributes {stable_mosaic.version = 11 : i64} {
  func.func @combine_ln_kernel(%arg0: i32, %arg1: memref<24x128xf32, #tpu.memory_space<vmem>>, %arg2: memref<24x128xf32, #tpu.memory_space<vmem>>, %arg3: memref<128x128xbf16, #tpu.memory_space<vmem>>, %arg4: memref<128x128xbf16, #tpu.memory_space<vmem>>, %arg5: memref<1x128xf32, #tpu.memory_space<vmem>>, %arg6: memref<1x128xf32, #tpu.memory_space<vmem>>, %arg7: memref<1x128xf32, #tpu.memory_space<vmem>>, %arg8: memref<24x128xf32, #tpu.memory_space<vmem>>) attributes {dimension_semantics = [#tpu.dimension_semantics<parallel>], iteration_bounds = array<i64: 1>, scalar_prefetch = 0 : i64, scratch_operands = 0 : i64, tpu.core_type = #tpu.core_type<tc>, window_params = [{transform_indices = @transform_0, window_bounds = array<i64: 24, 128>}, {transform_indices = @transform_1, window_bounds = array<i64: 24, 128>}, {pipeline_mode = #tpu.pipeline_mode<synchronous>, transform_indices = @transform_2, window_bounds = array<i64: 128, 128>}, {pipeline_mode = #tpu.pipeline_mode<synchronous>, transform_indices = @transform_3, window_bounds = array<i64: 128, 128>}, {pipeline_mode = #tpu.pipeline_mode<synchronous>, transform_indices = @transform_4, window_bounds = array<i64: 1, 128>}, {pipeline_mode = #tpu.pipeline_mode<synchronous>, transform_indices = @transform_5, window_bounds = array<i64: 1, 128>}, {pipeline_mode = #tpu.pipeline_mode<synchronous>, transform_indices = @transform_6, window_bounds = array<i64: 1, 128>}, {transform_indices = @transform_7, window_bounds = array<i64: 24, 128>}]} {
    %c0 = arith.constant 0 : index
    %c0_0 = arith.constant 0 : index
    %0 = vector.load %arg1[%c0, %c0_0] : memref<24x128xf32, #tpu.memory_space<vmem>>, vector<24x128xf32>
    %1 = arith.truncf %0 : vector<24x128xf32> to vector<24x128xbf16>
    %c0_1 = arith.constant 0 : index
    %c0_2 = arith.constant 0 : index
    %2 = vector.load %arg2[%c0_1, %c0_2] : memref<24x128xf32, #tpu.memory_space<vmem>>, vector<24x128xf32>
    %3 = arith.truncf %2 : vector<24x128xf32> to vector<24x128xbf16>
    %c0_3 = arith.constant 0 : index
    %c0_4 = arith.constant 0 : index
    %4 = vector.load %arg5[%c0_3, %c0_4] : memref<1x128xf32, #tpu.memory_space<vmem>>, vector<1x128xf32>
    %c0_5 = arith.constant 0 : index
    %c0_6 = arith.constant 0 : index
    %5 = vector.load %arg6[%c0_5, %c0_6] : memref<1x128xf32, #tpu.memory_space<vmem>>, vector<1x128xf32>
    %c0_7 = arith.constant 0 : index
    %c0_8 = arith.constant 0 : index
    %6 = vector.load %arg7[%c0_7, %c0_8] : memref<1x128xf32, #tpu.memory_space<vmem>>, vector<1x128xf32>
    %c0_9 = arith.constant 0 : index
    %c0_10 = arith.constant 0 : index
    %7 = vector.load %arg3[%c0_9, %c0_10] : memref<128x128xbf16, #tpu.memory_space<vmem>>, vector<128x128xbf16>
    %cst = arith.constant dense<0.000000e+00> : vector<24x128xf32>
    %8 = tpu.matmul %1, %7, %cst {dimension_numbers = #tpu.dot_dimension_numbers<[1], [0], [0], [1], [0, 0, 1, 1], [], []>} : vector<24x128xbf16>, vector<128x128xbf16>, vector<24x128xf32> -> vector<24x128xf32>
    %c0_11 = arith.constant 0 : index
    %c0_12 = arith.constant 0 : index
    %9 = vector.load %arg4[%c0_11, %c0_12] : memref<128x128xbf16, #tpu.memory_space<vmem>>, vector<128x128xbf16>
    %cst_13 = arith.constant dense<0.000000e+00> : vector<24x128xf32>
    %10 = tpu.matmul %3, %9, %cst_13 {dimension_numbers = #tpu.dot_dimension_numbers<[1], [0], [0], [1], [0, 0, 1, 1], [], []>} : vector<24x128xbf16>, vector<128x128xbf16>, vector<24x128xf32> -> vector<24x128xf32>
    %11 = arith.addf %8, %10 : vector<24x128xf32>
    %12 = vector.broadcast %4 : vector<1x128xf32> to vector<24x128xf32>
    %13 = arith.addf %11, %12 : vector<24x128xf32>
    %cst_14 = arith.constant dense<0.000000e+00> : vector<24xf32>
    %14 = vector.multi_reduction <add>, %13, %cst_14 [1] : vector<24x128xf32> to vector<24xf32>
    %15 = vector.shape_cast %14 : vector<24xf32> to vector<24x1xf32>
    %cst_15 = arith.constant 1.280000e+02 : f32
    %16 = vector.broadcast %cst_15 : f32 to vector<24x1xf32>
    %17 = arith.divf %15, %16 : vector<24x1xf32>
    %18 = vector.broadcast %17 : vector<24x1xf32> to vector<24x128xf32>
    %19 = arith.subf %13, %18 : vector<24x128xf32>
    %20 = arith.mulf %19, %19 : vector<24x128xf32>
    %cst_16 = arith.constant dense<0.000000e+00> : vector<24xf32>
    %21 = vector.multi_reduction <add>, %20, %cst_16 [1] : vector<24x128xf32> to vector<24xf32>
    %22 = vector.shape_cast %21 : vector<24xf32> to vector<24x1xf32>
    %cst_17 = arith.constant 1.280000e+02 : f32
    %23 = vector.broadcast %cst_17 : f32 to vector<24x1xf32>
    %24 = arith.divf %22, %23 : vector<24x1xf32>
    %25 = vector.broadcast %17 : vector<24x1xf32> to vector<24x128xf32>
    %26 = arith.subf %13, %25 : vector<24x128xf32>
    %cst_18 = arith.constant 9.99999974E-6 : f32
    %27 = vector.broadcast %cst_18 : f32 to vector<24x1xf32>
    %28 = arith.addf %24, %27 : vector<24x1xf32>
    %29 = math.rsqrt %28 : vector<24x1xf32>
    %30 = vector.broadcast %29 : vector<24x1xf32> to vector<24x128xf32>
    %31 = arith.mulf %26, %30 : vector<24x128xf32>
    %32 = vector.broadcast %5 : vector<1x128xf32> to vector<24x128xf32>
    %33 = arith.mulf %31, %32 : vector<24x128xf32>
    %34 = vector.broadcast %6 : vector<1x128xf32> to vector<24x128xf32>
    %35 = arith.addf %33, %34 : vector<24x128xf32>
    %c0_19 = arith.constant 0 : index
    %c0_20 = arith.constant 0 : index
    %36 = vector.load %arg8[%c0_19, %c0_20] : memref<24x128xf32, #tpu.memory_space<vmem>>, vector<24x128xf32>
    tpu.vector_store %arg8[%c0_19, %c0_20], %35 {strides = array<i32>} : memref<24x128xf32, #tpu.memory_space<vmem>>, vector<24x128xf32>,
    return
  }
  func.func @transform_0(%arg0: i32) -> (i32, i32) {
    %c0_i32 = arith.constant 0 : i32
    %c0_i32_0 = arith.constant 0 : i32
    return %arg0, %c0_i32 : i32, i32
  }
  func.func @transform_1(%arg0: i32) -> (i32, i32) {
    %c0_i32 = arith.constant 0 : i32
    %c0_i32_0 = arith.constant 0 : i32
    return %arg0, %c0_i32 : i32, i32
  }
  func.func @transform_2(%arg0: i32) -> (i32, i32) {
    %c0_i32 = arith.constant 0 : i32
    %c0_i32_0 = arith.constant 0 : i32
    %c0_i32_1 = arith.constant 0 : i32
    return %c0_i32, %c0_i32_0 : i32, i32
  }
  func.func @transform_3(%arg0: i32) -> (i32, i32) {
    %c0_i32 = arith.constant 0 : i32
    %c0_i32_0 = arith.constant 0 : i32
    %c0_i32_1 = arith.constant 0 : i32
    return %c0_i32, %c0_i32_0 : i32, i32
  }
  func.func @transform_4(%arg0: i32) -> (i32, i32) {
    %c0_i32 = arith.constant 0 : i32
    %c0_i32_0 = arith.constant 0 : i32
    %c0_i32_1 = arith.constant 0 : i32
    return %c0_i32, %c0_i32_0 : i32, i32
  }
  func.func @transform_5(%arg0: i32) -> (i32, i32) {
    %c0_i32 = arith.constant 0 : i32
    %c0_i32_0 = arith.constant 0 : i32
    %c0_i32_1 = arith.constant 0 : i32
    return %c0_i32, %c0_i32_0 : i32, i32
  }
  func.func @transform_6(%arg0: i32) -> (i32, i32) {
    %c0_i32 = arith.constant 0 : i32
    %c0_i32_0 = arith.constant 0 : i32
    %c0_i32_1 = arith.constant 0 : i32
    return %c0_i32, %c0_i32_0 : i32, i32
  }
  func.func @transform_7(%arg0: i32) -> (i32, i32) {
    %c0_i32 = arith.constant 0 : i32
    %c0_i32_0 = arith.constant 0 : i32
    return %arg0, %c0_i32 : i32, i32
  }
}

</mosaic_0001>

<llo_original>
// kernel: coattention_forward.5
$region0: #{coattention_forward.5}
  #allocation0 [shape = 'u32[]', space=smem, size = 0x4, offset = 0x4, fixed_abs, tag = 'smem constant byte address 0x4 - core index']
  #allocation1 [shape = 'u32[144,128]{1,0:T(1,128)}', space=vmem, size = 0x12000, scoped, tag = 'internal scratch']
  %s0 = inlined_call_operand.vmem [shape: f32[24,128], index: 0, kind: input, shape index: {}]
  %s1 = inlined_call_operand.vmem [shape: f32[24,128], index: 1, kind: input, shape index: {}]
  %s2 = inlined_call_operand.vmem [shape: bf16[128,128], index: 2, kind: input, shape index: {}]
  %s3 = inlined_call_operand.vmem [shape: bf16[128,128], index: 3, kind: input, shape index: {}]
  %s4 = inlined_call_operand.vmem [shape: f32[1,128], index: 4, kind: input, shape index: {}]
  %s5 = inlined_call_operand.vmem [shape: f32[1,128], index: 5, kind: input, shape index: {}]
  %s6 = inlined_call_operand.vmem [shape: f32[1,128], index: 6, kind: input, shape index: {}]
  %s7 = inlined_call_operand.vmem [shape: f32[24,128], index: 7, kind: output, shape index: {}]
  %s8 = sld [smem:[#allocation0]]
  $region38: #{coattention_forward.5} parent=0
    _
  %s10 = ssub.s32 1, %s8
  %s11 = scalar_select 0, %s10, %s8
  // Predicated region
  $region2: #{coattention_forward.5} parent=0 // pred_check
    _
  $region3: #{coattention_forward.5} parent=0 // pred_check_branch
    %13 = sbr.rel (0) target = $region5
  $region4: #{coattention_forward.5} parent=0 // pred_region
    _
  $region5: #{coattention_forward.5} parent=0 // pred_fallthru
    _
  // Predicated region
  $region6: #{coattention_forward.5} parent=0 // pred_check
    _
  $region7: #{coattention_forward.5} parent=0 // pred_check_branch
    %15 = sbr.rel (0) target = $region9
  $region8: #{coattention_forward.5} parent=0 // pred_region
    _
  $region9: #{coattention_forward.5} parent=0 // pred_fallthru
    _
  // Predicated region
  $region10: #{coattention_forward.5} parent=0 // pred_check
    _
  $region11: #{coattention_forward.5} parent=0 // pred_check_branch
    %17 = sbr.rel (0) target = $region13
  $region12: #{coattention_forward.5} parent=0 // pred_region
    _
  $region13: #{coattention_forward.5} parent=0 // pred_fallthru
    _
  // Predicated region
  $region14: #{coattention_forward.5} parent=0 // pred_check
    _
  $region15: #{coattention_forward.5} parent=0 // pred_check_branch
    %19 = sbr.rel (0) target = $region17
  $region16: #{coattention_forward.5} parent=0 // pred_region
    _
  $region17: #{coattention_forward.5} parent=0 // pred_fallthru
    _
  // Predicated region
  $region18: #{coattention_forward.5} parent=0 // pred_check
    _
  $region19: #{coattention_forward.5} parent=0 // pred_check_branch
    %21 = sbr.rel (0) target = $region21
  $region20: #{coattention_forward.5} parent=0 // pred_region
    _
  $region21: #{coattention_forward.5} parent=0 // pred_fallthru
    _
  // Predicated region
  $region22: #{coattention_forward.5} parent=0 // pred_check
    _
  $region23: #{coattention_forward.5} parent=0 // pred_check_branch
    %23 = sbr.rel (0) target = $region25
  $region24: #{coattention_forward.5} parent=0 // pred_region
    _
  $region25: #{coattention_forward.5} parent=0 // pred_fallthru
    _
  // Predicated region
  $region26: #{coattention_forward.5} parent=0 // pred_check
    _
  $region27: #{coattention_forward.5} parent=0 // pred_check_branch
    %25 = sbr.rel (0) target = $region29
  $region28: #{coattention_forward.5} parent=0 // pred_region
    _
  $region29: #{coattention_forward.5} parent=0 // pred_fallthru
    _
  %v27 = vld [vmem:[%s0] sm:$0xff]
  %v28 = vld [vmem:[%s0 + $0x8] sm:$0xff]
  %v29 = vld [vmem:[%s0 + $0x10] sm:$0xff]
  %v30 = vpack.c.bf16 %v28, %v27
  %v31 = vpack.c.bf16 %v29, %v29
  %v32 = vld [vmem:[%s1] sm:$0xff]
  %v33 = vld [vmem:[%s1 + $0x8] sm:$0xff]
  %v34 = vld [vmem:[%s1 + $0x10] sm:$0xff]
  %v35 = vpack.c.bf16 %v33, %v32
  %v36 = vpack.c.bf16 %v34, %v34
  %v37 = vld [vmem:[%s4] sm:$0x1]
  %v38 = vld [vmem:[%s5] sm:$0x1]
  %v39 = vld [vmem:[%s6] sm:$0x1]
  %v40 = vld [vmem:[%s2] sm:$0xf]
  %v41 = vld [vmem:[%s2 + $0x4] sm:$0xf]
  %v42 = vld [vmem:[%s2 + $0x8] sm:$0xf]
  %v43 = vld [vmem:[%s2 + $0xc] sm:$0xf]
  %v44 = vld [vmem:[%s2 + $0x10] sm:$0xf]
  %v45 = vld [vmem:[%s2 + $0x14] sm:$0xf]
  %v46 = vld [vmem:[%s2 + $0x18] sm:$0xf]
  %v47 = vld [vmem:[%s2 + $0x1c] sm:$0xf]
  %v48 = vld [vmem:[%s2 + $0x20] sm:$0xf]
  %v49 = vld [vmem:[%s2 + $0x24] sm:$0xf]
  %v50 = vld [vmem:[%s2 + $0x28] sm:$0xf]
  %v51 = vld [vmem:[%s2 + $0x2c] sm:$0xf]
  %v52 = vld [vmem:[%s2 + $0x30] sm:$0xf]
  %v53 = vld [vmem:[%s2 + $0x34] sm:$0xf]
  %v54 = vld [vmem:[%s2 + $0x38] sm:$0xf]
  %v55 = vld [vmem:[%s2 + $0x3c] sm:$0xf]
  %v56 = vld [vmem:[%s3] sm:$0xf]
  %v57 = vld [vmem:[%s3 + $0x4] sm:$0xf]
  %v58 = vld [vmem:[%s3 + $0x8] sm:$0xf]
  %v59 = vld [vmem:[%s3 + $0xc] sm:$0xf]
  %v60 = vld [vmem:[%s3 + $0x10] sm:$0xf]
  %v61 = vld [vmem:[%s3 + $0x14] sm:$0xf]
  %v62 = vld [vmem:[%s3 + $0x18] sm:$0xf]
  %v63 = vld [vmem:[%s3 + $0x1c] sm:$0xf]
  %v64 = vld [vmem:[%s3 + $0x20] sm:$0xf]
  %v65 = vld [vmem:[%s3 + $0x24] sm:$0xf]
  %v66 = vld [vmem:[%s3 + $0x28] sm:$0xf]
  %v67 = vld [vmem:[%s3 + $0x2c] sm:$0xf]
  %v68 = vld [vmem:[%s3 + $0x30] sm:$0xf]
  %v69 = vld [vmem:[%s3 + $0x34] sm:$0xf]
  %v70 = vld [vmem:[%s3 + $0x38] sm:$0xf]
  %v71 = vld [vmem:[%s3 + $0x3c] sm:$0xf]
  %v88 = vunpack.c.l.b16 %v56
  %v89 = vunpack.c.l.b16 %v57
  %v90 = vunpack.c.l.b16 %v58
  %v91 = vunpack.c.l.b16 %v59
  %v92 = vunpack.c.l.b16 %v60
  %v93 = vunpack.c.l.b16 %v61
  %v94 = vunpack.c.l.b16 %v62
  %v95 = vunpack.c.l.b16 %v63
  %v96 = vunpack.c.l.b16 %v64
  %v97 = vunpack.c.l.b16 %v65
  %v98 = vunpack.c.l.b16 %v66
  %v99 = vunpack.c.l.b16 %v67
  %v100 = vunpack.c.l.b16 %v68
  %v101 = vunpack.c.l.b16 %v69
  %v102 = vunpack.c.l.b16 %v70
  %v103 = vunpack.c.l.b16 %v71
  %v104 = vpack.c.b16 %v89, %v88
  %v105 = vpack.c.b16 %v91, %v90
  %v106 = vpack.c.b16 %v93, %v92
  %v107 = vpack.c.b16 %v95, %v94
  %v108 = vpack.c.b16 %v97, %v96
  %v109 = vpack.c.b16 %v99, %v98
  %v110 = vpack.c.b16 %v101, %v100
  %v111 = vpack.c.b16 %v103, %v102
  %120 = vmatprep.subr.bf16.mxu0 0
  %121 = vmatpush1.bf16.msra.mxu0 %v111
  %122 = vmatprep.subr.bf16.mxu0 0
  %123 = vmatpush1.bf16.msra.mxu0 %v110
  %124 = vmatprep.subr.bf16.mxu0 0
  %125 = vmatpush1.bf16.msra.mxu0 %v109
  %126 = vmatprep.subr.bf16.mxu0 0
  %127 = vmatpush1.bf16.msra.mxu0 %v108
  %128 = vmatprep.subr.bf16.mxu0 0
  %129 = vmatpush1.bf16.msra.mxu0 %v107
  %130 = vmatprep.subr.bf16.mxu0 0
  %131 = vmatpush1.bf16.msra.mxu0 %v106
  %132 = vmatprep.subr.bf16.mxu0 0
  %133 = vmatpush1.bf16.msra.mxu0 %v105
  %134 = vmatprep.subr.bf16.mxu0 0
  %135 = vmatpush1.bf16.msra.mxu0 %v104
  %136 = vmatprep.subr.bf16.mxu0 0
  %137 = vmatpush2.bf16.msra.mxu0 0
  %138 = vmatprep.subr.bf16.mxu0 0
  %139 = vmatpush2.bf16.msra.mxu0 0
  %140 = vmatprep.subr.bf16.mxu0 0
  %141 = vmatpush2.bf16.msra.mxu0 0
  %142 = vmatprep.subr.bf16.mxu0 0
  %143 = vmatpush2.bf16.msra.mxu0 0
  %144 = vmatprep.subr.bf16.mxu0 0
  %145 = vmatpush2.bf16.msra.mxu0 0
  %146 = vmatprep.subr.bf16.mxu0 0
  %147 = vmatpush2.bf16.msra.mxu0 0
  %148 = vmatprep.subr.bf16.mxu0 0
  %149 = vmatpush2.bf16.msra.mxu0 0
  %150 = vmatprep.subr.bf16.mxu0 0
  %151 = vmatpush2.bf16.msra.mxu0 0
  %152 = vmatprep.mubr.bf16.mxu0 0
  %153 = vmatmul.mubr.bf16.gmra.mxu0 %v35
  %v154 = vpop.f32.mrf.mxu0
  %v155 = vadd.f32 0.0, %v154
  %v156 = vpop.f32.mrf.mxu0
  %v157 = vpop.f32.mrf.mxu0
  %v158 = vadd.f32 0.0, %v157
  %v159 = vpop.f32.mrf.mxu0
  %160 = vmatprep.mubr.bf16.mxu0 0
  %161 = vmatmul.mubr.bf16.gmra.mxu0 %v36
  %v162 = vpop.f32.mrf.mxu0
  %v163 = vadd.f32 0.0, %v162
  %v164 = vpop.f32.mrf.mxu0
  %v165 = vpop.f32.mrf.mxu0
  %v166 = vpop.f32.mrf.mxu0
  %167 = vdwg.mxu0
  %v184 = vunpack.c.l.b16 %v40
  %v185 = vunpack.c.l.b16 %v41
  %v186 = vunpack.c.l.b16 %v42
  %v187 = vunpack.c.l.b16 %v43
  %v188 = vunpack.c.l.b16 %v44
  %v189 = vunpack.c.l.b16 %v45
  %v190 = vunpack.c.l.b16 %v46
  %v191 = vunpack.c.l.b16 %v47
  %v192 = vunpack.c.l.b16 %v48
  %v193 = vunpack.c.l.b16 %v49
  %v194 = vunpack.c.l.b16 %v50
  %v195 = vunpack.c.l.b16 %v51
  %v196 = vunpack.c.l.b16 %v52
  %v197 = vunpack.c.l.b16 %v53
  %v198 = vunpack.c.l.b16 %v54
  %v199 = vunpack.c.l.b16 %v55
  %v200 = vpack.c.b16 %v185, %v184
  %v201 = vpack.c.b16 %v187, %v186
  %v202 = vpack.c.b16 %v189, %v188
  %v203 = vpack.c.b16 %v191, %v190
  %v204 = vpack.c.b16 %v193, %v192
  %v205 = vpack.c.b16 %v195, %v194
  %v206 = vpack.c.b16 %v197, %v196
  %v207 = vpack.c.b16 %v199, %v198
  %216 = vmatprep.subr.bf16.mxu0 0
  %217 = vmatpush1.bf16.msra.mxu0 %v207
  %218 = vmatprep.subr.bf16.mxu0 0
  %219 = vmatpush1.bf16.msra.mxu0 %v206
  %220 = vmatprep.subr.bf16.mxu0 0
  %221 = vmatpush1.bf16.msra.mxu0 %v205
  %222 = vmatprep.subr.bf16.mxu0 0
  %223 = vmatpush1.bf16.msra.mxu0 %v204
  %224 = vmatprep.subr.bf16.mxu0 0
  %225 = vmatpush1.bf16.msra.mxu0 %v203
  %226 = vmatprep.subr.bf16.mxu0 0
  %227 = vmatpush1.bf16.msra.mxu0 %v202
  %228 = vmatprep.subr.bf16.mxu0 0
  %229 = vmatpush1.bf16.msra.mxu0 %v201
  %230 = vmatprep.subr.bf16.mxu0 0
  %231 = vmatpush1.bf16.msra.mxu0 %v200
  %232 = vmatprep.subr.bf16.mxu0 0
  %233 = vmatpush2.bf16.msra.mxu0 0
  %234 = vmatprep.subr.bf16.mxu0 0
  %235 = vmatpush2.bf16.msra.mxu0 0
  %236 = vmatprep.subr.bf16.mxu0 0
  %237 = vmatpush2.bf16.msra.mxu0 0
  %238 = vmatprep.subr.bf16.mxu0 0
  %239 = vmatpush2.bf16.msra.mxu0 0
  %240 = vmatprep.subr.bf16.mxu0 0
  %241 = vmatpush2.bf16.msra.mxu0 0
  %242 = vmatprep.subr.bf16.mxu0 0
  %243 = vmatpush2.bf16.msra.mxu0 0
  %244 = vmatprep.subr.bf16.mxu0 0
  %245 = vmatpush2.bf16.msra.mxu0 0
  %246 = vmatprep.subr.bf16.mxu0 0
  %247 = vmatpush2.bf16.msra.mxu0 0
  %248 = vmatprep.mubr.bf16.mxu0 0
  %249 = vmatmul.mubr.bf16.gmra.mxu0 %v30
  %v250 = vpop.f32.mrf.mxu0
  %v251 = vadd.f32 %v155, %v250
  %v252 = vpop.f32.mrf.mxu0
  %v253 = vpop.f32.mrf.mxu0
  %v254 = vadd.f32 %v158, %v253
  %v255 = vpop.f32.mrf.mxu0
  %256 = vmatprep.mubr.bf16.mxu0 0
  %257 = vmatmul.mubr.bf16.gmra.mxu0 %v31
  %v258 = vpop.f32.mrf.mxu0
  %v259 = vadd.f32 %v163, %v258
  %v260 = vpop.f32.mrf.mxu0
  %v261 = vpop.f32.mrf.mxu0
  %v262 = vpop.f32.mrf.mxu0
  %263 = vdwg.mxu0
  %v265 = vlaneseq
  %v266 = vshrl.u32 %v265, 7
  %v267 = vsub.s32 0, %v266
  %v268 = vrot.slane %v37, %v267
  %v270 = vadd.f32 %v251, %v268
  %v271 = vadd.f32 %v254, %v268
  %v272 = vadd.f32 %v259, %v268
  %273 = vadd.xlane.f32.xlu0 %v270
  %v274 = vpop.xlane.xlu0 %273
  %275 = vadd.xlane.f32.xlu0 %v271
  %v276 = vpop.xlane.xlu0 %275
  %277 = vadd.xlane.f32.xlu0 %v272
  %v278 = vpop.xlane.xlu0 %277
  %v279 = vrcp.pop 128.0
  %v280 = vmul.f32 %v274, %v279
  %v281 = vmul.f32 %v276, %v279
  %v282 = vmul.f32 %v278, %v279
  %v283 = vsub.f32 %v270, %v280
  %v284 = vsub.f32 %v271, %v281
  %v285 = vsub.f32 %v272, %v282
  %v286 = vmul.f32 %v283, %v283
  %v287 = vmul.f32 %v284, %v284
  %v288 = vmul.f32 %v285, %v285
  %289 = vadd.xlane.f32.xlu0 %v286
  %v290 = vpop.xlane.xlu0 %289
  %291 = vadd.xlane.f32.xlu0 %v287
  %v292 = vpop.xlane.xlu0 %291
  %293 = vadd.xlane.f32.xlu0 %v288
  %v294 = vpop.xlane.xlu0 %293
  %v295 = vmul.f32 %v290, %v279
  %v296 = vmul.f32 %v292, %v279
  %v297 = vmul.f32 %v294, %v279
  %v298 = vadd.f32 %v295, 1e-05
  %v299 = vadd.f32 %v296, 1e-05
  %v300 = vadd.f32 %v297, 1e-05
  %v301 = vrsqrt.pop %v298
  %v302 = vrsqrt.pop %v299
  %v303 = vrsqrt.pop %v300
  %v304 = vmul.f32 %v283, %v301
  %v305 = vmul.f32 %v284, %v302
  %v306 = vmul.f32 %v285, %v303
  %v308 = vlaneseq
  %v309 = vshrl.u32 %v308, 7
  %v310 = vsub.s32 0, %v309
  %v311 = vrot.slane %v38, %v310
  %v313 = vmul.f32 %v304, %v311
  %v314 = vmul.f32 %v305, %v311
  %v315 = vmul.f32 %v306, %v311
  %v317 = vlaneseq
  %v318 = vshrl.u32 %v317, 7
  %v319 = vsub.s32 0, %v318
  %v320 = vrot.slane %v39, %v319
  %v322 = vadd.f32 %v313, %v320
  %v323 = vadd.f32 %v314, %v320
  %v324 = vadd.f32 %v315, %v320
  %325 = vst [vmem:[%s7] sm:$0xff] %v322
  %326 = vst [vmem:[%s7 + $0x8] sm:$0xff] %v323
  %327 = vst [vmem:[%s7 + $0x10] sm:$0xff] %v324
  // Predicated region
  $region30: #{coattention_forward.5} parent=0 // pred_check
    _
  $region31: #{coattention_forward.5} parent=0 // pred_check_branch
    %329 = sbr.rel (0) target = $region33
  $region32: #{coattention_forward.5} parent=0 // pred_region
    _
  $region33: #{coattention_forward.5} parent=0 // pred_fallthru
    _
  // Predicated region
  $region34: #{coattention_forward.5} parent=0 // pred_check
    _
  $region35: #{coattention_forward.5} parent=0 // pred_check_branch
    %331 = sbr.rel (0) target = $region37
  $region36: #{coattention_forward.5} parent=0 // pred_region
    _
  $region37: #{coattention_forward.5} parent=0 // pred_fallthru
    _

// kernel: coattention_forward.3
$region0: #{coattention_forward.3}
  #allocation0 [shape = 'u32[]', space=smem, size = 0x4, offset = 0x4, fixed_abs, tag = 'smem constant byte address 0x4 - core index']
  #allocation1 [shape = 'u32[144,128]{1,0:T(1,128)}', space=vmem, size = 0x12000, scoped, tag = 'internal scratch']
  #allocation2 [shape = 'f32[8,128]{1,0:T(8,128)}', space=vmem, size = 0x1000, scoped, tag = 'scratch operand']
  %s0 = inlined_call_operand.vmem [shape: f32[2,8,128], index: 0, kind: input, shape index: {}]
  %s1 = inlined_call_operand.vmem [shape: f32[2,16,128], index: 1, kind: input, shape index: {}]
  %s2 = inlined_call_operand.vmem [shape: bf16[128,128], index: 2, kind: input, shape index: {}]
  %s3 = inlined_call_operand.vmem [shape: f32[1,128], index: 3, kind: input, shape index: {}]
  %s4 = inlined_call_operand.vmem [shape: bf16[128,128], index: 4, kind: input, shape index: {}]
  %s5 = inlined_call_operand.vmem [shape: f32[1,128], index: 5, kind: input, shape index: {}]
  %s6 = inlined_call_operand.vmem [shape: bf16[128,128], index: 6, kind: input, shape index: {}]
  %s7 = inlined_call_operand.vmem [shape: f32[1,128], index: 7, kind: input, shape index: {}]
  %s8 = inlined_call_operand.vmem [shape: bf16[128,128], index: 8, kind: input, shape index: {}]
  %s9 = inlined_call_operand.vmem [shape: f32[1,128], index: 9, kind: input, shape index: {}]
  %s10 = inlined_call_operand.vmem [shape: f32[2,8,128], index: 10, kind: output, shape index: {}]
  %s11 = sld [smem:[#allocation0]]
  $region73: #{coattention_forward.3} parent=0
    _
  %s13 = ssub.s32 1, %s11
  %s14 = scalar_select 0, %s13, %s11
  loop: start=0, step=1, limit=4
  $region2: #{coattention_forward.3} parent=0 // loop_pre_header
    _
  $region3: #{coattention_forward.3} parent=0 // loop_header
    %s16 = sphi 0, %s20
    %p17 = scmp.ge.s32.totalorder %s16, 4
    %s26 = sphi 0, %s28
    %s29 = sphi 0, %s26
    %s30 = sphi 0, %s29
    %s46 = sphi 0, %s30
    %s52 = sphi 0, %s54
    %s55 = sphi 0, %s52
    %s56 = sphi 0, %s55
    %s72 = sphi 0, %s56
    %s76 = sphi 0, %s76
    %s78 = sphi 0, %s76
    %s79 = sphi 0, %s78
    %s93 = sphi 0, %s79
    %s97 = sphi 0, %s97
    %s99 = sphi 0, %s97
    %s100 = sphi 0, %s99
    %s114 = sphi 0, %s100
    %s118 = sphi 0, %s118
    %s120 = sphi 0, %s118
    %s121 = sphi 0, %s120
    %s135 = sphi 0, %s121
    %s139 = sphi 0, %s139
    %s141 = sphi 0, %s139
    %s142 = sphi 0, %s141
    %s156 = sphi 0, %s142
    %s160 = sphi 0, %s160
    %s162 = sphi 0, %s160
    %s163 = sphi 0, %s162
    %s177 = sphi 0, %s163
    %s181 = sphi 0, %s181
    %s183 = sphi 0, %s181
    %s184 = sphi 0, %s183
    %s198 = sphi 0, %s184
    %s202 = sphi 0, %s202
    %s204 = sphi 0, %s202
    %s205 = sphi 0, %s204
    %s219 = sphi 0, %s205
    %s223 = sphi 0, %s223
    %s225 = sphi 0, %s223
    %s226 = sphi 0, %s225
    %s240 = sphi 0, %s226
    %s246 = sphi 0, %s248
    %s249 = sphi 0, %s246
    %s250 = sphi 0, %s249
    %s266 = sphi 0, %s250
  $region4: #{coattention_forward.3} parent=0 // loop_header_branch
    %19 = sbr.rel (%p17) target = $region8
  $region5: #{coattention_forward.3} parent=0 // loop_body
    %s21 = ssub.s32 %s16, 1
    %s22 = ssub.s32 %s16, 2
    %s23 = sadd.s32 %s16, 1
    %s24 = ssub.s32 %s16, %s23
    %p25 = scmp.eq.s32.totalorder %s24, 0
    %s27 = sadd.s32 %s26, 1
    %s28 = scalar_select %p25, %s26, %s27
    %p31 = pneg %p25
    %p32 = scmp.eq.s32.totalorder %s16, 1
    %p33 = por %p31, %p32
    %p34 = scmp.ne.s32.totalorder %s26, %s29
    %p35 = scmp.eq.s32.totalorder %s16, 0
    %p36 = por %p34, %p35
    %p37 = scmp.ne.s32.totalorder %s26, %s29
    %p38 = scmp.eq.s32.totalorder %s21, 1
    %p39 = por %p37, %p38
    %p40 = scmp.ne.s32.totalorder %s29, %s30
    %p41 = scmp.eq.s32.totalorder %s21, 0
    %p42 = por %p40, %p41
    %p43 = scmp.ne.s32.totalorder %s29, %s30
    %p44 = scmp.eq.s32.totalorder %s22, 1
    %p45 = por %p43, %p44
    %p47 = scmp.ne.s32.totalorder %s30, %s46
    %p48 = scmp.eq.s32.totalorder %s22, 0
    %p49 = por %p47, %p48
    %s50 = ssub.s32 %s16, %s23
    %p51 = scmp.eq.s32.totalorder %s50, 0
    %s53 = sadd.s32 %s52, 1
    %s54 = scalar_select %p51, %s52, %s53
    %p57 = pneg %p51
    %p58 = scmp.eq.s32.totalorder %s16, 1
    %p59 = por %p57, %p58
    %p60 = scmp.ne.s32.totalorder %s52, %s55
    %p61 = scmp.eq.s32.totalorder %s16, 0
    %p62 = por %p60, %p61
    %p63 = scmp.ne.s32.totalorder %s52, %s55
    %p64 = scmp.eq.s32.totalorder %s21, 1
    %p65 = por %p63, %p64
    %p66 = scmp.ne.s32.totalorder %s55, %s56
    %p67 = scmp.eq.s32.totalorder %s21, 0
    %p68 = por %p66, %p67
    %p69 = scmp.ne.s32.totalorder %s55, %s56
    %p70 = scmp.eq.s32.totalorder %s22, 1
    %p71 = por %p69, %p70
    %p73 = scmp.ne.s32.totalorder %s56, %s72
    %p74 = scmp.eq.s32.totalorder %s22, 0
    %p75 = por %p73, %p74
    %s77 = sadd.s32 %s76, 1
    %p80 = scmp.eq.s32.totalorder %s16, 1
    %p81 = scmp.ne.s32.totalorder %s76, %s78
    %p82 = scmp.eq.s32.totalorder %s16, 0
    %p83 = por %p81, %p82
    %p84 = scmp.ne.s32.totalorder %s76, %s78
    %p85 = scmp.eq.s32.totalorder %s21, 1
    %p86 = por %p84, %p85
    %p87 = scmp.ne.s32.totalorder %s78, %s79
    %p88 = scmp.eq.s32.totalorder %s21, 0
    %p89 = por %p87, %p88
    %p90 = scmp.ne.s32.totalorder %s78, %s79
    %p91 = scmp.eq.s32.totalorder %s22, 1
    %p92 = por %p90, %p91
    %p94 = scmp.ne.s32.totalorder %s79, %s93
    %p95 = scmp.eq.s32.totalorder %s22, 0
    %p96 = por %p94, %p95
    %s98 = sadd.s32 %s97, 1
    %p101 = scmp.eq.s32.totalorder %s16, 1
    %p102 = scmp.ne.s32.totalorder %s97, %s99
    %p103 = scmp.eq.s32.totalorder %s16, 0
    %p104 = por %p102, %p103
    %p105 = scmp.ne.s32.totalorder %s97, %s99
    %p106 = scmp.eq.s32.totalorder %s21, 1
    %p107 = por %p105, %p106
    %p108 = scmp.ne.s32.totalorder %s99, %s100
    %p109 = scmp.eq.s32.totalorder %s21, 0
    %p110 = por %p108, %p109
    %p111 = scmp.ne.s32.totalorder %s99, %s100
    %p112 = scmp.eq.s32.totalorder %s22, 1
    %p113 = por %p111, %p112
    %p115 = scmp.ne.s32.totalorder %s100, %s114
    %p116 = scmp.eq.s32.totalorder %s22, 0
    %p117 = por %p115, %p116
    %s119 = sadd.s32 %s118, 1
    %p122 = scmp.eq.s32.totalorder %s16, 1
    %p123 = scmp.ne.s32.totalorder %s118, %s120
    %p124 = scmp.eq.s32.totalorder %s16, 0
    %p125 = por %p123, %p124
    %p126 = scmp.ne.s32.totalorder %s118, %s120
    %p127 = scmp.eq.s32.totalorder %s21, 1
    %p128 = por %p126, %p127
    %p129 = scmp.ne.s32.totalorder %s120, %s121
    %p130 = scmp.eq.s32.totalorder %s21, 0
    %p131 = por %p129, %p130
    %p132 = scmp.ne.s32.totalorder %s120, %s121
    %p133 = scmp.eq.s32.totalorder %s22, 1
    %p134 = por %p132, %p133
    %p136 = scmp.ne.s32.totalorder %s121, %s135
    %p137 = scmp.eq.s32.totalorder %s22, 0
    %p138 = por %p136, %p137
    %s140 = sadd.s32 %s139, 1
    %p143 = scmp.eq.s32.totalorder %s16, 1
    %p144 = scmp.ne.s32.totalorder %s139, %s141
    %p145 = scmp.eq.s32.totalorder %s16, 0
    %p146 = por %p144, %p145
    %p147 = scmp.ne.s32.totalorder %s139, %s141
    %p148 = scmp.eq.s32.totalorder %s21, 1
    %p149 = por %p147, %p148
    %p150 = scmp.ne.s32.totalorder %s141, %s142
    %p151 = scmp.eq.s32.totalorder %s21, 0
    %p152 = por %p150, %p151
    %p153 = scmp.ne.s32.totalorder %s141, %s142
    %p154 = scmp.eq.s32.totalorder %s22, 1
    %p155 = por %p153, %p154
    %p157 = scmp.ne.s32.totalorder %s142, %s156
    %p158 = scmp.eq.s32.totalorder %s22, 0
    %p159 = por %p157, %p158
    %s161 = sadd.s32 %s160, 1
    %p164 = scmp.eq.s32.totalorder %s16, 1
    %p165 = scmp.ne.s32.totalorder %s160, %s162
    %p166 = scmp.eq.s32.totalorder %s16, 0
    %p167 = por %p165, %p166
    %p168 = scmp.ne.s32.totalorder %s160, %s162
    %p169 = scmp.eq.s32.totalorder %s21, 1
    %p170 = por %p168, %p169
    %p171 = scmp.ne.s32.totalorder %s162, %s163
    %p172 = scmp.eq.s32.totalorder %s21, 0
    %p173 = por %p171, %p172
    %p174 = scmp.ne.s32.totalorder %s162, %s163
    %p175 = scmp.eq.s32.totalorder %s22, 1
    %p176 = por %p174, %p175
    %p178 = scmp.ne.s32.totalorder %s163, %s177
    %p179 = scmp.eq.s32.totalorder %s22, 0
    %p180 = por %p178, %p179
    %s182 = sadd.s32 %s181, 1
    %p185 = scmp.eq.s32.totalorder %s16, 1
    %p186 = scmp.ne.s32.totalorder %s181, %s183
    %p187 = scmp.eq.s32.totalorder %s16, 0
    %p188 = por %p186, %p187
    %p189 = scmp.ne.s32.totalorder %s181, %s183
    %p190 = scmp.eq.s32.totalorder %s21, 1
    %p191 = por %p189, %p190
    %p192 = scmp.ne.s32.totalorder %s183, %s184
    %p193 = scmp.eq.s32.totalorder %s21, 0
    %p194 = por %p192, %p193
    %p195 = scmp.ne.s32.totalorder %s183, %s184
    %p196 = scmp.eq.s32.totalorder %s22, 1
    %p197 = por %p195, %p196
    %p199 = scmp.ne.s32.totalorder %s184, %s198
    %p200 = scmp.eq.s32.totalorder %s22, 0
    %p201 = por %p199, %p200
    %s203 = sadd.s32 %s202, 1
    %p206 = scmp.eq.s32.totalorder %s16, 1
    %p207 = scmp.ne.s32.totalorder %s202, %s204
    %p208 = scmp.eq.s32.totalorder %s16, 0
    %p209 = por %p207, %p208
    %p210 = scmp.ne.s32.totalorder %s202, %s204
    %p211 = scmp.eq.s32.totalorder %s21, 1
    %p212 = por %p210, %p211
    %p213 = scmp.ne.s32.totalorder %s204, %s205
    %p214 = scmp.eq.s32.totalorder %s21, 0
    %p215 = por %p213, %p214
    %p216 = scmp.ne.s32.totalorder %s204, %s205
    %p217 = scmp.eq.s32.totalorder %s22, 1
    %p218 = por %p216, %p217
    %p220 = scmp.ne.s32.totalorder %s205, %s219
    %p221 = scmp.eq.s32.totalorder %s22, 0
    %p222 = por %p220, %p221
    %s224 = sadd.s32 %s223, 1
    %p227 = scmp.eq.s32.totalorder %s16, 1
    %p228 = scmp.ne.s32.totalorder %s223, %s225
    %p229 = scmp.eq.s32.totalorder %s16, 0
    %p230 = por %p228, %p229
    %p231 = scmp.ne.s32.totalorder %s223, %s225
    %p232 = scmp.eq.s32.totalorder %s21, 1
    %p233 = por %p231, %p232
    %p234 = scmp.ne.s32.totalorder %s225, %s226
    %p235 = scmp.eq.s32.totalorder %s21, 0
    %p236 = por %p234, %p235
    %p237 = scmp.ne.s32.totalorder %s225, %s226
    %p238 = scmp.eq.s32.totalorder %s22, 1
    %p239 = por %p237, %p238
    %p241 = scmp.ne.s32.totalorder %s226, %s240
    %p242 = scmp.eq.s32.totalorder %s22, 0
    %p243 = por %p241, %p242
    %s244 = ssub.s32 %s16, %s23
    %p245 = scmp.eq.s32.totalorder %s244, 0
    %s247 = sadd.s32 %s246, 1
    %s248 = scalar_select %p245, %s246, %s247
    %p251 = pneg %p245
    %p252 = scmp.eq.s32.totalorder %s16, 1
    %p253 = por %p251, %p252
    %p254 = scmp.ne.s32.totalorder %s246, %s249
    %p255 = scmp.eq.s32.totalorder %s16, 0
    %p256 = por %p254, %p255
    %p257 = scmp.ne.s32.totalorder %s246, %s249
    %p258 = scmp.eq.s32.totalorder %s21, 1
    %p259 = por %p257, %p258
    %p260 = scmp.ne.s32.totalorder %s249, %s250
    %p261 = scmp.eq.s32.totalorder %s21, 0
    %p262 = por %p260, %p261
    %p263 = scmp.ne.s32.totalorder %s249, %s250
    %p264 = scmp.eq.s32.totalorder %s22, 1
    %p265 = por %p263, %p264
    %p267 = scmp.ne.s32.totalorder %s250, %s266
    %p268 = scmp.eq.s32.totalorder %s22, 0
    %p269 = por %p267, %p268
    %p270 = scmp.le.s32.totalorder 1, %s16
    %p271 = scmp.lt.s32.totalorder %s16, 3
    %p272 = pnand %p270, %p271
    %p273 = pneg %p272
    // Predicated region
    $region9: #{coattention_forward.3} parent=5 // pred_check
      _
    $region10: #{coattention_forward.3} parent=5 // pred_check_branch
      %275 = sbr.rel (%p272) target = $region12
    $region11: #{coattention_forward.3} parent=5 // pred_region
      %s276 = ssub.s32 %s16, 1
      // Predicated region
      $region13: #{coattention_forward.3} parent=11 // pred_check
        %p277 = pneg %p89
      $region14: #{coattention_forward.3} parent=11 // pred_check_branch
        %279 = sbr.rel (%p277) target = $region16
      $region15: #{coattention_forward.3} parent=11 // pred_region
        _
      $region16: #{coattention_forward.3} parent=11 // pred_fallthru
        _
      // Predicated region
      $region17: #{coattention_forward.3} parent=11 // pred_check
        %p280 = pneg %p110
      $region18: #{coattention_forward.3} parent=11 // pred_check_branch
        %282 = sbr.rel (%p280) target = $region20
      $region19: #{coattention_forward.3} parent=11 // pred_region
        _
      $region20: #{coattention_forward.3} parent=11 // pred_fallthru
        _
      // Predicated region
      $region21: #{coattention_forward.3} parent=11 // pred_check
        %p283 = pneg %p131
      $region22: #{coattention_forward.3} parent=11 // pred_check_branch
        %285 = sbr.rel (%p283) target = $region24
      $region23: #{coattention_forward.3} parent=11 // pred_region
        _
      $region24: #{coattention_forward.3} parent=11 // pred_fallthru
        _
      // Predicated region
      $region25: #{coattention_forward.3} parent=11 // pred_check
        %p286 = pneg %p152
      $region26: #{coattention_forward.3} parent=11 // pred_check_branch
        %288 = sbr.rel (%p286) target = $region28
      $region27: #{coattention_forward.3} parent=11 // pred_region
        _
      $region28: #{coattention_forward.3} parent=11 // pred_fallthru
        _
      // Predicated region
      $region29: #{coattention_forward.3} parent=11 // pred_check
        %p289 = pneg %p173
      $region30: #{coattention_forward.3} parent=11 // pred_check_branch
        %291 = sbr.rel (%p289) target = $region32
      $region31: #{coattention_forward.3} parent=11 // pred_region
        _
      $region32: #{coattention_forward.3} parent=11 // pred_fallthru
        _
      // Predicated region
      $region33: #{coattention_forward.3} parent=11 // pred_check
        %p292 = pneg %p194
      $region34: #{coattention_forward.3} parent=11 // pred_check_branch
        %294 = sbr.rel (%p292) target = $region36
      $region35: #{coattention_forward.3} parent=11 // pred_region
        _
      $region36: #{coattention_forward.3} parent=11 // pred_fallthru
        _
      // Predicated region
      $region37: #{coattention_forward.3} parent=11 // pred_check
        %p295 = pneg %p215
      $region38: #{coattention_forward.3} parent=11 // pred_check_branch
        %297 = sbr.rel (%p295) target = $region40
      $region39: #{coattention_forward.3} parent=11 // pred_region
        _
      $region40: #{coattention_forward.3} parent=11 // pred_fallthru
        _
      // Predicated region
      $region41: #{coattention_forward.3} parent=11 // pred_check
        %p298 = pneg %p236
      $region42: #{coattention_forward.3} parent=11 // pred_check_branch
        %300 = sbr.rel (%p298) target = $region44
      $region43: #{coattention_forward.3} parent=11 // pred_region
        _
      $region44: #{coattention_forward.3} parent=11 // pred_fallthru
        _
    $region12: #{coattention_forward.3} parent=5 // pred_fallthru
      _
    %p301 = scmp.lt.s32.totalorder %s16, 2
    // Predicated region
    $region45: #{coattention_forward.3} parent=5 // pred_check
      %p302 = pneg %p301
    $region46: #{coattention_forward.3} parent=5 // pred_check_branch
      %304 = sbr.rel (%p302) target = $region48
    $region47: #{coattention_forward.3} parent=5 // pred_region
      // Predicated region
      $region49: #{coattention_forward.3} parent=47 // pred_check
        %p305 = pneg %p36
      $region50: #{coattention_forward.3} parent=47 // pred_check_branch
        %307 = sbr.rel (%p305) target = $region52
      $region51: #{coattention_forward.3} parent=47 // pred_region
        %p308 = scmp.lt.s32.totalorder %s16, 1
        %s309 = scalar_select %p308, %s16, 1
        %s310 = smul.addr %s309, 8
        %s311 = scalar_lea.vmem %s0, %s310
      $region52: #{coattention_forward.3} parent=47 // pred_fallthru
        _
      // Predicated region
      $region53: #{coattention_forward.3} parent=47 // pred_check
        %p312 = pneg %p62
      $region54: #{coattention_forward.3} parent=47 // pred_check_branch
        %314 = sbr.rel (%p312) target = $region56
      $region55: #{coattention_forward.3} parent=47 // pred_region
        %p315 = scmp.lt.s32.totalorder %s16, 1
        %s316 = scalar_select %p315, %s16, 1
        %s317 = smul.addr %s316, 2
        %s318 = smul.addr %s317, 8
        %s319 = scalar_lea.vmem %s1, %s318
      $region56: #{coattention_forward.3} parent=47 // pred_fallthru
        _
    $region48: #{coattention_forward.3} parent=5 // pred_fallthru
      _
    %p320 = scmp.le.s32.totalorder 1, %s16
    %p321 = scmp.lt.s32.totalorder %s16, 3
    %p322 = pnand %p320, %p321
    %p323 = pneg %p322
    // Predicated region
    $region57: #{coattention_forward.3} parent=5 // pred_check
      _
    $region58: #{coattention_forward.3} parent=5 // pred_check_branch
      %325 = sbr.rel (%p322) target = $region60
    $region59: #{coattention_forward.3} parent=5 // pred_region
      %s326 = ssub.s32 %s16, 1
      %p327 = scmp.lt.s32.totalorder %s21, 1
      %s328 = scalar_select %p327, %s21, 1
      %s329 = smul.addr %s328, 8
      %s330 = scalar_lea.vmem %s0, %s329
      %p331 = pneg %p42
      %p332 = pneg %p39
      %p333 = scmp.lt.s32.totalorder %s21, 1
      %s334 = scalar_select %p333, %s21, 1
      %s335 = smul.addr %s334, 2
      %s336 = smul.addr %s335, 8
      %s337 = scalar_lea.vmem %s1, %s336
      %p338 = pneg %p68
      %p339 = pneg %p65
      %p340 = pneg %p89
      %p341 = pneg %p86
      %p342 = pneg %p110
      %p343 = pneg %p107
      %p344 = pneg %p131
      %p345 = pneg %p128
      %p346 = pneg %p152
      %p347 = pneg %p149
      %p348 = pneg %p173
      %p349 = pneg %p170
      %p350 = pneg %p194
      %p351 = pneg %p191
      %p352 = pneg %p215
      %p353 = pneg %p212
      %p354 = pneg %p236
      %p355 = pneg %p233
      %p356 = pneg %p262
      %p357 = pneg %p259
      %p358 = scmp.lt.s32.totalorder %s21, 1
      %s359 = scalar_select %p358, %s21, 1
      %s360 = smul.addr %s359, 8
      %s361 = scalar_lea.vmem %s10, %s360
      %p362 = scmp.lt.s32.totalorder %s21, 1
      %s363 = scalar_select %p362, %s21, 1
      %s364 = smul.addr %s363, 8
      %s365 = scalar_lea.vmem %s0, %s364
      %p366 = scmp.lt.s32.totalorder %s21, 1
      %s367 = scalar_select %p366, %s21, 1
      %s368 = smul.addr %s367, 2
      %s369 = smul.addr %s368, 8
      %s370 = scalar_lea.vmem %s1, %s369
      %p371 = scmp.lt.s32.totalorder %s21, 1
      %s372 = scalar_select %p371, %s21, 1
      %s373 = smul.addr %s372, 8
      %s374 = scalar_lea.vmem %s10, %s373
      %v376 = vld [vmem:[%s365] sm:$0xff]
      %v377 = vpack.c.bf16 %v376, %v376
      %v378 = vld [vmem:[%s370] sm:$0xff]
      %v379 = vld [vmem:[%s370 + $0x8] sm:$0xff]
      %v380 = vpack.c.bf16 %v379, %v378
      %v381 = vld [vmem:[%s2] sm:$0xf]
      %v382 = vld [vmem:[%s2 + $0x4] sm:$0xf]
      %v383 = vld [vmem:[%s2 + $0x8] sm:$0xf]
      %v384 = vld [vmem:[%s2 + $0xc] sm:$0xf]
      %v385 = vld [vmem:[%s2 + $0x10] sm:$0xf]
      %v386 = vld [vmem:[%s2 + $0x14] sm:$0xf]
      %v387 = vld [vmem:[%s2 + $0x18] sm:$0xf]
      %v388 = vld [vmem:[%s2 + $0x1c] sm:$0xf]
      %v389 = vld [vmem:[%s2 + $0x20] sm:$0xf]
      %v390 = vld [vmem:[%s2 + $0x24] sm:$0xf]
      %v391 = vld [vmem:[%s2 + $0x28] sm:$0xf]
      %v392 = vld [vmem:[%s2 + $0x2c] sm:$0xf]
      %v393 = vld [vmem:[%s2 + $0x30] sm:$0xf]
      %v394 = vld [vmem:[%s2 + $0x34] sm:$0xf]
      %v395 = vld [vmem:[%s2 + $0x38] sm:$0xf]
      %v396 = vld [vmem:[%s2 + $0x3c] sm:$0xf]
      %v397 = vld [vmem:[%s4] sm:$0xf]
      %v398 = vld [vmem:[%s4 + $0x4] sm:$0xf]
      %v399 = vld [vmem:[%s4 + $0x8] sm:$0xf]
      %v400 = vld [vmem:[%s4 + $0xc] sm:$0xf]
      %v401 = vld [vmem:[%s4 + $0x10] sm:$0xf]
      %v402 = vld [vmem:[%s4 + $0x14] sm:$0xf]
      %v403 = vld [vmem:[%s4 + $0x18] sm:$0xf]
      %v404 = vld [vmem:[%s4 + $0x1c] sm:$0xf]
      %v405 = vld [vmem:[%s4 + $0x20] sm:$0xf]
      %v406 = vld [vmem:[%s4 + $0x24] sm:$0xf]
      %v407 = vld [vmem:[%s4 + $0x28] sm:$0xf]
      %v408 = vld [vmem:[%s4 + $0x2c] sm:$0xf]
      %v409 = vld [vmem:[%s4 + $0x30] sm:$0xf]
      %v410 = vld [vmem:[%s4 + $0x34] sm:$0xf]
      %v411 = vld [vmem:[%s4 + $0x38] sm:$0xf]
      %v412 = vld [vmem:[%s4 + $0x3c] sm:$0xf]
      %v413 = vld [vmem:[%s6] sm:$0xf]
      %v414 = vld [vmem:[%s6 + $0x4] sm:$0xf]
      %v415 = vld [vmem:[%s6 + $0x8] sm:$0xf]
      %v416 = vld [vmem:[%s6 + $0xc] sm:$0xf]
      %v417 = vld [vmem:[%s6 + $0x10] sm:$0xf]
      %v418 = vld [vmem:[%s6 + $0x14] sm:$0xf]
      %v419 = vld [vmem:[%s6 + $0x18] sm:$0xf]
      %v420 = vld [vmem:[%s6 + $0x1c] sm:$0xf]
      %v421 = vld [vmem:[%s6 + $0x20] sm:$0xf]
      %v422 = vld [vmem:[%s6 + $0x24] sm:$0xf]
      %v423 = vld [vmem:[%s6 + $0x28] sm:$0xf]
      %v424 = vld [vmem:[%s6 + $0x2c] sm:$0xf]
      %v425 = vld [vmem:[%s6 + $0x30] sm:$0xf]
      %v426 = vld [vmem:[%s6 + $0x34] sm:$0xf]
      %v427 = vld [vmem:[%s6 + $0x38] sm:$0xf]
      %v428 = vld [vmem:[%s6 + $0x3c] sm:$0xf]
      %v429 = vld [vmem:[%s8] sm:$0xf]
      %v430 = vld [vmem:[%s8 + $0x4] sm:$0xf]
      %v431 = vld [vmem:[%s8 + $0x8] sm:$0xf]
      %v432 = vld [vmem:[%s8 + $0xc] sm:$0xf]
      %v433 = vld [vmem:[%s8 + $0x10] sm:$0xf]
      %v434 = vld [vmem:[%s8 + $0x14] sm:$0xf]
      %v435 = vld [vmem:[%s8 + $0x18] sm:$0xf]
      %v436 = vld [vmem:[%s8 + $0x1c] sm:$0xf]
      %v437 = vld [vmem:[%s8 + $0x20] sm:$0xf]
      %v438 = vld [vmem:[%s8 + $0x24] sm:$0xf]
      %v439 = vld [vmem:[%s8 + $0x28] sm:$0xf]
      %v440 = vld [vmem:[%s8 + $0x2c] sm:$0xf]
      %v441 = vld [vmem:[%s8 + $0x30] sm:$0xf]
      %v442 = vld [vmem:[%s8 + $0x34] sm:$0xf]
      %v443 = vld [vmem:[%s8 + $0x38] sm:$0xf]
      %v444 = vld [vmem:[%s8 + $0x3c] sm:$0xf]
      %v445 = vld [vmem:[%s3] sm:$0x1]
      %v446 = vld [vmem:[%s5] sm:$0x1]
      %v447 = vld [vmem:[%s7] sm:$0x1]
      %v448 = vld [vmem:[%s9] sm:$0x1]
      %v450 = vlaneseq
      %v451 = vshrl.u32 %v450, 7
      %v452 = vsub.s32 0, %v451
      %v453 = vrot.slane %v445, %v452
      %v471 = vunpack.c.l.b16 %v381
      %v472 = vunpack.c.l.b16 %v382
      %v473 = vunpack.c.l.b16 %v383
      %v474 = vunpack.c.l.b16 %v384
      %v475 = vunpack.c.l.b16 %v385
      %v476 = vunpack.c.l.b16 %v386
      %v477 = vunpack.c.l.b16 %v387
      %v478 = vunpack.c.l.b16 %v388
      %v479 = vunpack.c.l.b16 %v389
      %v480 = vunpack.c.l.b16 %v390
      %v481 = vunpack.c.l.b16 %v391
      %v482 = vunpack.c.l.b16 %v392
      %v483 = vunpack.c.l.b16 %v393
      %v484 = vunpack.c.l.b16 %v394
      %v485 = vunpack.c.l.b16 %v395
      %v486 = vunpack.c.l.b16 %v396
      %v487 = vpack.c.b16 %v472, %v471
      %v488 = vpack.c.b16 %v474, %v473
      %v489 = vpack.c.b16 %v476, %v475
      %v490 = vpack.c.b16 %v478, %v477
      %v491 = vpack.c.b16 %v480, %v479
      %v492 = vpack.c.b16 %v482, %v481
      %v493 = vpack.c.b16 %v484, %v483
      %v494 = vpack.c.b16 %v486, %v485
      %503 = vmatprep.subr.bf16.mxu0 0
      %504 = vmatpush1.bf16.msra.mxu0 %v494
      %505 = vmatprep.subr.bf16.mxu0 0
      %506 = vmatpush1.bf16.msra.mxu0 %v493
      %507 = vmatprep.subr.bf16.mxu0 0
      %508 = vmatpush1.bf16.msra.mxu0 %v492
      %509 = vmatprep.subr.bf16.mxu0 0
      %510 = vmatpush1.bf16.msra.mxu0 %v491
      %511 = vmatprep.subr.bf16.mxu0 0
      %512 = vmatpush1.bf16.msra.mxu0 %v490
      %513 = vmatprep.subr.bf16.mxu0 0
      %514 = vmatpush1.bf16.msra.mxu0 %v489
      %515 = vmatprep.subr.bf16.mxu0 0
      %516 = vmatpush1.bf16.msra.mxu0 %v488
      %517 = vmatprep.subr.bf16.mxu0 0
      %518 = vmatpush1.bf16.msra.mxu0 %v487
      %519 = vmatprep.subr.bf16.mxu0 0
      %520 = vmatpush2.bf16.msra.mxu0 0
      %521 = vmatprep.subr.bf16.mxu0 0
      %522 = vmatpush2.bf16.msra.mxu0 0
      %523 = vmatprep.subr.bf16.mxu0 0
      %524 = vmatpush2.bf16.msra.mxu0 0
      %525 = vmatprep.subr.bf16.mxu0 0
      %526 = vmatpush2.bf16.msra.mxu0 0
      %527 = vmatprep.subr.bf16.mxu0 0
      %528 = vmatpush2.bf16.msra.mxu0 0
      %529 = vmatprep.subr.bf16.mxu0 0
      %530 = vmatpush2.bf16.msra.mxu0 0
      %531 = vmatprep.subr.bf16.mxu0 0
      %532 = vmatpush2.bf16.msra.mxu0 0
      %533 = vmatprep.subr.bf16.mxu0 0
      %534 = vmatpush2.bf16.msra.mxu0 0
      %535 = vmatprep.mubr.bf16.mxu0 0
      %536 = vmatmul.mubr.bf16.gmra.mxu0 %v377
      %v537 = vpop.f32.mrf.mxu0
      %v538 = vadd.f32 %v453, %v537
      %v539 = vpop.f32.mrf.mxu0
      %v540 = vpop.f32.mrf.mxu0
      %v541 = vpop.f32.mrf.mxu0
      %542 = vdwg.mxu0
      %v544 = vlaneseq
      %v545 = vshrl.u32 %v544, 7
      %v546 = vsub.s32 0, %v545
      %v547 = vrot.slane %v446, %v546
      %v565 = vunpack.c.l.b16 %v397
      %v566 = vunpack.c.l.b16 %v398
      %v567 = vunpack.c.l.b16 %v399
      %v568 = vunpack.c.l.b16 %v400
      %v569 = vunpack.c.l.b16 %v401
      %v570 = vunpack.c.l.b16 %v402
      %v571 = vunpack.c.l.b16 %v403
      %v572 = vunpack.c.l.b16 %v404
      %v573 = vunpack.c.l.b16 %v405
      %v574 = vunpack.c.l.b16 %v406
      %v575 = vunpack.c.l.b16 %v407
      %v576 = vunpack.c.l.b16 %v408
      %v577 = vunpack.c.l.b16 %v409
      %v578 = vunpack.c.l.b16 %v410
      %v579 = vunpack.c.l.b16 %v411
      %v580 = vunpack.c.l.b16 %v412
      %v581 = vpack.c.b16 %v566, %v565
      %v582 = vpack.c.b16 %v568, %v567
      %v583 = vpack.c.b16 %v570, %v569
      %v584 = vpack.c.b16 %v572, %v571
      %v585 = vpack.c.b16 %v574, %v573
      %v586 = vpack.c.b16 %v576, %v575
      %v587 = vpack.c.b16 %v578, %v577
      %v588 = vpack.c.b16 %v580, %v579
      %597 = vmatprep.subr.bf16.mxu0 0
      %598 = vmatpush1.bf16.msra.mxu0 %v588
      %599 = vmatprep.subr.bf16.mxu0 0
      %600 = vmatpush1.bf16.msra.mxu0 %v587
      %601 = vmatprep.subr.bf16.mxu0 0
      %602 = vmatpush1.bf16.msra.mxu0 %v586
      %603 = vmatprep.subr.bf16.mxu0 0
      %604 = vmatpush1.bf16.msra.mxu0 %v585
      %605 = vmatprep.subr.bf16.mxu0 0
      %606 = vmatpush1.bf16.msra.mxu0 %v584
      %607 = vmatprep.subr.bf16.mxu0 0
      %608 = vmatpush1.bf16.msra.mxu0 %v583
      %609 = vmatprep.subr.bf16.mxu0 0
      %610 = vmatpush1.bf16.msra.mxu0 %v582
      %611 = vmatprep.subr.bf16.mxu0 0
      %612 = vmatpush1.bf16.msra.mxu0 %v581
      %613 = vmatprep.subr.bf16.mxu0 0
      %614 = vmatpush2.bf16.msra.mxu0 0
      %615 = vmatprep.subr.bf16.mxu0 0
      %616 = vmatpush2.bf16.msra.mxu0 0
      %617 = vmatprep.subr.bf16.mxu0 0
      %618 = vmatpush2.bf16.msra.mxu0 0
      %619 = vmatprep.subr.bf16.mxu0 0
      %620 = vmatpush2.bf16.msra.mxu0 0
      %621 = vmatprep.subr.bf16.mxu0 0
      %622 = vmatpush2.bf16.msra.mxu0 0
      %623 = vmatprep.subr.bf16.mxu0 0
      %624 = vmatpush2.bf16.msra.mxu0 0
      %625 = vmatprep.subr.bf16.mxu0 0
      %626 = vmatpush2.bf16.msra.mxu0 0
      %627 = vmatprep.subr.bf16.mxu0 0
      %628 = vmatpush2.bf16.msra.mxu0 0
      %629 = vmatprep.mubr.bf16.mxu0 0
      %630 = vmatmul.mubr.bf16.gmra.mxu0 %v380
      %v631 = vpop.f32.mrf.mxu0
      %v632 = vadd.f32 %v547, %v631
      %v633 = vpop.f32.mrf.mxu0
      %v634 = vpop.f32.mrf.mxu0
      %v635 = vadd.f32 %v547, %v634
      %v636 = vpop.f32.mrf.mxu0
      %637 = vdwg.mxu0
      %v639 = vlaneseq
      %v640 = vshrl.u32 %v639, 7
      %v641 = vsub.s32 0, %v640
      %v642 = vrot.slane %v447, %v641
      %v660 = vunpack.c.l.b16 %v413
      %v661 = vunpack.c.l.b16 %v414
      %v662 = vunpack.c.l.b16 %v415
      %v663 = vunpack.c.l.b16 %v416
      %v664 = vunpack.c.l.b16 %v417
      %v665 = vunpack.c.l.b16 %v418
      %v666 = vunpack.c.l.b16 %v419
      %v667 = vunpack.c.l.b16 %v420
      %v668 = vunpack.c.l.b16 %v421
      %v669 = vunpack.c.l.b16 %v422
      %v670 = vunpack.c.l.b16 %v423
      %v671 = vunpack.c.l.b16 %v424
      %v672 = vunpack.c.l.b16 %v425
      %v673 = vunpack.c.l.b16 %v426
      %v674 = vunpack.c.l.b16 %v427
      %v675 = vunpack.c.l.b16 %v428
      %v676 = vpack.c.b16 %v661, %v660
      %v677 = vpack.c.b16 %v663, %v662
      %v678 = vpack.c.b16 %v665, %v664
      %v679 = vpack.c.b16 %v667, %v666
      %v680 = vpack.c.b16 %v669, %v668
      %v681 = vpack.c.b16 %v671, %v670
      %v682 = vpack.c.b16 %v673, %v672
      %v683 = vpack.c.b16 %v675, %v674
      %692 = vmatprep.subr.bf16.mxu0 0
      %693 = vmatpush1.bf16.msra.mxu0 %v683
      %694 = vmatprep.subr.bf16.mxu0 0
      %695 = vmatpush1.bf16.msra.mxu0 %v682
      %696 = vmatprep.subr.bf16.mxu0 0
      %697 = vmatpush1.bf16.msra.mxu0 %v681
      %698 = vmatprep.subr.bf16.mxu0 0
      %699 = vmatpush1.bf16.msra.mxu0 %v680
      %700 = vmatprep.subr.bf16.mxu0 0
      %701 = vmatpush1.bf16.msra.mxu0 %v679
      %702 = vmatprep.subr.bf16.mxu0 0
      %703 = vmatpush1.bf16.msra.mxu0 %v678
      %704 = vmatprep.subr.bf16.mxu0 0
      %705 = vmatpush1.bf16.msra.mxu0 %v677
      %706 = vmatprep.subr.bf16.mxu0 0
      %707 = vmatpush1.bf16.msra.mxu0 %v676
      %708 = vmatprep.subr.bf16.mxu0 0
      %709 = vmatpush2.bf16.msra.mxu0 0
      %710 = vmatprep.subr.bf16.mxu0 0
      %711 = vmatpush2.bf16.msra.mxu0 0
      %712 = vmatprep.subr.bf16.mxu0 0
      %713 = vmatpush2.bf16.msra.mxu0 0
      %714 = vmatprep.subr.bf16.mxu0 0
      %715 = vmatpush2.bf16.msra.mxu0 0
      %716 = vmatprep.subr.bf16.mxu0 0
      %717 = vmatpush2.bf16.msra.mxu0 0
      %718 = vmatprep.subr.bf16.mxu0 0
      %719 = vmatpush2.bf16.msra.mxu0 0
      %720 = vmatprep.subr.bf16.mxu0 0
      %721 = vmatpush2.bf16.msra.mxu0 0
      %722 = vmatprep.subr.bf16.mxu0 0
      %723 = vmatpush2.bf16.msra.mxu0 0
      %724 = vmatprep.mubr.bf16.mxu0 0
      %725 = vmatmul.mubr.bf16.gmra.mxu0 %v380
      %v726 = vpop.f32.mrf.mxu0
      %v727 = vadd.f32 %v642, %v726
      %v728 = vpop.f32.mrf.mxu0
      %v729 = vpop.f32.mrf.mxu0
      %v730 = vadd.f32 %v642, %v729
      %v731 = vpop.f32.mrf.mxu0
      %732 = vdwg.mxu0
      %v733 = vmul.f32 %v538, 0.25
      %v734 = vpack.c.bf16 %v733, %v733
      %v735 = vpack.c.bf16 %v635, %v632
      %v736 = vpack.c.bf16 %v730, %v727
      %vm737 = vcmask 130048
      %v739 = vsel %vm737, %v734, 0
      %v742 = vsel %vm737, %v735, 0
      %744 = vmatprep.subr.bf16.mxu0 0
      %745 = vmatpush1.bf16.xpose.msra.mxu0 0
      %746 = vmatprep.subr.bf16.mxu0 0
      %747 = vmatpush1.bf16.xpose.msra.mxu0 0
      %748 = vmatprep.subr.bf16.mxu0 0
      %749 = vmatpush1.bf16.xpose.msra.mxu0 0
      %750 = vmatprep.subr.bf16.mxu0 0
      %751 = vmatpush1.bf16.xpose.msra.mxu0 0
      %752 = vmatprep.subr.bf16.mxu0 0
      %753 = vmatpush1.bf16.xpose.msra.mxu0 0
      %754 = vmatprep.subr.bf16.mxu0 0
      %755 = vmatpush1.bf16.xpose.msra.mxu0 0
      %756 = vmatprep.subr.bf16.mxu0 0
      %757 = vmatpush1.bf16.xpose.msra.mxu0 0
      %758 = vmatprep.subr.bf16.mxu0 0
      %759 = vmatpush1.bf16.xpose.msra.mxu0 %v742
      %760 = vmatprep.subr.bf16.mxu0 0
      %761 = vmatpush2.bf16.xpose.msra.mxu0 0
      %762 = vmatprep.subr.bf16.mxu0 0
      %763 = vmatpush2.bf16.xpose.msra.mxu0 0
      %764 = vmatprep.subr.bf16.mxu0 0
      %765 = vmatpush2.bf16.xpose.msra.mxu0 0
      %766 = vmatprep.subr.bf16.mxu0 0
      %767 = vmatpush2.bf16.xpose.msra.mxu0 0
      %768 = vmatprep.subr.bf16.mxu0 0
      %769 = vmatpush2.bf16.xpose.msra.mxu0 0
      %770 = vmatprep.subr.bf16.mxu0 0
      %771 = vmatpush2.bf16.xpose.msra.mxu0 0
      %772 = vmatprep.subr.bf16.mxu0 0
      %773 = vmatpush2.bf16.xpose.msra.mxu0 0
      %774 = vmatprep.subr.bf16.mxu0 0
      %775 = vmatpush2.bf16.xpose.msra.mxu0 0
      %776 = vmatprep.mubr.bf16.mxu0 0
      %777 = vmatmul.mubr.bf16.gmra.mxu0 %v739
      %v778 = vpop.f32.mrf.mxu0
      %v779 = vadd.f32 0.0, %v778
      %v780 = vpop.f32.mrf.mxu0
      %v781 = vpop.f32.mrf.mxu0
      %v782 = vpop.f32.mrf.mxu0
      %783 = vdwg.mxu0
      %v784 = vsel %vm737, %v779, -inf
      %785 = vmax.xlane.f32.xlu0 %v784
      %v786 = vpop.xlane.xlu0 %785
      %v787 = vsub.f32 %v779, %v786
      %v788 = vmul.f32 %v787, 1.442695
      %v789 = vpow.pop %v788
      %v790 = vsel %vm737, %v789, 0.0
      %791 = vadd.xlane.f32.xlu0 %v790
      %v792 = vpop.xlane.xlu0 %791
      %v793 = vrcp.pop %v792
      %v794 = vmul.f32 %v789, %v793
      %v795 = vpack.c.bf16 %v794, %v794
      %v797 = vsel %vm737, %v795, 0
      %799 = vmatprep.subr.bf16.mxu0 0
      %800 = vmatpush1.bf16.msra.mxu0 0
      %801 = vmatprep.subr.bf16.mxu0 0
      %802 = vmatpush1.bf16.msra.mxu0 0
      %803 = vmatprep.subr.bf16.mxu0 0
      %804 = vmatpush1.bf16.msra.mxu0 0
      %805 = vmatprep.subr.bf16.mxu0 0
      %806 = vmatpush1.bf16.msra.mxu0 0
      %807 = vmatprep.subr.bf16.mxu0 0
      %808 = vmatpush1.bf16.msra.mxu0 0
      %809 = vmatprep.subr.bf16.mxu0 0
      %810 = vmatpush1.bf16.msra.mxu0 0
      %811 = vmatprep.subr.bf16.mxu0 0
      %812 = vmatpush1.bf16.msra.mxu0 0
      %813 = vmatprep.subr.bf16.mxu0 0
      %814 = vmatpush1.bf16.msra.mxu0 %v736
      %815 = vmatprep.subr.bf16.mxu0 0
      %816 = vmatpush2.bf16.msra.mxu0 0
      %817 = vmatprep.subr.bf16.mxu0 0
      %818 = vmatpush2.bf16.msra.mxu0 0
      %819 = vmatprep.subr.bf16.mxu0 0
      %820 = vmatpush2.bf16.msra.mxu0 0
      %821 = vmatprep.subr.bf16.mxu0 0
      %822 = vmatpush2.bf16.msra.mxu0 0
      %823 = vmatprep.subr.bf16.mxu0 0
      %824 = vmatpush2.bf16.msra.mxu0 0
      %825 = vmatprep.subr.bf16.mxu0 0
      %826 = vmatpush2.bf16.msra.mxu0 0
      %827 = vmatprep.subr.bf16.mxu0 0
      %828 = vmatpush2.bf16.msra.mxu0 0
      %829 = vmatprep.subr.bf16.mxu0 0
      %830 = vmatpush2.bf16.msra.mxu0 0
      %831 = vmatprep.mubr.bf16.mxu0 0
      %832 = vmatmul.mubr.bf16.gmra.mxu0 %v797
      %v833 = vpop.f32.mrf.mxu0
      %v834 = vadd.f32 0.0, %v833
      %v835 = vpop.f32.mrf.mxu0
      %v836 = vpop.f32.mrf.mxu0
      %v837 = vpop.f32.mrf.mxu0
      %838 = vdwg.mxu0
      %840 = vrot.lane.b32.xlu0 %v734, 112
      %v841 = vpop.permute.xlu0 %840
      %843 = vrot.lane.b32.xlu0 %v735, 112
      %v844 = vpop.permute.xlu0 %843
      %v846 = vsel %vm737, %v841, 0
      %v849 = vsel %vm737, %v844, 0
      %851 = vmatprep.subr.bf16.mxu0 0
      %852 = vmatpush1.bf16.xpose.msra.mxu0 0
      %853 = vmatprep.subr.bf16.mxu0 0
      %854 = vmatpush1.bf16.xpose.msra.mxu0 0
      %855 = vmatprep.subr.bf16.mxu0 0
      %856 = vmatpush1.bf16.xpose.msra.mxu0 0
      %857 = vmatprep.subr.bf16.mxu0 0
      %858 = vmatpush1.bf16.xpose.msra.mxu0 0
      %859 = vmatprep.subr.bf16.mxu0 0
      %860 = vmatpush1.bf16.xpose.msra.mxu0 0
      %861 = vmatprep.subr.bf16.mxu0 0
      %862 = vmatpush1.bf16.xpose.msra.mxu0 0
      %863 = vmatprep.subr.bf16.mxu0 0
      %864 = vmatpush1.bf16.xpose.msra.mxu0 0
      %865 = vmatprep.subr.bf16.mxu0 0
      %866 = vmatpush1.bf16.xpose.msra.mxu0 %v849
      %867 = vmatprep.subr.bf16.mxu0 0
      %868 = vmatpush2.bf16.xpose.msra.mxu0 0
      %869 = vmatprep.subr.bf16.mxu0 0
      %870 = vmatpush2.bf16.xpose.msra.mxu0 0
      %871 = vmatprep.subr.bf16.mxu0 0
      %872 = vmatpush2.bf16.xpose.msra.mxu0 0
      %873 = vmatprep.subr.bf16.mxu0 0
      %874 = vmatpush2.bf16.xpose.msra.mxu0 0
      %875 = vmatprep.subr.bf16.mxu0 0
      %876 = vmatpush2.bf16.xpose.msra.mxu0 0
      %877 = vmatprep.subr.bf16.mxu0 0
      %878 = vmatpush2.bf16.xpose.msra.mxu0 0
      %879 = vmatprep.subr.bf16.mxu0 0
      %880 = vmatpush2.bf16.xpose.msra.mxu0 0
      %881 = vmatprep.subr.bf16.mxu0 0
      %882 = vmatpush2.bf16.xpose.msra.mxu0 0
      %883 = vmatprep.mubr.bf16.mxu0 0
      %884 = vmatmul.mubr.bf16.gmra.mxu0 %v846
      %v885 = vpop.f32.mrf.mxu0
      %v886 = vadd.f32 0.0, %v885
      %v887 = vpop.f32.mrf.mxu0
      %v888 = vpop.f32.mrf.mxu0
      %v889 = vpop.f32.mrf.mxu0
      %890 = vdwg.mxu0
      %v891 = vsel %vm737, %v886, -inf
      %892 = vmax.xlane.f32.xlu0 %v891
      %v893 = vpop.xlane.xlu0 %892
      %v894 = vsub.f32 %v886, %v893
      %v895 = vmul.f32 %v894, 1.442695
      %v896 = vpow.pop %v895
      %v897 = vsel %vm737, %v896, 0.0
      %898 = vadd.xlane.f32.xlu0 %v897
      %v899 = vpop.xlane.xlu0 %898
      %v900 = vrcp.pop %v899
      %v901 = vmul.f32 %v896, %v900
      %v902 = vpack.c.bf16 %v901, %v901
      %904 = vrot.lane.b32.xlu0 %v736, 112
      %v905 = vpop.permute.xlu0 %904
      %v908 = vsel %vm737, %v902, 0
      %910 = vmatprep.subr.bf16.mxu0 0
      %911 = vmatpush1.bf16.msra.mxu0 0
      %912 = vmatprep.subr.bf16.mxu0 0
      %913 = vmatpush1.bf16.msra.mxu0 0
      %914 = vmatprep.subr.bf16.mxu0 0
      %915 = vmatpush1.bf16.msra.mxu0 0
      %916 = vmatprep.subr.bf16.mxu0 0
      %917 = vmatpush1.bf16.msra.mxu0 0
      %918 = vmatprep.subr.bf16.mxu0 0
      %919 = vmatpush1.bf16.msra.mxu0 0
      %920 = vmatprep.subr.bf16.mxu0 0
      %921 = vmatpush1.bf16.msra.mxu0 0
      %922 = vmatprep.subr.bf16.mxu0 0
      %923 = vmatpush1.bf16.msra.mxu0 0
      %924 = vmatprep.subr.bf16.mxu0 0
      %925 = vmatpush1.bf16.msra.mxu0 %v905
      %926 = vmatprep.subr.bf16.mxu0 0
      %927 = vmatpush2.bf16.msra.mxu0 0
      %928 = vmatprep.subr.bf16.mxu0 0
      %929 = vmatpush2.bf16.msra.mxu0 0
      %930 = vmatprep.subr.bf16.mxu0 0
      %931 = vmatpush2.bf16.msra.mxu0 0
      %932 = vmatprep.subr.bf16.mxu0 0
      %933 = vmatpush2.bf16.msra.mxu0 0
      %934 = vmatprep.subr.bf16.mxu0 0
      %935 = vmatpush2.bf16.msra.mxu0 0
      %936 = vmatprep.subr.bf16.mxu0 0
      %937 = vmatpush2.bf16.msra.mxu0 0
      %938 = vmatprep.subr.bf16.mxu0 0
      %939 = vmatpush2.bf16.msra.mxu0 0
      %940 = vmatprep.subr.bf16.mxu0 0
      %941 = vmatpush2.bf16.msra.mxu0 0
      %942 = vmatprep.mubr.bf16.mxu0 0
      %943 = vmatmul.mubr.bf16.gmra.mxu0 %v908
      %v944 = vpop.f32.mrf.mxu0
      %v945 = vadd.f32 0.0, %v944
      %v946 = vpop.f32.mrf.mxu0
      %v947 = vpop.f32.mrf.mxu0
      %v948 = vpop.f32.mrf.mxu0
      %949 = vdwg.mxu0
      %950 = vrot.lane.b32.xlu0 %v734, 96
      %v951 = vpop.permute.xlu0 %950
      %952 = vrot.lane.b32.xlu0 %v735, 96
      %v953 = vpop.permute.xlu0 %952
      %v955 = vsel %vm737, %v951, 0
      %v958 = vsel %vm737, %v953, 0
      %960 = vmatprep.subr.bf16.mxu0 0
      %961 = vmatpush1.bf16.xpose.msra.mxu0 0
      %962 = vmatprep.subr.bf16.mxu0 0
      %963 = vmatpush1.bf16.xpose.msra.mxu0 0
      %964 = vmatprep.subr.bf16.mxu0 0
      %965 = vmatpush1.bf16.xpose.msra.mxu0 0
      %966 = vmatprep.subr.bf16.mxu0 0
      %967 = vmatpush1.bf16.xpose.msra.mxu0 0
      %968 = vmatprep.subr.bf16.mxu0 0
      %969 = vmatpush1.bf16.xpose.msra.mxu0 0
      %970 = vmatprep.subr.bf16.mxu0 0
      %971 = vmatpush1.bf16.xpose.msra.mxu0 0
      %972 = vmatprep.subr.bf16.mxu0 0
      %973 = vmatpush1.bf16.xpose.msra.mxu0 0
      %974 = vmatprep.subr.bf16.mxu0 0
      %975 = vmatpush1.bf16.xpose.msra.mxu0 %v958
      %976 = vmatprep.subr.bf16.mxu0 0
      %977 = vmatpush2.bf16.xpose.msra.mxu0 0
      %978 = vmatprep.subr.bf16.mxu0 0
      %979 = vmatpush2.bf16.xpose.msra.mxu0 0
      %980 = vmatprep.subr.bf16.mxu0 0
      %981 = vmatpush2.bf16.xpose.msra.mxu0 0
      %982 = vmatprep.subr.bf16.mxu0 0
      %983 = vmatpush2.bf16.xpose.msra.mxu0 0
      %984 = vmatprep.subr.bf16.mxu0 0
      %985 = vmatpush2.bf16.xpose.msra.mxu0 0
      %986 = vmatprep.subr.bf16.mxu0 0
      %987 = vmatpush2.bf16.xpose.msra.mxu0 0
      %988 = vmatprep.subr.bf16.mxu0 0
      %989 = vmatpush2.bf16.xpose.msra.mxu0 0
      %990 = vmatprep.subr.bf16.mxu0 0
      %991 = vmatpush2.bf16.xpose.msra.mxu0 0
      %992 = vmatprep.mubr.bf16.mxu0 0
      %993 = vmatmul.mubr.bf16.gmra.mxu0 %v955
      %v994 = vpop.f32.mrf.mxu0
      %v995 = vadd.f32 0.0, %v994
      %v996 = vpop.f32.mrf.mxu0
      %v997 = vpop.f32.mrf.mxu0
      %v998 = vpop.f32.mrf.mxu0
      %999 = vdwg.mxu0
      %v1000 = vsel %vm737, %v995, -inf
      %1001 = vmax.xlane.f32.xlu0 %v1000
      %v1002 = vpop.xlane.xlu0 %1001
      %v1003 = vsub.f32 %v995, %v1002
      %v1004 = vmul.f32 %v1003, 1.442695
      %v1005 = vpow.pop %v1004
      %v1006 = vsel %vm737, %v1005, 0.0
      %1007 = vadd.xlane.f32.xlu0 %v1006
      %v1008 = vpop.xlane.xlu0 %1007
      %v1009 = vrcp.pop %v1008
      %v1010 = vmul.f32 %v1005, %v1009
      %v1011 = vpack.c.bf16 %v1010, %v1010
      %1012 = vrot.lane.b32.xlu0 %v736, 96
      %v1013 = vpop.permute.xlu0 %1012
      %v1016 = vsel %vm737, %v1011, 0
      %1018 = vmatprep.subr.bf16.mxu0 0
      %1019 = vmatpush1.bf16.msra.mxu0 0
      %1020 = vmatprep.subr.bf16.mxu0 0
      %1021 = vmatpush1.bf16.msra.mxu0 0
      %1022 = vmatprep.subr.bf16.mxu0 0
      %1023 = vmatpush1.bf16.msra.mxu0 0
      %1024 = vmatprep.subr.bf16.mxu0 0
      %1025 = vmatpush1.bf16.msra.mxu0 0
      %1026 = vmatprep.subr.bf16.mxu0 0
      %1027 = vmatpush1.bf16.msra.mxu0 0
      %1028 = vmatprep.subr.bf16.mxu0 0
      %1029 = vmatpush1.bf16.msra.mxu0 0
      %1030 = vmatprep.subr.bf16.mxu0 0
      %1031 = vmatpush1.bf16.msra.mxu0 0
      %1032 = vmatprep.subr.bf16.mxu0 0
      %1033 = vmatpush1.bf16.msra.mxu0 %v1013
      %1034 = vmatprep.subr.bf16.mxu0 0
      %1035 = vmatpush2.bf16.msra.mxu0 0
      %1036 = vmatprep.subr.bf16.mxu0 0
      %1037 = vmatpush2.bf16.msra.mxu0 0
      %1038 = vmatprep.subr.bf16.mxu0 0
      %1039 = vmatpush2.bf16.msra.mxu0 0
      %1040 = vmatprep.subr.bf16.mxu0 0
      %1041 = vmatpush2.bf16.msra.mxu0 0
      %1042 = vmatprep.subr.bf16.mxu0 0
      %1043 = vmatpush2.bf16.msra.mxu0 0
      %1044 = vmatprep.subr.bf16.mxu0 0
      %1045 = vmatpush2.bf16.msra.mxu0 0
      %1046 = vmatprep.subr.bf16.mxu0 0
      %1047 = vmatpush2.bf16.msra.mxu0 0
      %1048 = vmatprep.subr.bf16.mxu0 0
      %1049 = vmatpush2.bf16.msra.mxu0 0
      %1050 = vmatprep.mubr.bf16.mxu0 0
      %1051 = vmatmul.mubr.bf16.gmra.mxu0 %v1016
      %v1052 = vpop.f32.mrf.mxu0
      %v1053 = vadd.f32 0.0, %v1052
      %v1054 = vpop.f32.mrf.mxu0
      %v1055 = vpop.f32.mrf.mxu0
      %v1056 = vpop.f32.mrf.mxu0
      %1057 = vdwg.mxu0
      %1058 = vrot.lane.b32.xlu0 %v734, 80
      %v1059 = vpop.permute.xlu0 %1058
      %1060 = vrot.lane.b32.xlu0 %v735, 80
      %v1061 = vpop.permute.xlu0 %1060
      %v1063 = vsel %vm737, %v1059, 0
      %v1066 = vsel %vm737, %v1061, 0
      %1068 = vmatprep.subr.bf16.mxu0 0
      %1069 = vmatpush1.bf16.xpose.msra.mxu0 0
      %1070 = vmatprep.subr.bf16.mxu0 0
      %1071 = vmatpush1.bf16.xpose.msra.mxu0 0
      %1072 = vmatprep.subr.bf16.mxu0 0
      %1073 = vmatpush1.bf16.xpose.msra.mxu0 0
      %1074 = vmatprep.subr.bf16.mxu0 0
      %1075 = vmatpush1.bf16.xpose.msra.mxu0 0
      %1076 = vmatprep.subr.bf16.mxu0 0
      %1077 = vmatpush1.bf16.xpose.msra.mxu0 0
      %1078 = vmatprep.subr.bf16.mxu0 0
      %1079 = vmatpush1.bf16.xpose.msra.mxu0 0
      %1080 = vmatprep.subr.bf16.mxu0 0
      %1081 = vmatpush1.bf16.xpose.msra.mxu0 0
      %1082 = vmatprep.subr.bf16.mxu0 0
      %1083 = vmatpush1.bf16.xpose.msra.mxu0 %v1066
      %1084 = vmatprep.subr.bf16.mxu0 0
      %1085 = vmatpush2.bf16.xpose.msra.mxu0 0
      %1086 = vmatprep.subr.bf16.mxu0 0
      %1087 = vmatpush2.bf16.xpose.msra.mxu0 0
      %1088 = vmatprep.subr.bf16.mxu0 0
      %1089 = vmatpush2.bf16.xpose.msra.mxu0 0
      %1090 = vmatprep.subr.bf16.mxu0 0
      %1091 = vmatpush2.bf16.xpose.msra.mxu0 0
      %1092 = vmatprep.subr.bf16.mxu0 0
      %1093 = vmatpush2.bf16.xpose.msra.mxu0 0
      %1094 = vmatprep.subr.bf16.mxu0 0
      %1095 = vmatpush2.bf16.xpose.msra.mxu0 0
      %1096 = vmatprep.subr.bf16.mxu0 0
      %1097 = vmatpush2.bf16.xpose.msra.mxu0 0
      %1098 = vmatprep.subr.bf16.mxu0 0
      %1099 = vmatpush2.bf16.xpose.msra.mxu0 0
      %1100 = vmatprep.mubr.bf16.mxu0 0
      %1101 = vmatmul.mubr.bf16.gmra.mxu0 %v1063
      %v1102 = vpop.f32.mrf.mxu0
      %v1103 = vadd.f32 0.0, %v1102
      %v1104 = vpop.f32.mrf.mxu0
      %v1105 = vpop.f32.mrf.mxu0
      %v1106 = vpop.f32.mrf.mxu0
      %1107 = vdwg.mxu0
      %v1108 = vsel %vm737, %v1103, -inf
      %1109 = vmax.xlane.f32.xlu0 %v1108
      %v1110 = vpop.xlane.xlu0 %1109
      %v1111 = vsub.f32 %v1103, %v1110
      %v1112 = vmul.f32 %v1111, 1.442695
      %v1113 = vpow.pop %v1112
      %v1114 = vsel %vm737, %v1113, 0.0
      %1115 = vadd.xlane.f32.xlu0 %v1114
      %v1116 = vpop.xlane.xlu0 %1115
      %v1117 = vrcp.pop %v1116
      %v1118 = vmul.f32 %v1113, %v1117
      %v1119 = vpack.c.bf16 %v1118, %v1118
      %1120 = vrot.lane.b32.xlu0 %v736, 80
      %v1121 = vpop.permute.xlu0 %1120
      %v1124 = vsel %vm737, %v1119, 0
      %1126 = vmatprep.subr.bf16.mxu0 0
      %1127 = vmatpush1.bf16.msra.mxu0 0
      %1128 = vmatprep.subr.bf16.mxu0 0
      %1129 = vmatpush1.bf16.msra.mxu0 0
      %1130 = vmatprep.subr.bf16.mxu0 0
      %1131 = vmatpush1.bf16.msra.mxu0 0
      %1132 = vmatprep.subr.bf16.mxu0 0
      %1133 = vmatpush1.bf16.msra.mxu0 0
      %1134 = vmatprep.subr.bf16.mxu0 0
      %1135 = vmatpush1.bf16.msra.mxu0 0
      %1136 = vmatprep.subr.bf16.mxu0 0
      %1137 = vmatpush1.bf16.msra.mxu0 0
      %1138 = vmatprep.subr.bf16.mxu0 0
      %1139 = vmatpush1.bf16.msra.mxu0 0
      %1140 = vmatprep.subr.bf16.mxu0 0
      %1141 = vmatpush1.bf16.msra.mxu0 %v1121
      %1142 = vmatprep.subr.bf16.mxu0 0
      %1143 = vmatpush2.bf16.msra.mxu0 0
      %1144 = vmatprep.subr.bf16.mxu0 0
      %1145 = vmatpush2.bf16.msra.mxu0 0
      %1146 = vmatprep.subr.bf16.mxu0 0
      %1147 = vmatpush2.bf16.msra.mxu0 0
      %1148 = vmatprep.subr.bf16.mxu0 0
      %1149 = vmatpush2.bf16.msra.mxu0 0
      %1150 = vmatprep.subr.bf16.mxu0 0
      %1151 = vmatpush2.bf16.msra.mxu0 0
      %1152 = vmatprep.subr.bf16.mxu0 0
      %1153 = vmatpush2.bf16.msra.mxu0 0
      %1154 = vmatprep.subr.bf16.mxu0 0
      %1155 = vmatpush2.bf16.msra.mxu0 0
      %1156 = vmatprep.subr.bf16.mxu0 0
      %1157 = vmatpush2.bf16.msra.mxu0 0
      %1158 = vmatprep.mubr.bf16.mxu0 0
      %1159 = vmatmul.mubr.bf16.gmra.mxu0 %v1124
      %v1160 = vpop.f32.mrf.mxu0
      %v1161 = vadd.f32 0.0, %v1160
      %v1162 = vpop.f32.mrf.mxu0
      %v1163 = vpop.f32.mrf.mxu0
      %v1164 = vpop.f32.mrf.mxu0
      %1165 = vdwg.mxu0
      %1166 = vrot.lane.b32.xlu0 %v734, 64
      %v1167 = vpop.permute.xlu0 %1166
      %1168 = vrot.lane.b32.xlu0 %v735, 64
      %v1169 = vpop.permute.xlu0 %1168
      %v1171 = vsel %vm737, %v1167, 0
      %v1174 = vsel %vm737, %v1169, 0
      %1176 = vmatprep.subr.bf16.mxu0 0
      %1177 = vmatpush1.bf16.xpose.msra.mxu0 0
      %1178 = vmatprep.subr.bf16.mxu0 0
      %1179 = vmatpush1.bf16.xpose.msra.mxu0 0
      %1180 = vmatprep.subr.bf16.mxu0 0
      %1181 = vmatpush1.bf16.xpose.msra.mxu0 0
      %1182 = vmatprep.subr.bf16.mxu0 0
      %1183 = vmatpush1.bf16.xpose.msra.mxu0 0
      %1184 = vmatprep.subr.bf16.mxu0 0
      %1185 = vmatpush1.bf16.xpose.msra.mxu0 0
      %1186 = vmatprep.subr.bf16.mxu0 0
      %1187 = vmatpush1.bf16.xpose.msra.mxu0 0
      %1188 = vmatprep.subr.bf16.mxu0 0
      %1189 = vmatpush1.bf16.xpose.msra.mxu0 0
      %1190 = vmatprep.subr.bf16.mxu0 0
      %1191 = vmatpush1.bf16.xpose.msra.mxu0 %v1174
      %1192 = vmatprep.subr.bf16.mxu0 0
      %1193 = vmatpush2.bf16.xpose.msra.mxu0 0
      %1194 = vmatprep.subr.bf16.mxu0 0
      %1195 = vmatpush2.bf16.xpose.msra.mxu0 0
      %1196 = vmatprep.subr.bf16.mxu0 0
      %1197 = vmatpush2.bf16.xpose.msra.mxu0 0
      %1198 = vmatprep.subr.bf16.mxu0 0
      %1199 = vmatpush2.bf16.xpose.msra.mxu0 0
      %1200 = vmatprep.subr.bf16.mxu0 0
      %1201 = vmatpush2.bf16.xpose.msra.mxu0 0
      %1202 = vmatprep.subr.bf16.mxu0 0
      %1203 = vmatpush2.bf16.xpose.msra.mxu0 0
      %1204 = vmatprep.subr.bf16.mxu0 0
      %1205 = vmatpush2.bf16.xpose.msra.mxu0 0
      %1206 = vmatprep.subr.bf16.mxu0 0
      %1207 = vmatpush2.bf16.xpose.msra.mxu0 0
      %1208 = vmatprep.mubr.bf16.mxu0 0
      %1209 = vmatmul.mubr.bf16.gmra.mxu0 %v1171
      %v1210 = vpop.f32.mrf.mxu0
      %v1211 = vadd.f32 0.0, %v1210
      %v1212 = vpop.f32.mrf.mxu0
      %v1213 = vpop.f32.mrf.mxu0
      %v1214 = vpop.f32.mrf.mxu0
      %1215 = vdwg.mxu0
      %v1216 = vsel %vm737, %v1211, -inf
      %1217 = vmax.xlane.f32.xlu0 %v1216
      %v1218 = vpop.xlane.xlu0 %1217
      %v1219 = vsub.f32 %v1211, %v1218
      %v1220 = vmul.f32 %v1219, 1.442695
      %v1221 = vpow.pop %v1220
      %v1222 = vsel %vm737, %v1221, 0.0
      %1223 = vadd.xlane.f32.xlu0 %v1222
      %v1224 = vpop.xlane.xlu0 %1223
      %v1225 = vrcp.pop %v1224
      %v1226 = vmul.f32 %v1221, %v1225
      %v1227 = vpack.c.bf16 %v1226, %v1226
      %1228 = vrot.lane.b32.xlu0 %v736, 64
      %v1229 = vpop.permute.xlu0 %1228
      %v1232 = vsel %vm737, %v1227, 0
      %1234 = vmatprep.subr.bf16.mxu0 0
      %1235 = vmatpush1.bf16.msra.mxu0 0
      %1236 = vmatprep.subr.bf16.mxu0 0
      %1237 = vmatpush1.bf16.msra.mxu0 0
      %1238 = vmatprep.subr.bf16.mxu0 0
      %1239 = vmatpush1.bf16.msra.mxu0 0
      %1240 = vmatprep.subr.bf16.mxu0 0
      %1241 = vmatpush1.bf16.msra.mxu0 0
      %1242 = vmatprep.subr.bf16.mxu0 0
      %1243 = vmatpush1.bf16.msra.mxu0 0
      %1244 = vmatprep.subr.bf16.mxu0 0
      %1245 = vmatpush1.bf16.msra.mxu0 0
      %1246 = vmatprep.subr.bf16.mxu0 0
      %1247 = vmatpush1.bf16.msra.mxu0 0
      %1248 = vmatprep.subr.bf16.mxu0 0
      %1249 = vmatpush1.bf16.msra.mxu0 %v1229
      %1250 = vmatprep.subr.bf16.mxu0 0
      %1251 = vmatpush2.bf16.msra.mxu0 0
      %1252 = vmatprep.subr.bf16.mxu0 0
      %1253 = vmatpush2.bf16.msra.mxu0 0
      %1254 = vmatprep.subr.bf16.mxu0 0
      %1255 = vmatpush2.bf16.msra.mxu0 0
      %1256 = vmatprep.subr.bf16.mxu0 0
      %1257 = vmatpush2.bf16.msra.mxu0 0
      %1258 = vmatprep.subr.bf16.mxu0 0
      %1259 = vmatpush2.bf16.msra.mxu0 0
      %1260 = vmatprep.subr.bf16.mxu0 0
      %1261 = vmatpush2.bf16.msra.mxu0 0
      %1262 = vmatprep.subr.bf16.mxu0 0
      %1263 = vmatpush2.bf16.msra.mxu0 0
      %1264 = vmatprep.subr.bf16.mxu0 0
      %1265 = vmatpush2.bf16.msra.mxu0 0
      %1266 = vmatprep.mubr.bf16.mxu0 0
      %1267 = vmatmul.mubr.bf16.gmra.mxu0 %v1232
      %v1268 = vpop.f32.mrf.mxu0
      %v1269 = vadd.f32 0.0, %v1268
      %v1270 = vpop.f32.mrf.mxu0
      %v1271 = vpop.f32.mrf.mxu0
      %v1272 = vpop.f32.mrf.mxu0
      %1273 = vdwg.mxu0
      %1274 = vrot.lane.b32.xlu0 %v734, 48
      %v1275 = vpop.permute.xlu0 %1274
      %1276 = vrot.lane.b32.xlu0 %v735, 48
      %v1277 = vpop.permute.xlu0 %1276
      %v1279 = vsel %vm737, %v1275, 0
      %v1282 = vsel %vm737, %v1277, 0
      %1284 = vmatprep.subr.bf16.mxu0 0
      %1285 = vmatpush1.bf16.xpose.msra.mxu0 0
      %1286 = vmatprep.subr.bf16.mxu0 0
      %1287 = vmatpush1.bf16.xpose.msra.mxu0 0
      %1288 = vmatprep.subr.bf16.mxu0 0
      %1289 = vmatpush1.bf16.xpose.msra.mxu0 0
      %1290 = vmatprep.subr.bf16.mxu0 0
      %1291 = vmatpush1.bf16.xpose.msra.mxu0 0
      %1292 = vmatprep.subr.bf16.mxu0 0
      %1293 = vmatpush1.bf16.xpose.msra.mxu0 0
      %1294 = vmatprep.subr.bf16.mxu0 0
      %1295 = vmatpush1.bf16.xpose.msra.mxu0 0
      %1296 = vmatprep.subr.bf16.mxu0 0
      %1297 = vmatpush1.bf16.xpose.msra.mxu0 0
      %1298 = vmatprep.subr.bf16.mxu0 0
      %1299 = vmatpush1.bf16.xpose.msra.mxu0 %v1282
      %1300 = vmatprep.subr.bf16.mxu0 0
      %1301 = vmatpush2.bf16.xpose.msra.mxu0 0
      %1302 = vmatprep.subr.bf16.mxu0 0
      %1303 = vmatpush2.bf16.xpose.msra.mxu0 0
      %1304 = vmatprep.subr.bf16.mxu0 0
      %1305 = vmatpush2.bf16.xpose.msra.mxu0 0
      %1306 = vmatprep.subr.bf16.mxu0 0
      %1307 = vmatpush2.bf16.xpose.msra.mxu0 0
      %1308 = vmatprep.subr.bf16.mxu0 0
      %1309 = vmatpush2.bf16.xpose.msra.mxu0 0
      %1310 = vmatprep.subr.bf16.mxu0 0
      %1311 = vmatpush2.bf16.xpose.msra.mxu0 0
      %1312 = vmatprep.subr.bf16.mxu0 0
      %1313 = vmatpush2.bf16.xpose.msra.mxu0 0
      %1314 = vmatprep.subr.bf16.mxu0 0
      %1315 = vmatpush2.bf16.xpose.msra.mxu0 0
      %1316 = vmatprep.mubr.bf16.mxu0 0
      %1317 = vmatmul.mubr.bf16.gmra.mxu0 %v1279
      %v1318 = vpop.f32.mrf.mxu0
      %v1319 = vadd.f32 0.0, %v1318
      %v1320 = vpop.f32.mrf.mxu0
      %v1321 = vpop.f32.mrf.mxu0
      %v1322 = vpop.f32.mrf.mxu0
      %1323 = vdwg.mxu0
      %v1324 = vsel %vm737, %v1319, -inf
      %1325 = vmax.xlane.f32.xlu0 %v1324
      %v1326 = vpop.xlane.xlu0 %1325
      %v1327 = vsub.f32 %v1319, %v1326
      %v1328 = vmul.f32 %v1327, 1.442695
      %v1329 = vpow.pop %v1328
      %v1330 = vsel %vm737, %v1329, 0.0
      %1331 = vadd.xlane.f32.xlu0 %v1330
      %v1332 = vpop.xlane.xlu0 %1331
      %v1333 = vrcp.pop %v1332
      %v1334 = vmul.f32 %v1329, %v1333
      %v1335 = vpack.c.bf16 %v1334, %v1334
      %1336 = vrot.lane.b32.xlu0 %v736, 48
      %v1337 = vpop.permute.xlu0 %1336
      %v1340 = vsel %vm737, %v1335, 0
      %1342 = vmatprep.subr.bf16.mxu0 0
      %1343 = vmatpush1.bf16.msra.mxu0 0
      %1344 = vmatprep.subr.bf16.mxu0 0
      %1345 = vmatpush1.bf16.msra.mxu0 0
      %1346 = vmatprep.subr.bf16.mxu0 0
      %1347 = vmatpush1.bf16.msra.mxu0 0
      %1348 = vmatprep.subr.bf16.mxu0 0
      %1349 = vmatpush1.bf16.msra.mxu0 0
      %1350 = vmatprep.subr.bf16.mxu0 0
      %1351 = vmatpush1.bf16.msra.mxu0 0
      %1352 = vmatprep.subr.bf16.mxu0 0
      %1353 = vmatpush1.bf16.msra.mxu0 0
      %1354 = vmatprep.subr.bf16.mxu0 0
      %1355 = vmatpush1.bf16.msra.mxu0 0
      %1356 = vmatprep.subr.bf16.mxu0 0
      %1357 = vmatpush1.bf16.msra.mxu0 %v1337
      %1358 = vmatprep.subr.bf16.mxu0 0
      %1359 = vmatpush2.bf16.msra.mxu0 0
      %1360 = vmatprep.subr.bf16.mxu0 0
      %1361 = vmatpush2.bf16.msra.mxu0 0
      %1362 = vmatprep.subr.bf16.mxu0 0
      %1363 = vmatpush2.bf16.msra.mxu0 0
      %1364 = vmatprep.subr.bf16.mxu0 0
      %1365 = vmatpush2.bf16.msra.mxu0 0
      %1366 = vmatprep.subr.bf16.mxu0 0
      %1367 = vmatpush2.bf16.msra.mxu0 0
      %1368 = vmatprep.subr.bf16.mxu0 0
      %1369 = vmatpush2.bf16.msra.mxu0 0
      %1370 = vmatprep.subr.bf16.mxu0 0
      %1371 = vmatpush2.bf16.msra.mxu0 0
      %1372 = vmatprep.subr.bf16.mxu0 0
      %1373 = vmatpush2.bf16.msra.mxu0 0
      %1374 = vmatprep.mubr.bf16.mxu0 0
      %1375 = vmatmul.mubr.bf16.gmra.mxu0 %v1340
      %v1376 = vpop.f32.mrf.mxu0
      %v1377 = vadd.f32 0.0, %v1376
      %v1378 = vpop.f32.mrf.mxu0
      %v1379 = vpop.f32.mrf.mxu0
      %v1380 = vpop.f32.mrf.mxu0
      %1381 = vdwg.mxu0
      %1382 = vrot.lane.b32.xlu0 %v734, 32
      %v1383 = vpop.permute.xlu0 %1382
      %1384 = vrot.lane.b32.xlu0 %v735, 32
      %v1385 = vpop.permute.xlu0 %1384
      %v1387 = vsel %vm737, %v1383, 0
      %v1390 = vsel %vm737, %v1385, 0
      %1392 = vmatprep.subr.bf16.mxu0 0
      %1393 = vmatpush1.bf16.xpose.msra.mxu0 0
      %1394 = vmatprep.subr.bf16.mxu0 0
      %1395 = vmatpush1.bf16.xpose.msra.mxu0 0
      %1396 = vmatprep.subr.bf16.mxu0 0
      %1397 = vmatpush1.bf16.xpose.msra.mxu0 0
      %1398 = vmatprep.subr.bf16.mxu0 0
      %1399 = vmatpush1.bf16.xpose.msra.mxu0 0
      %1400 = vmatprep.subr.bf16.mxu0 0
      %1401 = vmatpush1.bf16.xpose.msra.mxu0 0
      %1402 = vmatprep.subr.bf16.mxu0 0
      %1403 = vmatpush1.bf16.xpose.msra.mxu0 0
      %1404 = vmatprep.subr.bf16.mxu0 0
      %1405 = vmatpush1.bf16.xpose.msra.mxu0 0
      %1406 = vmatprep.subr.bf16.mxu0 0
      %1407 = vmatpush1.bf16.xpose.msra.mxu0 %v1390
      %1408 = vmatprep.subr.bf16.mxu0 0
      %1409 = vmatpush2.bf16.xpose.msra.mxu0 0
      %1410 = vmatprep.subr.bf16.mxu0 0
      %1411 = vmatpush2.bf16.xpose.msra.mxu0 0
      %1412 = vmatprep.subr.bf16.mxu0 0
      %1413 = vmatpush2.bf16.xpose.msra.mxu0 0
      %1414 = vmatprep.subr.bf16.mxu0 0
      %1415 = vmatpush2.bf16.xpose.msra.mxu0 0
      %1416 = vmatprep.subr.bf16.mxu0 0
      %1417 = vmatpush2.bf16.xpose.msra.mxu0 0
      %1418 = vmatprep.subr.bf16.mxu0 0
      %1419 = vmatpush2.bf16.xpose.msra.mxu0 0
      %1420 = vmatprep.subr.bf16.mxu0 0
      %1421 = vmatpush2.bf16.xpose.msra.mxu0 0
      %1422 = vmatprep.subr.bf16.mxu0 0
      %1423 = vmatpush2.bf16.xpose.msra.mxu0 0
      %1424 = vmatprep.mubr.bf16.mxu0 0
      %1425 = vmatmul.mubr.bf16.gmra.mxu0 %v1387
      %v1426 = vpop.f32.mrf.mxu0
      %v1427 = vadd.f32 0.0, %v1426
      %v1428 = vpop.f32.mrf.mxu0
      %v1429 = vpop.f32.mrf.mxu0
      %v1430 = vpop.f32.mrf.mxu0
      %1431 = vdwg.mxu0
      %v1432 = vsel %vm737, %v1427, -inf
      %1433 = vmax.xlane.f32.xlu0 %v1432
      %v1434 = vpop.xlane.xlu0 %1433
      %v1435 = vsub.f32 %v1427, %v1434
      %v1436 = vmul.f32 %v1435, 1.442695
      %v1437 = vpow.pop %v1436
      %v1438 = vsel %vm737, %v1437, 0.0
      %1439 = vadd.xlane.f32.xlu0 %v1438
      %v1440 = vpop.xlane.xlu0 %1439
      %v1441 = vrcp.pop %v1440
      %v1442 = vmul.f32 %v1437, %v1441
      %v1443 = vpack.c.bf16 %v1442, %v1442
      %1444 = vrot.lane.b32.xlu0 %v736, 32
      %v1445 = vpop.permute.xlu0 %1444
      %v1448 = vsel %vm737, %v1443, 0
      %1450 = vmatprep.subr.bf16.mxu0 0
      %1451 = vmatpush1.bf16.msra.mxu0 0
      %1452 = vmatprep.subr.bf16.mxu0 0
      %1453 = vmatpush1.bf16.msra.mxu0 0
      %1454 = vmatprep.subr.bf16.mxu0 0
      %1455 = vmatpush1.bf16.msra.mxu0 0
      %1456 = vmatprep.subr.bf16.mxu0 0
      %1457 = vmatpush1.bf16.msra.mxu0 0
      %1458 = vmatprep.subr.bf16.mxu0 0
      %1459 = vmatpush1.bf16.msra.mxu0 0
      %1460 = vmatprep.subr.bf16.mxu0 0
      %1461 = vmatpush1.bf16.msra.mxu0 0
      %1462 = vmatprep.subr.bf16.mxu0 0
      %1463 = vmatpush1.bf16.msra.mxu0 0
      %1464 = vmatprep.subr.bf16.mxu0 0
      %1465 = vmatpush1.bf16.msra.mxu0 %v1445
      %1466 = vmatprep.subr.bf16.mxu0 0
      %1467 = vmatpush2.bf16.msra.mxu0 0
      %1468 = vmatprep.subr.bf16.mxu0 0
      %1469 = vmatpush2.bf16.msra.mxu0 0
      %1470 = vmatprep.subr.bf16.mxu0 0
      %1471 = vmatpush2.bf16.msra.mxu0 0
      %1472 = vmatprep.subr.bf16.mxu0 0
      %1473 = vmatpush2.bf16.msra.mxu0 0
      %1474 = vmatprep.subr.bf16.mxu0 0
      %1475 = vmatpush2.bf16.msra.mxu0 0
      %1476 = vmatprep.subr.bf16.mxu0 0
      %1477 = vmatpush2.bf16.msra.mxu0 0
      %1478 = vmatprep.subr.bf16.mxu0 0
      %1479 = vmatpush2.bf16.msra.mxu0 0
      %1480 = vmatprep.subr.bf16.mxu0 0
      %1481 = vmatpush2.bf16.msra.mxu0 0
      %1482 = vmatprep.mubr.bf16.mxu0 0
      %1483 = vmatmul.mubr.bf16.gmra.mxu0 %v1448
      %v1484 = vpop.f32.mrf.mxu0
      %v1485 = vadd.f32 0.0, %v1484
      %v1486 = vpop.f32.mrf.mxu0
      %v1487 = vpop.f32.mrf.mxu0
      %v1488 = vpop.f32.mrf.mxu0
      %1489 = vdwg.mxu0
      %1490 = vrot.lane.b32.xlu0 %v734, 16
      %v1491 = vpop.permute.xlu0 %1490
      %1492 = vrot.lane.b32.xlu0 %v735, 16
      %v1493 = vpop.permute.xlu0 %1492
      %v1495 = vsel %vm737, %v1491, 0
      %v1498 = vsel %vm737, %v1493, 0
      %1500 = vmatprep.subr.bf16.mxu0 0
      %1501 = vmatpush1.bf16.xpose.msra.mxu0 0
      %1502 = vmatprep.subr.bf16.mxu0 0
      %1503 = vmatpush1.bf16.xpose.msra.mxu0 0
      %1504 = vmatprep.subr.bf16.mxu0 0
      %1505 = vmatpush1.bf16.xpose.msra.mxu0 0
      %1506 = vmatprep.subr.bf16.mxu0 0
      %1507 = vmatpush1.bf16.xpose.msra.mxu0 0
      %1508 = vmatprep.subr.bf16.mxu0 0
      %1509 = vmatpush1.bf16.xpose.msra.mxu0 0
      %1510 = vmatprep.subr.bf16.mxu0 0
      %1511 = vmatpush1.bf16.xpose.msra.mxu0 0
      %1512 = vmatprep.subr.bf16.mxu0 0
      %1513 = vmatpush1.bf16.xpose.msra.mxu0 0
      %1514 = vmatprep.subr.bf16.mxu0 0
      %1515 = vmatpush1.bf16.xpose.msra.mxu0 %v1498
      %1516 = vmatprep.subr.bf16.mxu0 0
      %1517 = vmatpush2.bf16.xpose.msra.mxu0 0
      %1518 = vmatprep.subr.bf16.mxu0 0
      %1519 = vmatpush2.bf16.xpose.msra.mxu0 0
      %1520 = vmatprep.subr.bf16.mxu0 0
      %1521 = vmatpush2.bf16.xpose.msra.mxu0 0
      %1522 = vmatprep.subr.bf16.mxu0 0
      %1523 = vmatpush2.bf16.xpose.msra.mxu0 0
      %1524 = vmatprep.subr.bf16.mxu0 0
      %1525 = vmatpush2.bf16.xpose.msra.mxu0 0
      %1526 = vmatprep.subr.bf16.mxu0 0
      %1527 = vmatpush2.bf16.xpose.msra.mxu0 0
      %1528 = vmatprep.subr.bf16.mxu0 0
      %1529 = vmatpush2.bf16.xpose.msra.mxu0 0
      %1530 = vmatprep.subr.bf16.mxu0 0
      %1531 = vmatpush2.bf16.xpose.msra.mxu0 0
      %1532 = vmatprep.mubr.bf16.mxu0 0
      %1533 = vmatmul.mubr.bf16.gmra.mxu0 %v1495
      %v1534 = vpop.f32.mrf.mxu0
      %v1535 = vadd.f32 0.0, %v1534
      %v1536 = vpop.f32.mrf.mxu0
      %v1537 = vpop.f32.mrf.mxu0
      %v1538 = vpop.f32.mrf.mxu0
      %1539 = vdwg.mxu0
      %v1540 = vsel %vm737, %v1535, -inf
      %1541 = vmax.xlane.f32.xlu0 %v1540
      %v1542 = vpop.xlane.xlu0 %1541
      %v1543 = vsub.f32 %v1535, %v1542
      %v1544 = vmul.f32 %v1543, 1.442695
      %v1545 = vpow.pop %v1544
      %v1546 = vsel %vm737, %v1545, 0.0
      %1547 = vadd.xlane.f32.xlu0 %v1546
      %v1548 = vpop.xlane.xlu0 %1547
      %v1549 = vrcp.pop %v1548
      %v1550 = vmul.f32 %v1545, %v1549
      %v1551 = vpack.c.bf16 %v1550, %v1550
      %1552 = vrot.lane.b32.xlu0 %v736, 16
      %v1553 = vpop.permute.xlu0 %1552
      %v1556 = vsel %vm737, %v1551, 0
      %1558 = vmatprep.subr.bf16.mxu0 0
      %1559 = vmatpush1.bf16.msra.mxu0 0
      %1560 = vmatprep.subr.bf16.mxu0 0
      %1561 = vmatpush1.bf16.msra.mxu0 0
      %1562 = vmatprep.subr.bf16.mxu0 0
      %1563 = vmatpush1.bf16.msra.mxu0 0
      %1564 = vmatprep.subr.bf16.mxu0 0
      %1565 = vmatpush1.bf16.msra.mxu0 0
      %1566 = vmatprep.subr.bf16.mxu0 0
      %1567 = vmatpush1.bf16.msra.mxu0 0
      %1568 = vmatprep.subr.bf16.mxu0 0
      %1569 = vmatpush1.bf16.msra.mxu0 0
      %1570 = vmatprep.subr.bf16.mxu0 0
      %1571 = vmatpush1.bf16.msra.mxu0 0
      %1572 = vmatprep.subr.bf16.mxu0 0
      %1573 = vmatpush1.bf16.msra.mxu0 %v1553
      %1574 = vmatprep.subr.bf16.mxu0 0
      %1575 = vmatpush2.bf16.msra.mxu0 0
      %1576 = vmatprep.subr.bf16.mxu0 0
      %1577 = vmatpush2.bf16.msra.mxu0 0
      %1578 = vmatprep.subr.bf16.mxu0 0
      %1579 = vmatpush2.bf16.msra.mxu0 0
      %1580 = vmatprep.subr.bf16.mxu0 0
      %1581 = vmatpush2.bf16.msra.mxu0 0
      %1582 = vmatprep.subr.bf16.mxu0 0
      %1583 = vmatpush2.bf16.msra.mxu0 0
      %1584 = vmatprep.subr.bf16.mxu0 0
      %1585 = vmatpush2.bf16.msra.mxu0 0
      %1586 = vmatprep.subr.bf16.mxu0 0
      %1587 = vmatpush2.bf16.msra.mxu0 0
      %1588 = vmatprep.subr.bf16.mxu0 0
      %1589 = vmatpush2.bf16.msra.mxu0 0
      %1590 = vmatprep.mubr.bf16.mxu0 0
      %1591 = vmatmul.mubr.bf16.gmra.mxu0 %v1556
      %v1592 = vpop.f32.mrf.mxu0
      %v1593 = vadd.f32 0.0, %v1592
      %v1594 = vpop.f32.mrf.mxu0
      %v1595 = vpop.f32.mrf.mxu0
      %v1596 = vpop.f32.mrf.mxu0
      %1597 = vdwg.mxu0
      %1599 = vrot.lane.b32.xlu0 %v945, 16
      %v1600 = vpop.permute.xlu0 %1599
      %1603 = vrot.lane.b32.xlu0 %v1053, 32
      %v1604 = vpop.permute.xlu0 %1603
      %1607 = vrot.lane.b32.xlu0 %v1161, 48
      %v1608 = vpop.permute.xlu0 %1607
      %1611 = vrot.lane.b32.xlu0 %v1269, 64
      %v1612 = vpop.permute.xlu0 %1611
      %1615 = vrot.lane.b32.xlu0 %v1377, 80
      %v1616 = vpop.permute.xlu0 %1615
      %1619 = vrot.lane.b32.xlu0 %v1485, 96
      %v1620 = vpop.permute.xlu0 %1619
      %1623 = vrot.lane.b32.xlu0 %v1593, 112
      %v1624 = vpop.permute.xlu0 %1623
      %v1626 = vsel %vm737, %v834, %v1600
      %vm1627 = vcmask 261120
      %v1628 = vsel %vm1627, %v1626, %v1604
      %vm1629 = vcmask 392192
      %v1630 = vsel %vm1629, %v1628, %v1608
      %vm1631 = vcmask 523264
      %v1632 = vsel %vm1631, %v1630, %v1612
      %vm1633 = vcmask 654336
      %v1634 = vsel %vm1633, %v1632, %v1616
      %vm1635 = vcmask 785408
      %v1636 = vsel %vm1635, %v1634, %v1620
      %vm1637 = vcmask 916480
      %v1638 = vsel %vm1637, %v1636, %v1624
      %1639 = vst [vmem:[#allocation2] sm:$0xff] %v1638
      %v1640 = vld [vmem:[#allocation2] sm:$0xff]
      %v1641 = vpack.c.bf16 %v1640, %v1640
      %v1643 = vlaneseq
      %v1644 = vshrl.u32 %v1643, 7
      %v1645 = vsub.s32 0, %v1644
      %v1646 = vrot.slane %v448, %v1645
      %v1664 = vunpack.c.l.b16 %v429
      %v1665 = vunpack.c.l.b16 %v430
      %v1666 = vunpack.c.l.b16 %v431
      %v1667 = vunpack.c.l.b16 %v432
      %v1668 = vunpack.c.l.b16 %v433
      %v1669 = vunpack.c.l.b16 %v434
      %v1670 = vunpack.c.l.b16 %v435
      %v1671 = vunpack.c.l.b16 %v436
      %v1672 = vunpack.c.l.b16 %v437
      %v1673 = vunpack.c.l.b16 %v438
      %v1674 = vunpack.c.l.b16 %v439
      %v1675 = vunpack.c.l.b16 %v440
      %v1676 = vunpack.c.l.b16 %v441
      %v1677 = vunpack.c.l.b16 %v442
      %v1678 = vunpack.c.l.b16 %v443
      %v1679 = vunpack.c.l.b16 %v444
      %v1680 = vpack.c.b16 %v1665, %v1664
      %v1681 = vpack.c.b16 %v1667, %v1666
      %v1682 = vpack.c.b16 %v1669, %v1668
      %v1683 = vpack.c.b16 %v1671, %v1670
      %v1684 = vpack.c.b16 %v1673, %v1672
      %v1685 = vpack.c.b16 %v1675, %v1674
      %v1686 = vpack.c.b16 %v1677, %v1676
      %v1687 = vpack.c.b16 %v1679, %v1678
      %1696 = vmatprep.subr.bf16.mxu0 0
      %1697 = vmatpush1.bf16.msra.mxu0 %v1687
      %1698 = vmatprep.subr.bf16.mxu0 0
      %1699 = vmatpush1.bf16.msra.mxu0 %v1686
      %1700 = vmatprep.subr.bf16.mxu0 0
      %1701 = vmatpush1.bf16.msra.mxu0 %v1685
      %1702 = vmatprep.subr.bf16.mxu0 0
      %1703 = vmatpush1.bf16.msra.mxu0 %v1684
      %1704 = vmatprep.subr.bf16.mxu0 0
      %1705 = vmatpush1.bf16.msra.mxu0 %v1683
      %1706 = vmatprep.subr.bf16.mxu0 0
      %1707 = vmatpush1.bf16.msra.mxu0 %v1682
      %1708 = vmatprep.subr.bf16.mxu0 0
      %1709 = vmatpush1.bf16.msra.mxu0 %v1681
      %1710 = vmatprep.subr.bf16.mxu0 0
      %1711 = vmatpush1.bf16.msra.mxu0 %v1680
      %1712 = vmatprep.subr.bf16.mxu0 0
      %1713 = vmatpush2.bf16.msra.mxu0 0
      %1714 = vmatprep.subr.bf16.mxu0 0
      %1715 = vmatpush2.bf16.msra.mxu0 0
      %1716 = vmatprep.subr.bf16.mxu0 0
      %1717 = vmatpush2.bf16.msra.mxu0 0
      %1718 = vmatprep.subr.bf16.mxu0 0
      %1719 = vmatpush2.bf16.msra.mxu0 0
      %1720 = vmatprep.subr.bf16.mxu0 0
      %1721 = vmatpush2.bf16.msra.mxu0 0
      %1722 = vmatprep.subr.bf16.mxu0 0
      %1723 = vmatpush2.bf16.msra.mxu0 0
      %1724 = vmatprep.subr.bf16.mxu0 0
      %1725 = vmatpush2.bf16.msra.mxu0 0
      %1726 = vmatprep.subr.bf16.mxu0 0
      %1727 = vmatpush2.bf16.msra.mxu0 0
      %1728 = vmatprep.mubr.bf16.mxu0 0
      %1729 = vmatmul.mubr.bf16.gmra.mxu0 %v1641
      %v1730 = vpop.f32.mrf.mxu0
      %v1731 = vadd.f32 %v1646, %v1730
      %v1732 = vpop.f32.mrf.mxu0
      %v1733 = vpop.f32.mrf.mxu0
      %v1734 = vpop.f32.mrf.mxu0
      %1735 = vdwg.mxu0
      %1736 = vst [vmem:[%s374] sm:$0xff] %v1731
      %p1737 = scmp.lt.s32.totalorder %s21, 1
      %s1738 = scalar_select %p1737, %s21, 1
      %s1739 = smul.addr %s1738, 8
      %s1740 = scalar_lea.vmem %s10, %s1739
      // Predicated region
      $region61: #{coattention_forward.3} parent=59 // pred_check
        %p1741 = pneg %p259
      $region62: #{coattention_forward.3} parent=59 // pred_check_branch
        %1743 = sbr.rel (%p1741) target = $region64
      $region63: #{coattention_forward.3} parent=59 // pred_region
        _
      $region64: #{coattention_forward.3} parent=59 // pred_fallthru
        _
    $region60: #{coattention_forward.3} parent=5 // pred_fallthru
      _
    %p1744 = scmp.le.s32.totalorder 2, %s16
    // Predicated region
    $region65: #{coattention_forward.3} parent=5 // pred_check
      %p1745 = pneg %p1744
    $region66: #{coattention_forward.3} parent=5 // pred_check_branch
      %1747 = sbr.rel (%p1745) target = $region68
    $region67: #{coattention_forward.3} parent=5 // pred_region
      %s1748 = ssub.s32 %s16, 2
      // Predicated region
      $region69: #{coattention_forward.3} parent=67 // pred_check
        %p1749 = pneg %p265
      $region70: #{coattention_forward.3} parent=67 // pred_check_branch
        %1751 = sbr.rel (%p1749) target = $region72
      $region71: #{coattention_forward.3} parent=67 // pred_region
        %p1752 = scmp.lt.s32.totalorder %s22, 1
        %s1753 = scalar_select %p1752, %s22, 1
        %s1754 = smul.addr %s1753, 8
        %s1755 = scalar_lea.vmem %s10, %s1754
      $region72: #{coattention_forward.3} parent=67 // pred_fallthru
        _
    $region68: #{coattention_forward.3} parent=5 // pred_fallthru
      _
  $region6: #{coattention_forward.3} parent=0 // loop_footer
    %s20 = sadd.s32 1, %s16
  $region7: #{coattention_forward.3} parent=0 // loop_footer_branch
    %15 = sbr.rel target = $region3
  $region8: #{coattention_forward.3} parent=0 // loop_exit
    _

// kernel: coattention_forward.4
$region0: #{coattention_forward.4}
  #allocation0 [shape = 'u32[]', space=smem, size = 0x4, offset = 0x4, fixed_abs, tag = 'smem constant byte address 0x4 - core index']
  #allocation1 [shape = 'u32[144,128]{1,0:T(1,128)}', space=vmem, size = 0x12000, scoped, tag = 'internal scratch']
  #allocation2 [shape = 'f32[16,128]{1,0:T(8,128)}', space=vmem, size = 0x2000, scoped, tag = 'scratch operand']
  %s0 = inlined_call_operand.vmem [shape: f32[2,16,128], index: 0, kind: input, shape index: {}]
  %s1 = inlined_call_operand.vmem [shape: f32[2,8,128], index: 1, kind: input, shape index: {}]
  %s2 = inlined_call_operand.vmem [shape: bf16[128,128], index: 2, kind: input, shape index: {}]
  %s3 = inlined_call_operand.vmem [shape: f32[1,128], index: 3, kind: input, shape index: {}]
  %s4 = inlined_call_operand.vmem [shape: bf16[128,128], index: 4, kind: input, shape index: {}]
  %s5 = inlined_call_operand.vmem [shape: f32[1,128], index: 5, kind: input, shape index: {}]
  %s6 = inlined_call_operand.vmem [shape: bf16[128,128], index: 6, kind: input, shape index: {}]
  %s7 = inlined_call_operand.vmem [shape: f32[1,128], index: 7, kind: input, shape index: {}]
  %s8 = inlined_call_operand.vmem [shape: bf16[128,128], index: 8, kind: input, shape index: {}]
  %s9 = inlined_call_operand.vmem [shape: f32[1,128], index: 9, kind: input, shape index: {}]
  %s10 = inlined_call_operand.vmem [shape: f32[2,16,128], index: 10, kind: output, shape index: {}]
  %s11 = sld [smem:[#allocation0]]
  $region73: #{coattention_forward.4} parent=0
    _
  %s13 = ssub.s32 1, %s11
  %s14 = scalar_select 0, %s13, %s11
  loop: start=0, step=1, limit=4
  $region2: #{coattention_forward.4} parent=0 // loop_pre_header
    _
  $region3: #{coattention_forward.4} parent=0 // loop_header
    %s16 = sphi 0, %s20
    %p17 = scmp.ge.s32.totalorder %s16, 4
    %s26 = sphi 0, %s28
    %s29 = sphi 0, %s26
    %s30 = sphi 0, %s29
    %s46 = sphi 0, %s30
    %s52 = sphi 0, %s54
    %s55 = sphi 0, %s52
    %s56 = sphi 0, %s55
    %s72 = sphi 0, %s56
    %s76 = sphi 0, %s76
    %s78 = sphi 0, %s76
    %s79 = sphi 0, %s78
    %s93 = sphi 0, %s79
    %s97 = sphi 0, %s97
    %s99 = sphi 0, %s97
    %s100 = sphi 0, %s99
    %s114 = sphi 0, %s100
    %s118 = sphi 0, %s118
    %s120 = sphi 0, %s118
    %s121 = sphi 0, %s120
    %s135 = sphi 0, %s121
    %s139 = sphi 0, %s139
    %s141 = sphi 0, %s139
    %s142 = sphi 0, %s141
    %s156 = sphi 0, %s142
    %s160 = sphi 0, %s160
    %s162 = sphi 0, %s160
    %s163 = sphi 0, %s162
    %s177 = sphi 0, %s163
    %s181 = sphi 0, %s181
    %s183 = sphi 0, %s181
    %s184 = sphi 0, %s183
    %s198 = sphi 0, %s184
    %s202 = sphi 0, %s202
    %s204 = sphi 0, %s202
    %s205 = sphi 0, %s204
    %s219 = sphi 0, %s205
    %s223 = sphi 0, %s223
    %s225 = sphi 0, %s223
    %s226 = sphi 0, %s225
    %s240 = sphi 0, %s226
    %s246 = sphi 0, %s248
    %s249 = sphi 0, %s246
    %s250 = sphi 0, %s249
    %s266 = sphi 0, %s250
  $region4: #{coattention_forward.4} parent=0 // loop_header_branch
    %19 = sbr.rel (%p17) target = $region8
  $region5: #{coattention_forward.4} parent=0 // loop_body
    %s21 = ssub.s32 %s16, 1
    %s22 = ssub.s32 %s16, 2
    %s23 = sadd.s32 %s16, 1
    %s24 = ssub.s32 %s16, %s23
    %p25 = scmp.eq.s32.totalorder %s24, 0
    %s27 = sadd.s32 %s26, 1
    %s28 = scalar_select %p25, %s26, %s27
    %p31 = pneg %p25
    %p32 = scmp.eq.s32.totalorder %s16, 1
    %p33 = por %p31, %p32
    %p34 = scmp.ne.s32.totalorder %s26, %s29
    %p35 = scmp.eq.s32.totalorder %s16, 0
    %p36 = por %p34, %p35
    %p37 = scmp.ne.s32.totalorder %s26, %s29
    %p38 = scmp.eq.s32.totalorder %s21, 1
    %p39 = por %p37, %p38
    %p40 = scmp.ne.s32.totalorder %s29, %s30
    %p41 = scmp.eq.s32.totalorder %s21, 0
    %p42 = por %p40, %p41
    %p43 = scmp.ne.s32.totalorder %s29, %s30
    %p44 = scmp.eq.s32.totalorder %s22, 1
    %p45 = por %p43, %p44
    %p47 = scmp.ne.s32.totalorder %s30, %s46
    %p48 = scmp.eq.s32.totalorder %s22, 0
    %p49 = por %p47, %p48
    %s50 = ssub.s32 %s16, %s23
    %p51 = scmp.eq.s32.totalorder %s50, 0
    %s53 = sadd.s32 %s52, 1
    %s54 = scalar_select %p51, %s52, %s53
    %p57 = pneg %p51
    %p58 = scmp.eq.s32.totalorder %s16, 1
    %p59 = por %p57, %p58
    %p60 = scmp.ne.s32.totalorder %s52, %s55
    %p61 = scmp.eq.s32.totalorder %s16, 0
    %p62 = por %p60, %p61
    %p63 = scmp.ne.s32.totalorder %s52, %s55
    %p64 = scmp.eq.s32.totalorder %s21, 1
    %p65 = por %p63, %p64
    %p66 = scmp.ne.s32.totalorder %s55, %s56
    %p67 = scmp.eq.s32.totalorder %s21, 0
    %p68 = por %p66, %p67
    %p69 = scmp.ne.s32.totalorder %s55, %s56
    %p70 = scmp.eq.s32.totalorder %s22, 1
    %p71 = por %p69, %p70
    %p73 = scmp.ne.s32.totalorder %s56, %s72
    %p74 = scmp.eq.s32.totalorder %s22, 0
    %p75 = por %p73, %p74
    %s77 = sadd.s32 %s76, 1
    %p80 = scmp.eq.s32.totalorder %s16, 1
    %p81 = scmp.ne.s32.totalorder %s76, %s78
    %p82 = scmp.eq.s32.totalorder %s16, 0
    %p83 = por %p81, %p82
    %p84 = scmp.ne.s32.totalorder %s76, %s78
    %p85 = scmp.eq.s32.totalorder %s21, 1
    %p86 = por %p84, %p85
    %p87 = scmp.ne.s32.totalorder %s78, %s79
    %p88 = scmp.eq.s32.totalorder %s21, 0
    %p89 = por %p87, %p88
    %p90 = scmp.ne.s32.totalorder %s78, %s79
    %p91 = scmp.eq.s32.totalorder %s22, 1
    %p92 = por %p90, %p91
    %p94 = scmp.ne.s32.totalorder %s79, %s93
    %p95 = scmp.eq.s32.totalorder %s22, 0
    %p96 = por %p94, %p95
    %s98 = sadd.s32 %s97, 1
    %p101 = scmp.eq.s32.totalorder %s16, 1
    %p102 = scmp.ne.s32.totalorder %s97, %s99
    %p103 = scmp.eq.s32.totalorder %s16, 0
    %p104 = por %p102, %p103
    %p105 = scmp.ne.s32.totalorder %s97, %s99
    %p106 = scmp.eq.s32.totalorder %s21, 1
    %p107 = por %p105, %p106
    %p108 = scmp.ne.s32.totalorder %s99, %s100
    %p109 = scmp.eq.s32.totalorder %s21, 0
    %p110 = por %p108, %p109
    %p111 = scmp.ne.s32.totalorder %s99, %s100
    %p112 = scmp.eq.s32.totalorder %s22, 1
    %p113 = por %p111, %p112
    %p115 = scmp.ne.s32.totalorder %s100, %s114
    %p116 = scmp.eq.s32.totalorder %s22, 0
    %p117 = por %p115, %p116
    %s119 = sadd.s32 %s118, 1
    %p122 = scmp.eq.s32.totalorder %s16, 1
    %p123 = scmp.ne.s32.totalorder %s118, %s120
    %p124 = scmp.eq.s32.totalorder %s16, 0
    %p125 = por %p123, %p124
    %p126 = scmp.ne.s32.totalorder %s118, %s120
    %p127 = scmp.eq.s32.totalorder %s21, 1
    %p128 = por %p126, %p127
    %p129 = scmp.ne.s32.totalorder %s120, %s121
    %p130 = scmp.eq.s32.totalorder %s21, 0
    %p131 = por %p129, %p130
    %p132 = scmp.ne.s32.totalorder %s120, %s121
    %p133 = scmp.eq.s32.totalorder %s22, 1
    %p134 = por %p132, %p133
    %p136 = scmp.ne.s32.totalorder %s121, %s135
    %p137 = scmp.eq.s32.totalorder %s22, 0
    %p138 = por %p136, %p137
    %s140 = sadd.s32 %s139, 1
    %p143 = scmp.eq.s32.totalorder %s16, 1
    %p144 = scmp.ne.s32.totalorder %s139, %s141
    %p145 = scmp.eq.s32.totalorder %s16, 0
    %p146 = por %p144, %p145
    %p147 = scmp.ne.s32.totalorder %s139, %s141
    %p148 = scmp.eq.s32.totalorder %s21, 1
    %p149 = por %p147, %p148
    %p150 = scmp.ne.s32.totalorder %s141, %s142
    %p151 = scmp.eq.s32.totalorder %s21, 0
    %p152 = por %p150, %p151
    %p153 = scmp.ne.s32.totalorder %s141, %s142
    %p154 = scmp.eq.s32.totalorder %s22, 1
    %p155 = por %p153, %p154
    %p157 = scmp.ne.s32.totalorder %s142, %s156
    %p158 = scmp.eq.s32.totalorder %s22, 0
    %p159 = por %p157, %p158
    %s161 = sadd.s32 %s160, 1
    %p164 = scmp.eq.s32.totalorder %s16, 1
    %p165 = scmp.ne.s32.totalorder %s160, %s162
    %p166 = scmp.eq.s32.totalorder %s16, 0
    %p167 = por %p165, %p166
    %p168 = scmp.ne.s32.totalorder %s160, %s162
    %p169 = scmp.eq.s32.totalorder %s21, 1
    %p170 = por %p168, %p169
    %p171 = scmp.ne.s32.totalorder %s162, %s163
    %p172 = scmp.eq.s32.totalorder %s21, 0
    %p173 = por %p171, %p172
    %p174 = scmp.ne.s32.totalorder %s162, %s163
    %p175 = scmp.eq.s32.totalorder %s22, 1
    %p176 = por %p174, %p175
    %p178 = scmp.ne.s32.totalorder %s163, %s177
    %p179 = scmp.eq.s32.totalorder %s22, 0
    %p180 = por %p178, %p179
    %s182 = sadd.s32 %s181, 1
    %p185 = scmp.eq.s32.totalorder %s16, 1
    %p186 = scmp.ne.s32.totalorder %s181, %s183
    %p187 = scmp.eq.s32.totalorder %s16, 0
    %p188 = por %p186, %p187
    %p189 = scmp.ne.s32.totalorder %s181, %s183
    %p190 = scmp.eq.s32.totalorder %s21, 1
    %p191 = por %p189, %p190
    %p192 = scmp.ne.s32.totalorder %s183, %s184
    %p193 = scmp.eq.s32.totalorder %s21, 0
    %p194 = por %p192, %p193
    %p195 = scmp.ne.s32.totalorder %s183, %s184
    %p196 = scmp.eq.s32.totalorder %s22, 1
    %p197 = por %p195, %p196
    %p199 = scmp.ne.s32.totalorder %s184, %s198
    %p200 = scmp.eq.s32.totalorder %s22, 0
    %p201 = por %p199, %p200
    %s203 = sadd.s32 %s202, 1
    %p206 = scmp.eq.s32.totalorder %s16, 1
    %p207 = scmp.ne.s32.totalorder %s202, %s204
    %p208 = scmp.eq.s32.totalorder %s16, 0
    %p209 = por %p207, %p208
    %p210 = scmp.ne.s32.totalorder %s202, %s204
    %p211 = scmp.eq.s32.totalorder %s21, 1
    %p212 = por %p210, %p211
    %p213 = scmp.ne.s32.totalorder %s204, %s205
    %p214 = scmp.eq.s32.totalorder %s21, 0
    %p215 = por %p213, %p214
    %p216 = scmp.ne.s32.totalorder %s204, %s205
    %p217 = scmp.eq.s32.totalorder %s22, 1
    %p218 = por %p216, %p217
    %p220 = scmp.ne.s32.totalorder %s205, %s219
    %p221 = scmp.eq.s32.totalorder %s22, 0
    %p222 = por %p220, %p221
    %s224 = sadd.s32 %s223, 1
    %p227 = scmp.eq.s32.totalorder %s16, 1
    %p228 = scmp.ne.s32.totalorder %s223, %s225
    %p229 = scmp.eq.s32.totalorder %s16, 0
    %p230 = por %p228, %p229
    %p231 = scmp.ne.s32.totalorder %s223, %s225
    %p232 = scmp.eq.s32.totalorder %s21, 1
    %p233 = por %p231, %p232
    %p234 = scmp.ne.s32.totalorder %s225, %s226
    %p235 = scmp.eq.s32.totalorder %s21, 0
    %p236 = por %p234, %p235
    %p237 = scmp.ne.s32.totalorder %s225, %s226
    %p238 = scmp.eq.s32.totalorder %s22, 1
    %p239 = por %p237, %p238
    %p241 = scmp.ne.s32.totalorder %s226, %s240
    %p242 = scmp.eq.s32.totalorder %s22, 0
    %p243 = por %p241, %p242
    %s244 = ssub.s32 %s16, %s23
    %p245 = scmp.eq.s32.totalorder %s244, 0
    %s247 = sadd.s32 %s246, 1
    %s248 = scalar_select %p245, %s246, %s247
    %p251 = pneg %p245
    %p252 = scmp.eq.s32.totalorder %s16, 1
    %p253 = por %p251, %p252
    %p254 = scmp.ne.s32.totalorder %s246, %s249
    %p255 = scmp.eq.s32.totalorder %s16, 0
    %p256 = por %p254, %p255
    %p257 = scmp.ne.s32.totalorder %s246, %s249
    %p258 = scmp.eq.s32.totalorder %s21, 1
    %p259 = por %p257, %p258
    %p260 = scmp.ne.s32.totalorder %s249, %s250
    %p261 = scmp.eq.s32.totalorder %s21, 0
    %p262 = por %p260, %p261
    %p263 = scmp.ne.s32.totalorder %s249, %s250
    %p264 = scmp.eq.s32.totalorder %s22, 1
    %p265 = por %p263, %p264
    %p267 = scmp.ne.s32.totalorder %s250, %s266
    %p268 = scmp.eq.s32.totalorder %s22, 0
    %p269 = por %p267, %p268
    %p270 = scmp.le.s32.totalorder 1, %s16
    %p271 = scmp.lt.s32.totalorder %s16, 3
    %p272 = pnand %p270, %p271
    %p273 = pneg %p272
    // Predicated region
    $region9: #{coattention_forward.4} parent=5 // pred_check
      _
    $region10: #{coattention_forward.4} parent=5 // pred_check_branch
      %275 = sbr.rel (%p272) target = $region12
    $region11: #{coattention_forward.4} parent=5 // pred_region
      %s276 = ssub.s32 %s16, 1
      // Predicated region
      $region13: #{coattention_forward.4} parent=11 // pred_check
        %p277 = pneg %p89
      $region14: #{coattention_forward.4} parent=11 // pred_check_branch
        %279 = sbr.rel (%p277) target = $region16
      $region15: #{coattention_forward.4} parent=11 // pred_region
        _
      $region16: #{coattention_forward.4} parent=11 // pred_fallthru
        _
      // Predicated region
      $region17: #{coattention_forward.4} parent=11 // pred_check
        %p280 = pneg %p110
      $region18: #{coattention_forward.4} parent=11 // pred_check_branch
        %282 = sbr.rel (%p280) target = $region20
      $region19: #{coattention_forward.4} parent=11 // pred_region
        _
      $region20: #{coattention_forward.4} parent=11 // pred_fallthru
        _
      // Predicated region
      $region21: #{coattention_forward.4} parent=11 // pred_check
        %p283 = pneg %p131
      $region22: #{coattention_forward.4} parent=11 // pred_check_branch
        %285 = sbr.rel (%p283) target = $region24
      $region23: #{coattention_forward.4} parent=11 // pred_region
        _
      $region24: #{coattention_forward.4} parent=11 // pred_fallthru
        _
      // Predicated region
      $region25: #{coattention_forward.4} parent=11 // pred_check
        %p286 = pneg %p152
      $region26: #{coattention_forward.4} parent=11 // pred_check_branch
        %288 = sbr.rel (%p286) target = $region28
      $region27: #{coattention_forward.4} parent=11 // pred_region
        _
      $region28: #{coattention_forward.4} parent=11 // pred_fallthru
        _
      // Predicated region
      $region29: #{coattention_forward.4} parent=11 // pred_check
        %p289 = pneg %p173
      $region30: #{coattention_forward.4} parent=11 // pred_check_branch
        %291 = sbr.rel (%p289) target = $region32
      $region31: #{coattention_forward.4} parent=11 // pred_region
        _
      $region32: #{coattention_forward.4} parent=11 // pred_fallthru
        _
      // Predicated region
      $region33: #{coattention_forward.4} parent=11 // pred_check
        %p292 = pneg %p194
      $region34: #{coattention_forward.4} parent=11 // pred_check_branch
        %294 = sbr.rel (%p292) target = $region36
      $region35: #{coattention_forward.4} parent=11 // pred_region
        _
      $region36: #{coattention_forward.4} parent=11 // pred_fallthru
        _
      // Predicated region
      $region37: #{coattention_forward.4} parent=11 // pred_check
        %p295 = pneg %p215
      $region38: #{coattention_forward.4} parent=11 // pred_check_branch
        %297 = sbr.rel (%p295) target = $region40
      $region39: #{coattention_forward.4} parent=11 // pred_region
        _
      $region40: #{coattention_forward.4} parent=11 // pred_fallthru
        _
      // Predicated region
      $region41: #{coattention_forward.4} parent=11 // pred_check
        %p298 = pneg %p236
      $region42: #{coattention_forward.4} parent=11 // pred_check_branch
        %300 = sbr.rel (%p298) target = $region44
      $region43: #{coattention_forward.4} parent=11 // pred_region
        _
      $region44: #{coattention_forward.4} parent=11 // pred_fallthru
        _
    $region12: #{coattention_forward.4} parent=5 // pred_fallthru
      _
    %p301 = scmp.lt.s32.totalorder %s16, 2
    // Predicated region
    $region45: #{coattention_forward.4} parent=5 // pred_check
      %p302 = pneg %p301
    $region46: #{coattention_forward.4} parent=5 // pred_check_branch
      %304 = sbr.rel (%p302) target = $region48
    $region47: #{coattention_forward.4} parent=5 // pred_region
      // Predicated region
      $region49: #{coattention_forward.4} parent=47 // pred_check
        %p305 = pneg %p36
      $region50: #{coattention_forward.4} parent=47 // pred_check_branch
        %307 = sbr.rel (%p305) target = $region52
      $region51: #{coattention_forward.4} parent=47 // pred_region
        %p308 = scmp.lt.s32.totalorder %s16, 1
        %s309 = scalar_select %p308, %s16, 1
        %s310 = smul.addr %s309, 2
        %s311 = smul.addr %s310, 8
        %s312 = scalar_lea.vmem %s0, %s311
      $region52: #{coattention_forward.4} parent=47 // pred_fallthru
        _
      // Predicated region
      $region53: #{coattention_forward.4} parent=47 // pred_check
        %p313 = pneg %p62
      $region54: #{coattention_forward.4} parent=47 // pred_check_branch
        %315 = sbr.rel (%p313) target = $region56
      $region55: #{coattention_forward.4} parent=47 // pred_region
        %p316 = scmp.lt.s32.totalorder %s16, 1
        %s317 = scalar_select %p316, %s16, 1
        %s318 = smul.addr %s317, 8
        %s319 = scalar_lea.vmem %s1, %s318
      $region56: #{coattention_forward.4} parent=47 // pred_fallthru
        _
    $region48: #{coattention_forward.4} parent=5 // pred_fallthru
      _
    %p320 = scmp.le.s32.totalorder 1, %s16
    %p321 = scmp.lt.s32.totalorder %s16, 3
    %p322 = pnand %p320, %p321
    %p323 = pneg %p322
    // Predicated region
    $region57: #{coattention_forward.4} parent=5 // pred_check
      _
    $region58: #{coattention_forward.4} parent=5 // pred_check_branch
      %325 = sbr.rel (%p322) target = $region60
    $region59: #{coattention_forward.4} parent=5 // pred_region
      %s326 = ssub.s32 %s16, 1
      %p327 = scmp.lt.s32.totalorder %s21, 1
      %s328 = scalar_select %p327, %s21, 1
      %s329 = smul.addr %s328, 2
      %s330 = smul.addr %s329, 8
      %s331 = scalar_lea.vmem %s0, %s330
      %p332 = pneg %p42
      %p333 = pneg %p39
      %p334 = scmp.lt.s32.totalorder %s21, 1
      %s335 = scalar_select %p334, %s21, 1
      %s336 = smul.addr %s335, 8
      %s337 = scalar_lea.vmem %s1, %s336
      %p338 = pneg %p68
      %p339 = pneg %p65
      %p340 = pneg %p89
      %p341 = pneg %p86
      %p342 = pneg %p110
      %p343 = pneg %p107
      %p344 = pneg %p131
      %p345 = pneg %p128
      %p346 = pneg %p152
      %p347 = pneg %p149
      %p348 = pneg %p173
      %p349 = pneg %p170
      %p350 = pneg %p194
      %p351 = pneg %p191
      %p352 = pneg %p215
      %p353 = pneg %p212
      %p354 = pneg %p236
      %p355 = pneg %p233
      %p356 = pneg %p262
      %p357 = pneg %p259
      %p358 = scmp.lt.s32.totalorder %s21, 1
      %s359 = scalar_select %p358, %s21, 1
      %s360 = smul.addr %s359, 2
      %s361 = smul.addr %s360, 8
      %s362 = scalar_lea.vmem %s10, %s361
      %p363 = scmp.lt.s32.totalorder %s21, 1
      %s364 = scalar_select %p363, %s21, 1
      %s365 = smul.addr %s364, 2
      %s366 = smul.addr %s365, 8
      %s367 = scalar_lea.vmem %s0, %s366
      %p368 = scmp.lt.s32.totalorder %s21, 1
      %s369 = scalar_select %p368, %s21, 1
      %s370 = smul.addr %s369, 8
      %s371 = scalar_lea.vmem %s1, %s370
      %p372 = scmp.lt.s32.totalorder %s21, 1
      %s373 = scalar_select %p372, %s21, 1
      %s374 = smul.addr %s373, 2
      %s375 = smul.addr %s374, 8
      %s376 = scalar_lea.vmem %s10, %s375
      %v378 = vld [vmem:[%s367] sm:$0xff]
      %v379 = vld [vmem:[%s367 + $0x8] sm:$0xff]
      %v380 = vpack.c.bf16 %v379, %v378
      %v381 = vld [vmem:[%s371] sm:$0xff]
      %v382 = vpack.c.bf16 %v381, %v381
      %v383 = vld [vmem:[%s2] sm:$0xf]
      %v384 = vld [vmem:[%s2 + $0x4] sm:$0xf]
      %v385 = vld [vmem:[%s2 + $0x8] sm:$0xf]
      %v386 = vld [vmem:[%s2 + $0xc] sm:$0xf]
      %v387 = vld [vmem:[%s2 + $0x10] sm:$0xf]
      %v388 = vld [vmem:[%s2 + $0x14] sm:$0xf]
      %v389 = vld [vmem:[%s2 + $0x18] sm:$0xf]
      %v390 = vld [vmem:[%s2 + $0x1c] sm:$0xf]
      %v391 = vld [vmem:[%s2 + $0x20] sm:$0xf]
      %v392 = vld [vmem:[%s2 + $0x24] sm:$0xf]
      %v393 = vld [vmem:[%s2 + $0x28] sm:$0xf]
      %v394 = vld [vmem:[%s2 + $0x2c] sm:$0xf]
      %v395 = vld [vmem:[%s2 + $0x30] sm:$0xf]
      %v396 = vld [vmem:[%s2 + $0x34] sm:$0xf]
      %v397 = vld [vmem:[%s2 + $0x38] sm:$0xf]
      %v398 = vld [vmem:[%s2 + $0x3c] sm:$0xf]
      %v399 = vld [vmem:[%s4] sm:$0xf]
      %v400 = vld [vmem:[%s4 + $0x4] sm:$0xf]
      %v401 = vld [vmem:[%s4 + $0x8] sm:$0xf]
      %v402 = vld [vmem:[%s4 + $0xc] sm:$0xf]
      %v403 = vld [vmem:[%s4 + $0x10] sm:$0xf]
      %v404 = vld [vmem:[%s4 + $0x14] sm:$0xf]
      %v405 = vld [vmem:[%s4 + $0x18] sm:$0xf]
      %v406 = vld [vmem:[%s4 + $0x1c] sm:$0xf]
      %v407 = vld [vmem:[%s4 + $0x20] sm:$0xf]
      %v408 = vld [vmem:[%s4 + $0x24] sm:$0xf]
      %v409 = vld [vmem:[%s4 + $0x28] sm:$0xf]
      %v410 = vld [vmem:[%s4 + $0x2c] sm:$0xf]
      %v411 = vld [vmem:[%s4 + $0x30] sm:$0xf]
      %v412 = vld [vmem:[%s4 + $0x34] sm:$0xf]
      %v413 = vld [vmem:[%s4 + $0x38] sm:$0xf]
      %v414 = vld [vmem:[%s4 + $0x3c] sm:$0xf]
      %v415 = vld [vmem:[%s6] sm:$0xf]
      %v416 = vld [vmem:[%s6 + $0x4] sm:$0xf]
      %v417 = vld [vmem:[%s6 + $0x8] sm:$0xf]
      %v418 = vld [vmem:[%s6 + $0xc] sm:$0xf]
      %v419 = vld [vmem:[%s6 + $0x10] sm:$0xf]
      %v420 = vld [vmem:[%s6 + $0x14] sm:$0xf]
      %v421 = vld [vmem:[%s6 + $0x18] sm:$0xf]
      %v422 = vld [vmem:[%s6 + $0x1c] sm:$0xf]
      %v423 = vld [vmem:[%s6 + $0x20] sm:$0xf]
      %v424 = vld [vmem:[%s6 + $0x24] sm:$0xf]
      %v425 = vld [vmem:[%s6 + $0x28] sm:$0xf]
      %v426 = vld [vmem:[%s6 + $0x2c] sm:$0xf]
      %v427 = vld [vmem:[%s6 + $0x30] sm:$0xf]
      %v428 = vld [vmem:[%s6 + $0x34] sm:$0xf]
      %v429 = vld [vmem:[%s6 + $0x38] sm:$0xf]
      %v430 = vld [vmem:[%s6 + $0x3c] sm:$0xf]
      %v431 = vld [vmem:[%s8] sm:$0xf]
      %v432 = vld [vmem:[%s8 + $0x4] sm:$0xf]
      %v433 = vld [vmem:[%s8 + $0x8] sm:$0xf]
      %v434 = vld [vmem:[%s8 + $0xc] sm:$0xf]
      %v435 = vld [vmem:[%s8 + $0x10] sm:$0xf]
      %v436 = vld [vmem:[%s8 + $0x14] sm:$0xf]
      %v437 = vld [vmem:[%s8 + $0x18] sm:$0xf]
      %v438 = vld [vmem:[%s8 + $0x1c] sm:$0xf]
      %v439 = vld [vmem:[%s8 + $0x20] sm:$0xf]
      %v440 = vld [vmem:[%s8 + $0x24] sm:$0xf]
      %v441 = vld [vmem:[%s8 + $0x28] sm:$0xf]
      %v442 = vld [vmem:[%s8 + $0x2c] sm:$0xf]
      %v443 = vld [vmem:[%s8 + $0x30] sm:$0xf]
      %v444 = vld [vmem:[%s8 + $0x34] sm:$0xf]
      %v445 = vld [vmem:[%s8 + $0x38] sm:$0xf]
      %v446 = vld [vmem:[%s8 + $0x3c] sm:$0xf]
      %v447 = vld [vmem:[%s3] sm:$0x1]
      %v448 = vld [vmem:[%s5] sm:$0x1]
      %v449 = vld [vmem:[%s7] sm:$0x1]
      %v450 = vld [vmem:[%s9] sm:$0x1]
      %v452 = vlaneseq
      %v453 = vshrl.u32 %v452, 7
      %v454 = vsub.s32 0, %v453
      %v455 = vrot.slane %v447, %v454
      %v473 = vunpack.c.l.b16 %v383
      %v474 = vunpack.c.l.b16 %v384
      %v475 = vunpack.c.l.b16 %v385
      %v476 = vunpack.c.l.b16 %v386
      %v477 = vunpack.c.l.b16 %v387
      %v478 = vunpack.c.l.b16 %v388
      %v479 = vunpack.c.l.b16 %v389
      %v480 = vunpack.c.l.b16 %v390
      %v481 = vunpack.c.l.b16 %v391
      %v482 = vunpack.c.l.b16 %v392
      %v483 = vunpack.c.l.b16 %v393
      %v484 = vunpack.c.l.b16 %v394
      %v485 = vunpack.c.l.b16 %v395
      %v486 = vunpack.c.l.b16 %v396
      %v487 = vunpack.c.l.b16 %v397
      %v488 = vunpack.c.l.b16 %v398
      %v489 = vpack.c.b16 %v474, %v473
      %v490 = vpack.c.b16 %v476, %v475
      %v491 = vpack.c.b16 %v478, %v477
      %v492 = vpack.c.b16 %v480, %v479
      %v493 = vpack.c.b16 %v482, %v481
      %v494 = vpack.c.b16 %v484, %v483
      %v495 = vpack.c.b16 %v486, %v485
      %v496 = vpack.c.b16 %v488, %v487
      %505 = vmatprep.subr.bf16.mxu0 0
      %506 = vmatpush1.bf16.msra.mxu0 %v496
      %507 = vmatprep.subr.bf16.mxu0 0
      %508 = vmatpush1.bf16.msra.mxu0 %v495
      %509 = vmatprep.subr.bf16.mxu0 0
      %510 = vmatpush1.bf16.msra.mxu0 %v494
      %511 = vmatprep.subr.bf16.mxu0 0
      %512 = vmatpush1.bf16.msra.mxu0 %v493
      %513 = vmatprep.subr.bf16.mxu0 0
      %514 = vmatpush1.bf16.msra.mxu0 %v492
      %515 = vmatprep.subr.bf16.mxu0 0
      %516 = vmatpush1.bf16.msra.mxu0 %v491
      %517 = vmatprep.subr.bf16.mxu0 0
      %518 = vmatpush1.bf16.msra.mxu0 %v490
      %519 = vmatprep.subr.bf16.mxu0 0
      %520 = vmatpush1.bf16.msra.mxu0 %v489
      %521 = vmatprep.subr.bf16.mxu0 0
      %522 = vmatpush2.bf16.msra.mxu0 0
      %523 = vmatprep.subr.bf16.mxu0 0
      %524 = vmatpush2.bf16.msra.mxu0 0
      %525 = vmatprep.subr.bf16.mxu0 0
      %526 = vmatpush2.bf16.msra.mxu0 0
      %527 = vmatprep.subr.bf16.mxu0 0
      %528 = vmatpush2.bf16.msra.mxu0 0
      %529 = vmatprep.subr.bf16.mxu0 0
      %530 = vmatpush2.bf16.msra.mxu0 0
      %531 = vmatprep.subr.bf16.mxu0 0
      %532 = vmatpush2.bf16.msra.mxu0 0
      %533 = vmatprep.subr.bf16.mxu0 0
      %534 = vmatpush2.bf16.msra.mxu0 0
      %535 = vmatprep.subr.bf16.mxu0 0
      %536 = vmatpush2.bf16.msra.mxu0 0
      %537 = vmatprep.mubr.bf16.mxu0 0
      %538 = vmatmul.mubr.bf16.gmra.mxu0 %v380
      %v539 = vpop.f32.mrf.mxu0
      %v540 = vadd.f32 %v455, %v539
      %v541 = vpop.f32.mrf.mxu0
      %v542 = vpop.f32.mrf.mxu0
      %v543 = vadd.f32 %v455, %v542
      %v544 = vpop.f32.mrf.mxu0
      %545 = vdwg.mxu0
      %v547 = vlaneseq
      %v548 = vshrl.u32 %v547, 7
      %v549 = vsub.s32 0, %v548
      %v550 = vrot.slane %v448, %v549
      %v568 = vunpack.c.l.b16 %v399
      %v569 = vunpack.c.l.b16 %v400
      %v570 = vunpack.c.l.b16 %v401
      %v571 = vunpack.c.l.b16 %v402
      %v572 = vunpack.c.l.b16 %v403
      %v573 = vunpack.c.l.b16 %v404
      %v574 = vunpack.c.l.b16 %v405
      %v575 = vunpack.c.l.b16 %v406
      %v576 = vunpack.c.l.b16 %v407
      %v577 = vunpack.c.l.b16 %v408
      %v578 = vunpack.c.l.b16 %v409
      %v579 = vunpack.c.l.b16 %v410
      %v580 = vunpack.c.l.b16 %v411
      %v581 = vunpack.c.l.b16 %v412
      %v582 = vunpack.c.l.b16 %v413
      %v583 = vunpack.c.l.b16 %v414
      %v584 = vpack.c.b16 %v569, %v568
      %v585 = vpack.c.b16 %v571, %v570
      %v586 = vpack.c.b16 %v573, %v572
      %v587 = vpack.c.b16 %v575, %v574
      %v588 = vpack.c.b16 %v577, %v576
      %v589 = vpack.c.b16 %v579, %v578
      %v590 = vpack.c.b16 %v581, %v580
      %v591 = vpack.c.b16 %v583, %v582
      %600 = vmatprep.subr.bf16.mxu0 0
      %601 = vmatpush1.bf16.msra.mxu0 %v591
      %602 = vmatprep.subr.bf16.mxu0 0
      %603 = vmatpush1.bf16.msra.mxu0 %v590
      %604 = vmatprep.subr.bf16.mxu0 0
      %605 = vmatpush1.bf16.msra.mxu0 %v589
      %606 = vmatprep.subr.bf16.mxu0 0
      %607 = vmatpush1.bf16.msra.mxu0 %v588
      %608 = vmatprep.subr.bf16.mxu0 0
      %609 = vmatpush1.bf16.msra.mxu0 %v587
      %610 = vmatprep.subr.bf16.mxu0 0
      %611 = vmatpush1.bf16.msra.mxu0 %v586
      %612 = vmatprep.subr.bf16.mxu0 0
      %613 = vmatpush1.bf16.msra.mxu0 %v585
      %614 = vmatprep.subr.bf16.mxu0 0
      %615 = vmatpush1.bf16.msra.mxu0 %v584
      %616 = vmatprep.subr.bf16.mxu0 0
      %617 = vmatpush2.bf16.msra.mxu0 0
      %618 = vmatprep.subr.bf16.mxu0 0
      %619 = vmatpush2.bf16.msra.mxu0 0
      %620 = vmatprep.subr.bf16.mxu0 0
      %621 = vmatpush2.bf16.msra.mxu0 0
      %622 = vmatprep.subr.bf16.mxu0 0
      %623 = vmatpush2.bf16.msra.mxu0 0
      %624 = vmatprep.subr.bf16.mxu0 0
      %625 = vmatpush2.bf16.msra.mxu0 0
      %626 = vmatprep.subr.bf16.mxu0 0
      %627 = vmatpush2.bf16.msra.mxu0 0
      %628 = vmatprep.subr.bf16.mxu0 0
      %629 = vmatpush2.bf16.msra.mxu0 0
      %630 = vmatprep.subr.bf16.mxu0 0
      %631 = vmatpush2.bf16.msra.mxu0 0
      %632 = vmatprep.mubr.bf16.mxu0 0
      %633 = vmatmul.mubr.bf16.gmra.mxu0 %v382
      %v634 = vpop.f32.mrf.mxu0
      %v635 = vadd.f32 %v550, %v634
      %v636 = vpop.f32.mrf.mxu0
      %v637 = vpop.f32.mrf.mxu0
      %v638 = vpop.f32.mrf.mxu0
      %639 = vdwg.mxu0
      %v641 = vlaneseq
      %v642 = vshrl.u32 %v641, 7
      %v643 = vsub.s32 0, %v642
      %v644 = vrot.slane %v449, %v643
      %v662 = vunpack.c.l.b16 %v415
      %v663 = vunpack.c.l.b16 %v416
      %v664 = vunpack.c.l.b16 %v417
      %v665 = vunpack.c.l.b16 %v418
      %v666 = vunpack.c.l.b16 %v419
      %v667 = vunpack.c.l.b16 %v420
      %v668 = vunpack.c.l.b16 %v421
      %v669 = vunpack.c.l.b16 %v422
      %v670 = vunpack.c.l.b16 %v423
      %v671 = vunpack.c.l.b16 %v424
      %v672 = vunpack.c.l.b16 %v425
      %v673 = vunpack.c.l.b16 %v426
      %v674 = vunpack.c.l.b16 %v427
      %v675 = vunpack.c.l.b16 %v428
      %v676 = vunpack.c.l.b16 %v429
      %v677 = vunpack.c.l.b16 %v430
      %v678 = vpack.c.b16 %v663, %v662
      %v679 = vpack.c.b16 %v665, %v664
      %v680 = vpack.c.b16 %v667, %v666
      %v681 = vpack.c.b16 %v669, %v668
      %v682 = vpack.c.b16 %v671, %v670
      %v683 = vpack.c.b16 %v673, %v672
      %v684 = vpack.c.b16 %v675, %v674
      %v685 = vpack.c.b16 %v677, %v676
      %694 = vmatprep.subr.bf16.mxu0 0
      %695 = vmatpush1.bf16.msra.mxu0 %v685
      %696 = vmatprep.subr.bf16.mxu0 0
      %697 = vmatpush1.bf16.msra.mxu0 %v684
      %698 = vmatprep.subr.bf16.mxu0 0
      %699 = vmatpush1.bf16.msra.mxu0 %v683
      %700 = vmatprep.subr.bf16.mxu0 0
      %701 = vmatpush1.bf16.msra.mxu0 %v682
      %702 = vmatprep.subr.bf16.mxu0 0
      %703 = vmatpush1.bf16.msra.mxu0 %v681
      %704 = vmatprep.subr.bf16.mxu0 0
      %705 = vmatpush1.bf16.msra.mxu0 %v680
      %706 = vmatprep.subr.bf16.mxu0 0
      %707 = vmatpush1.bf16.msra.mxu0 %v679
      %708 = vmatprep.subr.bf16.mxu0 0
      %709 = vmatpush1.bf16.msra.mxu0 %v678
      %710 = vmatprep.subr.bf16.mxu0 0
      %711 = vmatpush2.bf16.msra.mxu0 0
      %712 = vmatprep.subr.bf16.mxu0 0
      %713 = vmatpush2.bf16.msra.mxu0 0
      %714 = vmatprep.subr.bf16.mxu0 0
      %715 = vmatpush2.bf16.msra.mxu0 0
      %716 = vmatprep.subr.bf16.mxu0 0
      %717 = vmatpush2.bf16.msra.mxu0 0
      %718 = vmatprep.subr.bf16.mxu0 0
      %719 = vmatpush2.bf16.msra.mxu0 0
      %720 = vmatprep.subr.bf16.mxu0 0
      %721 = vmatpush2.bf16.msra.mxu0 0
      %722 = vmatprep.subr.bf16.mxu0 0
      %723 = vmatpush2.bf16.msra.mxu0 0
      %724 = vmatprep.subr.bf16.mxu0 0
      %725 = vmatpush2.bf16.msra.mxu0 0
      %726 = vmatprep.mubr.bf16.mxu0 0
      %727 = vmatmul.mubr.bf16.gmra.mxu0 %v382
      %v728 = vpop.f32.mrf.mxu0
      %v729 = vadd.f32 %v644, %v728
      %v730 = vpop.f32.mrf.mxu0
      %v731 = vpop.f32.mrf.mxu0
      %v732 = vpop.f32.mrf.mxu0
      %733 = vdwg.mxu0
      %v734 = vmul.f32 %v540, 0.25
      %v735 = vmul.f32 %v543, 0.25
      %v736 = vpack.c.bf16 %v735, %v734
      %v737 = vpack.c.bf16 %v635, %v635
      %v738 = vpack.c.bf16 %v729, %v729
      %vm739 = vcmask 130048
      %v741 = vsel %vm739, %v736, 0
      %v744 = vsel %vm739, %v737, 0
      %746 = vmatprep.subr.bf16.mxu0 0
      %747 = vmatpush1.bf16.xpose.msra.mxu0 0
      %748 = vmatprep.subr.bf16.mxu0 0
      %749 = vmatpush1.bf16.xpose.msra.mxu0 0
      %750 = vmatprep.subr.bf16.mxu0 0
      %751 = vmatpush1.bf16.xpose.msra.mxu0 0
      %752 = vmatprep.subr.bf16.mxu0 0
      %753 = vmatpush1.bf16.xpose.msra.mxu0 0
      %754 = vmatprep.subr.bf16.mxu0 0
      %755 = vmatpush1.bf16.xpose.msra.mxu0 0
      %756 = vmatprep.subr.bf16.mxu0 0
      %757 = vmatpush1.bf16.xpose.msra.mxu0 0
      %758 = vmatprep.subr.bf16.mxu0 0
      %759 = vmatpush1.bf16.xpose.msra.mxu0 0
      %760 = vmatprep.subr.bf16.mxu0 0
      %761 = vmatpush1.bf16.xpose.msra.mxu0 %v744
      %762 = vmatprep.subr.bf16.mxu0 0
      %763 = vmatpush2.bf16.xpose.msra.mxu0 0
      %764 = vmatprep.subr.bf16.mxu0 0
      %765 = vmatpush2.bf16.xpose.msra.mxu0 0
      %766 = vmatprep.subr.bf16.mxu0 0
      %767 = vmatpush2.bf16.xpose.msra.mxu0 0
      %768 = vmatprep.subr.bf16.mxu0 0
      %769 = vmatpush2.bf16.xpose.msra.mxu0 0
      %770 = vmatprep.subr.bf16.mxu0 0
      %771 = vmatpush2.bf16.xpose.msra.mxu0 0
      %772 = vmatprep.subr.bf16.mxu0 0
      %773 = vmatpush2.bf16.xpose.msra.mxu0 0
      %774 = vmatprep.subr.bf16.mxu0 0
      %775 = vmatpush2.bf16.xpose.msra.mxu0 0
      %776 = vmatprep.subr.bf16.mxu0 0
      %777 = vmatpush2.bf16.xpose.msra.mxu0 0
      %778 = vmatprep.mubr.bf16.mxu0 0
      %779 = vmatmul.mubr.bf16.gmra.mxu0 %v741
      %v780 = vpop.f32.mrf.mxu0
      %v781 = vadd.f32 0.0, %v780
      %v782 = vpop.f32.mrf.mxu0
      %v783 = vpop.f32.mrf.mxu0
      %v784 = vadd.f32 0.0, %v783
      %v785 = vpop.f32.mrf.mxu0
      %786 = vdwg.mxu0
      %vm787 = vcmask 64512
      %v788 = vsel %vm787, %v781, -inf
      %789 = vmax.xlane.f32.xlu0 %v788
      %v790 = vpop.xlane.xlu0 %789
      %v791 = vsel %vm787, %v784, -inf
      %792 = vmax.xlane.f32.xlu0 %v791
      %v793 = vpop.xlane.xlu0 %792
      %v794 = vsub.f32 %v781, %v790
      %v795 = vsub.f32 %v784, %v793
      %v796 = vmul.f32 %v794, 1.442695
      %v797 = vpow.pop %v796
      %v798 = vmul.f32 %v795, 1.442695
      %v799 = vpow.pop %v798
      %v800 = vsel %vm787, %v797, 0.0
      %801 = vadd.xlane.f32.xlu0 %v800
      %v802 = vpop.xlane.xlu0 %801
      %v803 = vsel %vm787, %v799, 0.0
      %804 = vadd.xlane.f32.xlu0 %v803
      %v805 = vpop.xlane.xlu0 %804
      %v806 = vrcp.pop %v802
      %v807 = vrcp.pop %v805
      %v808 = vmul.f32 %v797, %v806
      %v809 = vmul.f32 %v799, %v807
      %v810 = vpack.c.bf16 %v809, %v808
      %v812 = vsel %vm787, %v810, 0
      %vm814 = vcmask 1043456
      %v816 = vsel %vm814, %v738, 0
      %818 = vmatprep.subr.bf16.mxu0 0
      %819 = vmatpush1.bf16.msra.mxu0 0
      %820 = vmatprep.subr.bf16.mxu0 0
      %821 = vmatpush1.bf16.msra.mxu0 0
      %822 = vmatprep.subr.bf16.mxu0 0
      %823 = vmatpush1.bf16.msra.mxu0 0
      %824 = vmatprep.subr.bf16.mxu0 0
      %825 = vmatpush1.bf16.msra.mxu0 0
      %826 = vmatprep.subr.bf16.mxu0 0
      %827 = vmatpush1.bf16.msra.mxu0 0
      %828 = vmatprep.subr.bf16.mxu0 0
      %829 = vmatpush1.bf16.msra.mxu0 0
      %830 = vmatprep.subr.bf16.mxu0 0
      %831 = vmatpush1.bf16.msra.mxu0 0
      %832 = vmatprep.subr.bf16.mxu0 0
      %833 = vmatpush1.bf16.msra.mxu0 %v816
      %834 = vmatprep.subr.bf16.mxu0 0
      %835 = vmatpush2.bf16.msra.mxu0 0
      %836 = vmatprep.subr.bf16.mxu0 0
      %837 = vmatpush2.bf16.msra.mxu0 0
      %838 = vmatprep.subr.bf16.mxu0 0
      %839 = vmatpush2.bf16.msra.mxu0 0
      %840 = vmatprep.subr.bf16.mxu0 0
      %841 = vmatpush2.bf16.msra.mxu0 0
      %842 = vmatprep.subr.bf16.mxu0 0
      %843 = vmatpush2.bf16.msra.mxu0 0
      %844 = vmatprep.subr.bf16.mxu0 0
      %845 = vmatpush2.bf16.msra.mxu0 0
      %846 = vmatprep.subr.bf16.mxu0 0
      %847 = vmatpush2.bf16.msra.mxu0 0
      %848 = vmatprep.subr.bf16.mxu0 0
      %849 = vmatpush2.bf16.msra.mxu0 0
      %850 = vmatprep.mubr.bf16.mxu0 0
      %851 = vmatmul.mubr.bf16.gmra.mxu0 %v812
      %v852 = vpop.f32.mrf.mxu0
      %v853 = vadd.f32 0.0, %v852
      %v854 = vpop.f32.mrf.mxu0
      %v855 = vpop.f32.mrf.mxu0
      %v856 = vadd.f32 0.0, %v855
      %v857 = vpop.f32.mrf.mxu0
      %858 = vdwg.mxu0
      %860 = vrot.lane.b32.xlu0 %v736, 112
      %v861 = vpop.permute.xlu0 %860
      %863 = vrot.lane.b32.xlu0 %v737, 112
      %v864 = vpop.permute.xlu0 %863
      %v866 = vsel %vm739, %v861, 0
      %v869 = vsel %vm739, %v864, 0
      %871 = vmatprep.subr.bf16.mxu0 0
      %872 = vmatpush1.bf16.xpose.msra.mxu0 0
      %873 = vmatprep.subr.bf16.mxu0 0
      %874 = vmatpush1.bf16.xpose.msra.mxu0 0
      %875 = vmatprep.subr.bf16.mxu0 0
      %876 = vmatpush1.bf16.xpose.msra.mxu0 0
      %877 = vmatprep.subr.bf16.mxu0 0
      %878 = vmatpush1.bf16.xpose.msra.mxu0 0
      %879 = vmatprep.subr.bf16.mxu0 0
      %880 = vmatpush1.bf16.xpose.msra.mxu0 0
      %881 = vmatprep.subr.bf16.mxu0 0
      %882 = vmatpush1.bf16.xpose.msra.mxu0 0
      %883 = vmatprep.subr.bf16.mxu0 0
      %884 = vmatpush1.bf16.xpose.msra.mxu0 0
      %885 = vmatprep.subr.bf16.mxu0 0
      %886 = vmatpush1.bf16.xpose.msra.mxu0 %v869
      %887 = vmatprep.subr.bf16.mxu0 0
      %888 = vmatpush2.bf16.xpose.msra.mxu0 0
      %889 = vmatprep.subr.bf16.mxu0 0
      %890 = vmatpush2.bf16.xpose.msra.mxu0 0
      %891 = vmatprep.subr.bf16.mxu0 0
      %892 = vmatpush2.bf16.xpose.msra.mxu0 0
      %893 = vmatprep.subr.bf16.mxu0 0
      %894 = vmatpush2.bf16.xpose.msra.mxu0 0
      %895 = vmatprep.subr.bf16.mxu0 0
      %896 = vmatpush2.bf16.xpose.msra.mxu0 0
      %897 = vmatprep.subr.bf16.mxu0 0
      %898 = vmatpush2.bf16.xpose.msra.mxu0 0
      %899 = vmatprep.subr.bf16.mxu0 0
      %900 = vmatpush2.bf16.xpose.msra.mxu0 0
      %901 = vmatprep.subr.bf16.mxu0 0
      %902 = vmatpush2.bf16.xpose.msra.mxu0 0
      %903 = vmatprep.mubr.bf16.mxu0 0
      %904 = vmatmul.mubr.bf16.gmra.mxu0 %v866
      %v905 = vpop.f32.mrf.mxu0
      %v906 = vadd.f32 0.0, %v905
      %v907 = vpop.f32.mrf.mxu0
      %v908 = vpop.f32.mrf.mxu0
      %v909 = vadd.f32 0.0, %v908
      %v910 = vpop.f32.mrf.mxu0
      %911 = vdwg.mxu0
      %v912 = vsel %vm787, %v906, -inf
      %913 = vmax.xlane.f32.xlu0 %v912
      %v914 = vpop.xlane.xlu0 %913
      %v915 = vsel %vm787, %v909, -inf
      %916 = vmax.xlane.f32.xlu0 %v915
      %v917 = vpop.xlane.xlu0 %916
      %v918 = vsub.f32 %v906, %v914
      %v919 = vsub.f32 %v909, %v917
      %v920 = vmul.f32 %v918, 1.442695
      %v921 = vpow.pop %v920
      %v922 = vmul.f32 %v919, 1.442695
      %v923 = vpow.pop %v922
      %v924 = vsel %vm787, %v921, 0.0
      %925 = vadd.xlane.f32.xlu0 %v924
      %v926 = vpop.xlane.xlu0 %925
      %v927 = vsel %vm787, %v923, 0.0
      %928 = vadd.xlane.f32.xlu0 %v927
      %v929 = vpop.xlane.xlu0 %928
      %v930 = vrcp.pop %v926
      %v931 = vrcp.pop %v929
      %v932 = vmul.f32 %v921, %v930
      %v933 = vmul.f32 %v923, %v931
      %v934 = vpack.c.bf16 %v933, %v932
      %936 = vrot.lane.b32.xlu0 %v738, 112
      %v937 = vpop.permute.xlu0 %936
      %v939 = vsel %vm787, %v934, 0
      %v942 = vsel %vm814, %v937, 0
      %944 = vmatprep.subr.bf16.mxu0 0
      %945 = vmatpush1.bf16.msra.mxu0 0
      %946 = vmatprep.subr.bf16.mxu0 0
      %947 = vmatpush1.bf16.msra.mxu0 0
      %948 = vmatprep.subr.bf16.mxu0 0
      %949 = vmatpush1.bf16.msra.mxu0 0
      %950 = vmatprep.subr.bf16.mxu0 0
      %951 = vmatpush1.bf16.msra.mxu0 0
      %952 = vmatprep.subr.bf16.mxu0 0
      %953 = vmatpush1.bf16.msra.mxu0 0
      %954 = vmatprep.subr.bf16.mxu0 0
      %955 = vmatpush1.bf16.msra.mxu0 0
      %956 = vmatprep.subr.bf16.mxu0 0
      %957 = vmatpush1.bf16.msra.mxu0 0
      %958 = vmatprep.subr.bf16.mxu0 0
      %959 = vmatpush1.bf16.msra.mxu0 %v942
      %960 = vmatprep.subr.bf16.mxu0 0
      %961 = vmatpush2.bf16.msra.mxu0 0
      %962 = vmatprep.subr.bf16.mxu0 0
      %963 = vmatpush2.bf16.msra.mxu0 0
      %964 = vmatprep.subr.bf16.mxu0 0
      %965 = vmatpush2.bf16.msra.mxu0 0
      %966 = vmatprep.subr.bf16.mxu0 0
      %967 = vmatpush2.bf16.msra.mxu0 0
      %968 = vmatprep.subr.bf16.mxu0 0
      %969 = vmatpush2.bf16.msra.mxu0 0
      %970 = vmatprep.subr.bf16.mxu0 0
      %971 = vmatpush2.bf16.msra.mxu0 0
      %972 = vmatprep.subr.bf16.mxu0 0
      %973 = vmatpush2.bf16.msra.mxu0 0
      %974 = vmatprep.subr.bf16.mxu0 0
      %975 = vmatpush2.bf16.msra.mxu0 0
      %976 = vmatprep.mubr.bf16.mxu0 0
      %977 = vmatmul.mubr.bf16.gmra.mxu0 %v939
      %v978 = vpop.f32.mrf.mxu0
      %v979 = vadd.f32 0.0, %v978
      %v980 = vpop.f32.mrf.mxu0
      %v981 = vpop.f32.mrf.mxu0
      %v982 = vadd.f32 0.0, %v981
      %v983 = vpop.f32.mrf.mxu0
      %984 = vdwg.mxu0
      %985 = vrot.lane.b32.xlu0 %v736, 96
      %v986 = vpop.permute.xlu0 %985
      %987 = vrot.lane.b32.xlu0 %v737, 96
      %v988 = vpop.permute.xlu0 %987
      %v990 = vsel %vm739, %v986, 0
      %v993 = vsel %vm739, %v988, 0
      %995 = vmatprep.subr.bf16.mxu0 0
      %996 = vmatpush1.bf16.xpose.msra.mxu0 0
      %997 = vmatprep.subr.bf16.mxu0 0
      %998 = vmatpush1.bf16.xpose.msra.mxu0 0
      %999 = vmatprep.subr.bf16.mxu0 0
      %1000 = vmatpush1.bf16.xpose.msra.mxu0 0
      %1001 = vmatprep.subr.bf16.mxu0 0
      %1002 = vmatpush1.bf16.xpose.msra.mxu0 0
      %1003 = vmatprep.subr.bf16.mxu0 0
      %1004 = vmatpush1.bf16.xpose.msra.mxu0 0
      %1005 = vmatprep.subr.bf16.mxu0 0
      %1006 = vmatpush1.bf16.xpose.msra.mxu0 0
      %1007 = vmatprep.subr.bf16.mxu0 0
      %1008 = vmatpush1.bf16.xpose.msra.mxu0 0
      %1009 = vmatprep.subr.bf16.mxu0 0
      %1010 = vmatpush1.bf16.xpose.msra.mxu0 %v993
      %1011 = vmatprep.subr.bf16.mxu0 0
      %1012 = vmatpush2.bf16.xpose.msra.mxu0 0
      %1013 = vmatprep.subr.bf16.mxu0 0
      %1014 = vmatpush2.bf16.xpose.msra.mxu0 0
      %1015 = vmatprep.subr.bf16.mxu0 0
      %1016 = vmatpush2.bf16.xpose.msra.mxu0 0
      %1017 = vmatprep.subr.bf16.mxu0 0
      %1018 = vmatpush2.bf16.xpose.msra.mxu0 0
      %1019 = vmatprep.subr.bf16.mxu0 0
      %1020 = vmatpush2.bf16.xpose.msra.mxu0 0
      %1021 = vmatprep.subr.bf16.mxu0 0
      %1022 = vmatpush2.bf16.xpose.msra.mxu0 0
      %1023 = vmatprep.subr.bf16.mxu0 0
      %1024 = vmatpush2.bf16.xpose.msra.mxu0 0
      %1025 = vmatprep.subr.bf16.mxu0 0
      %1026 = vmatpush2.bf16.xpose.msra.mxu0 0
      %1027 = vmatprep.mubr.bf16.mxu0 0
      %1028 = vmatmul.mubr.bf16.gmra.mxu0 %v990
      %v1029 = vpop.f32.mrf.mxu0
      %v1030 = vadd.f32 0.0, %v1029
      %v1031 = vpop.f32.mrf.mxu0
      %v1032 = vpop.f32.mrf.mxu0
      %v1033 = vadd.f32 0.0, %v1032
      %v1034 = vpop.f32.mrf.mxu0
      %1035 = vdwg.mxu0
      %v1036 = vsel %vm787, %v1030, -inf
      %1037 = vmax.xlane.f32.xlu0 %v1036
      %v1038 = vpop.xlane.xlu0 %1037
      %v1039 = vsel %vm787, %v1033, -inf
      %1040 = vmax.xlane.f32.xlu0 %v1039
      %v1041 = vpop.xlane.xlu0 %1040
      %v1042 = vsub.f32 %v1030, %v1038
      %v1043 = vsub.f32 %v1033, %v1041
      %v1044 = vmul.f32 %v1042, 1.442695
      %v1045 = vpow.pop %v1044
      %v1046 = vmul.f32 %v1043, 1.442695
      %v1047 = vpow.pop %v1046
      %v1048 = vsel %vm787, %v1045, 0.0
      %1049 = vadd.xlane.f32.xlu0 %v1048
      %v1050 = vpop.xlane.xlu0 %1049
      %v1051 = vsel %vm787, %v1047, 0.0
      %1052 = vadd.xlane.f32.xlu0 %v1051
      %v1053 = vpop.xlane.xlu0 %1052
      %v1054 = vrcp.pop %v1050
      %v1055 = vrcp.pop %v1053
      %v1056 = vmul.f32 %v1045, %v1054
      %v1057 = vmul.f32 %v1047, %v1055
      %v1058 = vpack.c.bf16 %v1057, %v1056
      %1059 = vrot.lane.b32.xlu0 %v738, 96
      %v1060 = vpop.permute.xlu0 %1059
      %v1062 = vsel %vm787, %v1058, 0
      %v1065 = vsel %vm814, %v1060, 0
      %1067 = vmatprep.subr.bf16.mxu0 0
      %1068 = vmatpush1.bf16.msra.mxu0 0
      %1069 = vmatprep.subr.bf16.mxu0 0
      %1070 = vmatpush1.bf16.msra.mxu0 0
      %1071 = vmatprep.subr.bf16.mxu0 0
      %1072 = vmatpush1.bf16.msra.mxu0 0
      %1073 = vmatprep.subr.bf16.mxu0 0
      %1074 = vmatpush1.bf16.msra.mxu0 0
      %1075 = vmatprep.subr.bf16.mxu0 0
      %1076 = vmatpush1.bf16.msra.mxu0 0
      %1077 = vmatprep.subr.bf16.mxu0 0
      %1078 = vmatpush1.bf16.msra.mxu0 0
      %1079 = vmatprep.subr.bf16.mxu0 0
      %1080 = vmatpush1.bf16.msra.mxu0 0
      %1081 = vmatprep.subr.bf16.mxu0 0
      %1082 = vmatpush1.bf16.msra.mxu0 %v1065
      %1083 = vmatprep.subr.bf16.mxu0 0
      %1084 = vmatpush2.bf16.msra.mxu0 0
      %1085 = vmatprep.subr.bf16.mxu0 0
      %1086 = vmatpush2.bf16.msra.mxu0 0
      %1087 = vmatprep.subr.bf16.mxu0 0
      %1088 = vmatpush2.bf16.msra.mxu0 0
      %1089 = vmatprep.subr.bf16.mxu0 0
      %1090 = vmatpush2.bf16.msra.mxu0 0
      %1091 = vmatprep.subr.bf16.mxu0 0
      %1092 = vmatpush2.bf16.msra.mxu0 0
      %1093 = vmatprep.subr.bf16.mxu0 0
      %1094 = vmatpush2.bf16.msra.mxu0 0
      %1095 = vmatprep.subr.bf16.mxu0 0
      %1096 = vmatpush2.bf16.msra.mxu0 0
      %1097 = vmatprep.subr.bf16.mxu0 0
      %1098 = vmatpush2.bf16.msra.mxu0 0
      %1099 = vmatprep.mubr.bf16.mxu0 0
      %1100 = vmatmul.mubr.bf16.gmra.mxu0 %v1062
      %v1101 = vpop.f32.mrf.mxu0
      %v1102 = vadd.f32 0.0, %v1101
      %v1103 = vpop.f32.mrf.mxu0
      %v1104 = vpop.f32.mrf.mxu0
      %v1105 = vadd.f32 0.0, %v1104
      %v1106 = vpop.f32.mrf.mxu0
      %1107 = vdwg.mxu0
      %1108 = vrot.lane.b32.xlu0 %v736, 80
      %v1109 = vpop.permute.xlu0 %1108
      %1110 = vrot.lane.b32.xlu0 %v737, 80
      %v1111 = vpop.permute.xlu0 %1110
      %v1113 = vsel %vm739, %v1109, 0
      %v1116 = vsel %vm739, %v1111, 0
      %1118 = vmatprep.subr.bf16.mxu0 0
      %1119 = vmatpush1.bf16.xpose.msra.mxu0 0
      %1120 = vmatprep.subr.bf16.mxu0 0
      %1121 = vmatpush1.bf16.xpose.msra.mxu0 0
      %1122 = vmatprep.subr.bf16.mxu0 0
      %1123 = vmatpush1.bf16.xpose.msra.mxu0 0
      %1124 = vmatprep.subr.bf16.mxu0 0
      %1125 = vmatpush1.bf16.xpose.msra.mxu0 0
      %1126 = vmatprep.subr.bf16.mxu0 0
      %1127 = vmatpush1.bf16.xpose.msra.mxu0 0
      %1128 = vmatprep.subr.bf16.mxu0 0
      %1129 = vmatpush1.bf16.xpose.msra.mxu0 0
      %1130 = vmatprep.subr.bf16.mxu0 0
      %1131 = vmatpush1.bf16.xpose.msra.mxu0 0
      %1132 = vmatprep.subr.bf16.mxu0 0
      %1133 = vmatpush1.bf16.xpose.msra.mxu0 %v1116
      %1134 = vmatprep.subr.bf16.mxu0 0
      %1135 = vmatpush2.bf16.xpose.msra.mxu0 0
      %1136 = vmatprep.subr.bf16.mxu0 0
      %1137 = vmatpush2.bf16.xpose.msra.mxu0 0
      %1138 = vmatprep.subr.bf16.mxu0 0
      %1139 = vmatpush2.bf16.xpose.msra.mxu0 0
      %1140 = vmatprep.subr.bf16.mxu0 0
      %1141 = vmatpush2.bf16.xpose.msra.mxu0 0
      %1142 = vmatprep.subr.bf16.mxu0 0
      %1143 = vmatpush2.bf16.xpose.msra.mxu0 0
      %1144 = vmatprep.subr.bf16.mxu0 0
      %1145 = vmatpush2.bf16.xpose.msra.mxu0 0
      %1146 = vmatprep.subr.bf16.mxu0 0
      %1147 = vmatpush2.bf16.xpose.msra.mxu0 0
      %1148 = vmatprep.subr.bf16.mxu0 0
      %1149 = vmatpush2.bf16.xpose.msra.mxu0 0
      %1150 = vmatprep.mubr.bf16.mxu0 0
      %1151 = vmatmul.mubr.bf16.gmra.mxu0 %v1113
      %v1152 = vpop.f32.mrf.mxu0
      %v1153 = vadd.f32 0.0, %v1152
      %v1154 = vpop.f32.mrf.mxu0
      %v1155 = vpop.f32.mrf.mxu0
      %v1156 = vadd.f32 0.0, %v1155
      %v1157 = vpop.f32.mrf.mxu0
      %1158 = vdwg.mxu0
      %v1159 = vsel %vm787, %v1153, -inf
      %1160 = vmax.xlane.f32.xlu0 %v1159
      %v1161 = vpop.xlane.xlu0 %1160
      %v1162 = vsel %vm787, %v1156, -inf
      %1163 = vmax.xlane.f32.xlu0 %v1162
      %v1164 = vpop.xlane.xlu0 %1163
      %v1165 = vsub.f32 %v1153, %v1161
      %v1166 = vsub.f32 %v1156, %v1164
      %v1167 = vmul.f32 %v1165, 1.442695
      %v1168 = vpow.pop %v1167
      %v1169 = vmul.f32 %v1166, 1.442695
      %v1170 = vpow.pop %v1169
      %v1171 = vsel %vm787, %v1168, 0.0
      %1172 = vadd.xlane.f32.xlu0 %v1171
      %v1173 = vpop.xlane.xlu0 %1172
      %v1174 = vsel %vm787, %v1170, 0.0
      %1175 = vadd.xlane.f32.xlu0 %v1174
      %v1176 = vpop.xlane.xlu0 %1175
      %v1177 = vrcp.pop %v1173
      %v1178 = vrcp.pop %v1176
      %v1179 = vmul.f32 %v1168, %v1177
      %v1180 = vmul.f32 %v1170, %v1178
      %v1181 = vpack.c.bf16 %v1180, %v1179
      %1182 = vrot.lane.b32.xlu0 %v738, 80
      %v1183 = vpop.permute.xlu0 %1182
      %v1185 = vsel %vm787, %v1181, 0
      %v1188 = vsel %vm814, %v1183, 0
      %1190 = vmatprep.subr.bf16.mxu0 0
      %1191 = vmatpush1.bf16.msra.mxu0 0
      %1192 = vmatprep.subr.bf16.mxu0 0
      %1193 = vmatpush1.bf16.msra.mxu0 0
      %1194 = vmatprep.subr.bf16.mxu0 0
      %1195 = vmatpush1.bf16.msra.mxu0 0
      %1196 = vmatprep.subr.bf16.mxu0 0
      %1197 = vmatpush1.bf16.msra.mxu0 0
      %1198 = vmatprep.subr.bf16.mxu0 0
      %1199 = vmatpush1.bf16.msra.mxu0 0
      %1200 = vmatprep.subr.bf16.mxu0 0
      %1201 = vmatpush1.bf16.msra.mxu0 0
      %1202 = vmatprep.subr.bf16.mxu0 0
      %1203 = vmatpush1.bf16.msra.mxu0 0
      %1204 = vmatprep.subr.bf16.mxu0 0
      %1205 = vmatpush1.bf16.msra.mxu0 %v1188
      %1206 = vmatprep.subr.bf16.mxu0 0
      %1207 = vmatpush2.bf16.msra.mxu0 0
      %1208 = vmatprep.subr.bf16.mxu0 0
      %1209 = vmatpush2.bf16.msra.mxu0 0
      %1210 = vmatprep.subr.bf16.mxu0 0
      %1211 = vmatpush2.bf16.msra.mxu0 0
      %1212 = vmatprep.subr.bf16.mxu0 0
      %1213 = vmatpush2.bf16.msra.mxu0 0
      %1214 = vmatprep.subr.bf16.mxu0 0
      %1215 = vmatpush2.bf16.msra.mxu0 0
      %1216 = vmatprep.subr.bf16.mxu0 0
      %1217 = vmatpush2.bf16.msra.mxu0 0
      %1218 = vmatprep.subr.bf16.mxu0 0
      %1219 = vmatpush2.bf16.msra.mxu0 0
      %1220 = vmatprep.subr.bf16.mxu0 0
      %1221 = vmatpush2.bf16.msra.mxu0 0
      %1222 = vmatprep.mubr.bf16.mxu0 0
      %1223 = vmatmul.mubr.bf16.gmra.mxu0 %v1185
      %v1224 = vpop.f32.mrf.mxu0
      %v1225 = vadd.f32 0.0, %v1224
      %v1226 = vpop.f32.mrf.mxu0
      %v1227 = vpop.f32.mrf.mxu0
      %v1228 = vadd.f32 0.0, %v1227
      %v1229 = vpop.f32.mrf.mxu0
      %1230 = vdwg.mxu0
      %1231 = vrot.lane.b32.xlu0 %v736, 64
      %v1232 = vpop.permute.xlu0 %1231
      %1233 = vrot.lane.b32.xlu0 %v737, 64
      %v1234 = vpop.permute.xlu0 %1233
      %v1236 = vsel %vm739, %v1232, 0
      %v1239 = vsel %vm739, %v1234, 0
      %1241 = vmatprep.subr.bf16.mxu0 0
      %1242 = vmatpush1.bf16.xpose.msra.mxu0 0
      %1243 = vmatprep.subr.bf16.mxu0 0
      %1244 = vmatpush1.bf16.xpose.msra.mxu0 0
      %1245 = vmatprep.subr.bf16.mxu0 0
      %1246 = vmatpush1.bf16.xpose.msra.mxu0 0
      %1247 = vmatprep.subr.bf16.mxu0 0
      %1248 = vmatpush1.bf16.xpose.msra.mxu0 0
      %1249 = vmatprep.subr.bf16.mxu0 0
      %1250 = vmatpush1.bf16.xpose.msra.mxu0 0
      %1251 = vmatprep.subr.bf16.mxu0 0
      %1252 = vmatpush1.bf16.xpose.msra.mxu0 0
      %1253 = vmatprep.subr.bf16.mxu0 0
      %1254 = vmatpush1.bf16.xpose.msra.mxu0 0
      %1255 = vmatprep.subr.bf16.mxu0 0
      %1256 = vmatpush1.bf16.xpose.msra.mxu0 %v1239
      %1257 = vmatprep.subr.bf16.mxu0 0
      %1258 = vmatpush2.bf16.xpose.msra.mxu0 0
      %1259 = vmatprep.subr.bf16.mxu0 0
      %1260 = vmatpush2.bf16.xpose.msra.mxu0 0
      %1261 = vmatprep.subr.bf16.mxu0 0
      %1262 = vmatpush2.bf16.xpose.msra.mxu0 0
      %1263 = vmatprep.subr.bf16.mxu0 0
      %1264 = vmatpush2.bf16.xpose.msra.mxu0 0
      %1265 = vmatprep.subr.bf16.mxu0 0
      %1266 = vmatpush2.bf16.xpose.msra.mxu0 0
      %1267 = vmatprep.subr.bf16.mxu0 0
      %1268 = vmatpush2.bf16.xpose.msra.mxu0 0
      %1269 = vmatprep.subr.bf16.mxu0 0
      %1270 = vmatpush2.bf16.xpose.msra.mxu0 0
      %1271 = vmatprep.subr.bf16.mxu0 0
      %1272 = vmatpush2.bf16.xpose.msra.mxu0 0
      %1273 = vmatprep.mubr.bf16.mxu0 0
      %1274 = vmatmul.mubr.bf16.gmra.mxu0 %v1236
      %v1275 = vpop.f32.mrf.mxu0
      %v1276 = vadd.f32 0.0, %v1275
      %v1277 = vpop.f32.mrf.mxu0
      %v1278 = vpop.f32.mrf.mxu0
      %v1279 = vadd.f32 0.0, %v1278
      %v1280 = vpop.f32.mrf.mxu0
      %1281 = vdwg.mxu0
      %v1282 = vsel %vm787, %v1276, -inf
      %1283 = vmax.xlane.f32.xlu0 %v1282
      %v1284 = vpop.xlane.xlu0 %1283
      %v1285 = vsel %vm787, %v1279, -inf
      %1286 = vmax.xlane.f32.xlu0 %v1285
      %v1287 = vpop.xlane.xlu0 %1286
      %v1288 = vsub.f32 %v1276, %v1284
      %v1289 = vsub.f32 %v1279, %v1287
      %v1290 = vmul.f32 %v1288, 1.442695
      %v1291 = vpow.pop %v1290
      %v1292 = vmul.f32 %v1289, 1.442695
      %v1293 = vpow.pop %v1292
      %v1294 = vsel %vm787, %v1291, 0.0
      %1295 = vadd.xlane.f32.xlu0 %v1294
      %v1296 = vpop.xlane.xlu0 %1295
      %v1297 = vsel %vm787, %v1293, 0.0
      %1298 = vadd.xlane.f32.xlu0 %v1297
      %v1299 = vpop.xlane.xlu0 %1298
      %v1300 = vrcp.pop %v1296
      %v1301 = vrcp.pop %v1299
      %v1302 = vmul.f32 %v1291, %v1300
      %v1303 = vmul.f32 %v1293, %v1301
      %v1304 = vpack.c.bf16 %v1303, %v1302
      %1305 = vrot.lane.b32.xlu0 %v738, 64
      %v1306 = vpop.permute.xlu0 %1305
      %v1308 = vsel %vm787, %v1304, 0
      %v1311 = vsel %vm814, %v1306, 0
      %1313 = vmatprep.subr.bf16.mxu0 0
      %1314 = vmatpush1.bf16.msra.mxu0 0
      %1315 = vmatprep.subr.bf16.mxu0 0
      %1316 = vmatpush1.bf16.msra.mxu0 0
      %1317 = vmatprep.subr.bf16.mxu0 0
      %1318 = vmatpush1.bf16.msra.mxu0 0
      %1319 = vmatprep.subr.bf16.mxu0 0
      %1320 = vmatpush1.bf16.msra.mxu0 0
      %1321 = vmatprep.subr.bf16.mxu0 0
      %1322 = vmatpush1.bf16.msra.mxu0 0
      %1323 = vmatprep.subr.bf16.mxu0 0
      %1324 = vmatpush1.bf16.msra.mxu0 0
      %1325 = vmatprep.subr.bf16.mxu0 0
      %1326 = vmatpush1.bf16.msra.mxu0 0
      %1327 = vmatprep.subr.bf16.mxu0 0
      %1328 = vmatpush1.bf16.msra.mxu0 %v1311
      %1329 = vmatprep.subr.bf16.mxu0 0
      %1330 = vmatpush2.bf16.msra.mxu0 0
      %1331 = vmatprep.subr.bf16.mxu0 0
      %1332 = vmatpush2.bf16.msra.mxu0 0
      %1333 = vmatprep.subr.bf16.mxu0 0
      %1334 = vmatpush2.bf16.msra.mxu0 0
      %1335 = vmatprep.subr.bf16.mxu0 0
      %1336 = vmatpush2.bf16.msra.mxu0 0
      %1337 = vmatprep.subr.bf16.mxu0 0
      %1338 = vmatpush2.bf16.msra.mxu0 0
      %1339 = vmatprep.subr.bf16.mxu0 0
      %1340 = vmatpush2.bf16.msra.mxu0 0
      %1341 = vmatprep.subr.bf16.mxu0 0
      %1342 = vmatpush2.bf16.msra.mxu0 0
      %1343 = vmatprep.subr.bf16.mxu0 0
      %1344 = vmatpush2.bf16.msra.mxu0 0
      %1345 = vmatprep.mubr.bf16.mxu0 0
      %1346 = vmatmul.mubr.bf16.gmra.mxu0 %v1308
      %v1347 = vpop.f32.mrf.mxu0
      %v1348 = vadd.f32 0.0, %v1347
      %v1349 = vpop.f32.mrf.mxu0
      %v1350 = vpop.f32.mrf.mxu0
      %v1351 = vadd.f32 0.0, %v1350
      %v1352 = vpop.f32.mrf.mxu0
      %1353 = vdwg.mxu0
      %1354 = vrot.lane.b32.xlu0 %v736, 48
      %v1355 = vpop.permute.xlu0 %1354
      %1356 = vrot.lane.b32.xlu0 %v737, 48
      %v1357 = vpop.permute.xlu0 %1356
      %v1359 = vsel %vm739, %v1355, 0
      %v1362 = vsel %vm739, %v1357, 0
      %1364 = vmatprep.subr.bf16.mxu0 0
      %1365 = vmatpush1.bf16.xpose.msra.mxu0 0
      %1366 = vmatprep.subr.bf16.mxu0 0
      %1367 = vmatpush1.bf16.xpose.msra.mxu0 0
      %1368 = vmatprep.subr.bf16.mxu0 0
      %1369 = vmatpush1.bf16.xpose.msra.mxu0 0
      %1370 = vmatprep.subr.bf16.mxu0 0
      %1371 = vmatpush1.bf16.xpose.msra.mxu0 0
      %1372 = vmatprep.subr.bf16.mxu0 0
      %1373 = vmatpush1.bf16.xpose.msra.mxu0 0
      %1374 = vmatprep.subr.bf16.mxu0 0
      %1375 = vmatpush1.bf16.xpose.msra.mxu0 0
      %1376 = vmatprep.subr.bf16.mxu0 0
      %1377 = vmatpush1.bf16.xpose.msra.mxu0 0
      %1378 = vmatprep.subr.bf16.mxu0 0
      %1379 = vmatpush1.bf16.xpose.msra.mxu0 %v1362
      %1380 = vmatprep.subr.bf16.mxu0 0
      %1381 = vmatpush2.bf16.xpose.msra.mxu0 0
      %1382 = vmatprep.subr.bf16.mxu0 0
      %1383 = vmatpush2.bf16.xpose.msra.mxu0 0
      %1384 = vmatprep.subr.bf16.mxu0 0
      %1385 = vmatpush2.bf16.xpose.msra.mxu0 0
      %1386 = vmatprep.subr.bf16.mxu0 0
      %1387 = vmatpush2.bf16.xpose.msra.mxu0 0
      %1388 = vmatprep.subr.bf16.mxu0 0
      %1389 = vmatpush2.bf16.xpose.msra.mxu0 0
      %1390 = vmatprep.subr.bf16.mxu0 0
      %1391 = vmatpush2.bf16.xpose.msra.mxu0 0
      %1392 = vmatprep.subr.bf16.mxu0 0
      %1393 = vmatpush2.bf16.xpose.msra.mxu0 0
      %1394 = vmatprep.subr.bf16.mxu0 0
      %1395 = vmatpush2.bf16.xpose.msra.mxu0 0
      %1396 = vmatprep.mubr.bf16.mxu0 0
      %1397 = vmatmul.mubr.bf16.gmra.mxu0 %v1359
      %v1398 = vpop.f32.mrf.mxu0
      %v1399 = vadd.f32 0.0, %v1398
      %v1400 = vpop.f32.mrf.mxu0
      %v1401 = vpop.f32.mrf.mxu0
      %v1402 = vadd.f32 0.0, %v1401
      %v1403 = vpop.f32.mrf.mxu0
      %1404 = vdwg.mxu0
      %v1405 = vsel %vm787, %v1399, -inf
      %1406 = vmax.xlane.f32.xlu0 %v1405
      %v1407 = vpop.xlane.xlu0 %1406
      %v1408 = vsel %vm787, %v1402, -inf
      %1409 = vmax.xlane.f32.xlu0 %v1408
      %v1410 = vpop.xlane.xlu0 %1409
      %v1411 = vsub.f32 %v1399, %v1407
      %v1412 = vsub.f32 %v1402, %v1410
      %v1413 = vmul.f32 %v1411, 1.442695
      %v1414 = vpow.pop %v1413
      %v1415 = vmul.f32 %v1412, 1.442695
      %v1416 = vpow.pop %v1415
      %v1417 = vsel %vm787, %v1414, 0.0
      %1418 = vadd.xlane.f32.xlu0 %v1417
      %v1419 = vpop.xlane.xlu0 %1418
      %v1420 = vsel %vm787, %v1416, 0.0
      %1421 = vadd.xlane.f32.xlu0 %v1420
      %v1422 = vpop.xlane.xlu0 %1421
      %v1423 = vrcp.pop %v1419
      %v1424 = vrcp.pop %v1422
      %v1425 = vmul.f32 %v1414, %v1423
      %v1426 = vmul.f32 %v1416, %v1424
      %v1427 = vpack.c.bf16 %v1426, %v1425
      %1428 = vrot.lane.b32.xlu0 %v738, 48
      %v1429 = vpop.permute.xlu0 %1428
      %v1431 = vsel %vm787, %v1427, 0
      %v1434 = vsel %vm814, %v1429, 0
      %1436 = vmatprep.subr.bf16.mxu0 0
      %1437 = vmatpush1.bf16.msra.mxu0 0
      %1438 = vmatprep.subr.bf16.mxu0 0
      %1439 = vmatpush1.bf16.msra.mxu0 0
      %1440 = vmatprep.subr.bf16.mxu0 0
      %1441 = vmatpush1.bf16.msra.mxu0 0
      %1442 = vmatprep.subr.bf16.mxu0 0
      %1443 = vmatpush1.bf16.msra.mxu0 0
      %1444 = vmatprep.subr.bf16.mxu0 0
      %1445 = vmatpush1.bf16.msra.mxu0 0
      %1446 = vmatprep.subr.bf16.mxu0 0
      %1447 = vmatpush1.bf16.msra.mxu0 0
      %1448 = vmatprep.subr.bf16.mxu0 0
      %1449 = vmatpush1.bf16.msra.mxu0 0
      %1450 = vmatprep.subr.bf16.mxu0 0
      %1451 = vmatpush1.bf16.msra.mxu0 %v1434
      %1452 = vmatprep.subr.bf16.mxu0 0
      %1453 = vmatpush2.bf16.msra.mxu0 0
      %1454 = vmatprep.subr.bf16.mxu0 0
      %1455 = vmatpush2.bf16.msra.mxu0 0
      %1456 = vmatprep.subr.bf16.mxu0 0
      %1457 = vmatpush2.bf16.msra.mxu0 0
      %1458 = vmatprep.subr.bf16.mxu0 0
      %1459 = vmatpush2.bf16.msra.mxu0 0
      %1460 = vmatprep.subr.bf16.mxu0 0
      %1461 = vmatpush2.bf16.msra.mxu0 0
      %1462 = vmatprep.subr.bf16.mxu0 0
      %1463 = vmatpush2.bf16.msra.mxu0 0
      %1464 = vmatprep.subr.bf16.mxu0 0
      %1465 = vmatpush2.bf16.msra.mxu0 0
      %1466 = vmatprep.subr.bf16.mxu0 0
      %1467 = vmatpush2.bf16.msra.mxu0 0
      %1468 = vmatprep.mubr.bf16.mxu0 0
      %1469 = vmatmul.mubr.bf16.gmra.mxu0 %v1431
      %v1470 = vpop.f32.mrf.mxu0
      %v1471 = vadd.f32 0.0, %v1470
      %v1472 = vpop.f32.mrf.mxu0
      %v1473 = vpop.f32.mrf.mxu0
      %v1474 = vadd.f32 0.0, %v1473
      %v1475 = vpop.f32.mrf.mxu0
      %1476 = vdwg.mxu0
      %1477 = vrot.lane.b32.xlu0 %v736, 32
      %v1478 = vpop.permute.xlu0 %1477
      %1479 = vrot.lane.b32.xlu0 %v737, 32
      %v1480 = vpop.permute.xlu0 %1479
      %v1482 = vsel %vm739, %v1478, 0
      %v1485 = vsel %vm739, %v1480, 0
      %1487 = vmatprep.subr.bf16.mxu0 0
      %1488 = vmatpush1.bf16.xpose.msra.mxu0 0
      %1489 = vmatprep.subr.bf16.mxu0 0
      %1490 = vmatpush1.bf16.xpose.msra.mxu0 0
      %1491 = vmatprep.subr.bf16.mxu0 0
      %1492 = vmatpush1.bf16.xpose.msra.mxu0 0
      %1493 = vmatprep.subr.bf16.mxu0 0
      %1494 = vmatpush1.bf16.xpose.msra.mxu0 0
      %1495 = vmatprep.subr.bf16.mxu0 0
      %1496 = vmatpush1.bf16.xpose.msra.mxu0 0
      %1497 = vmatprep.subr.bf16.mxu0 0
      %1498 = vmatpush1.bf16.xpose.msra.mxu0 0
      %1499 = vmatprep.subr.bf16.mxu0 0
      %1500 = vmatpush1.bf16.xpose.msra.mxu0 0
      %1501 = vmatprep.subr.bf16.mxu0 0
      %1502 = vmatpush1.bf16.xpose.msra.mxu0 %v1485
      %1503 = vmatprep.subr.bf16.mxu0 0
      %1504 = vmatpush2.bf16.xpose.msra.mxu0 0
      %1505 = vmatprep.subr.bf16.mxu0 0
      %1506 = vmatpush2.bf16.xpose.msra.mxu0 0
      %1507 = vmatprep.subr.bf16.mxu0 0
      %1508 = vmatpush2.bf16.xpose.msra.mxu0 0
      %1509 = vmatprep.subr.bf16.mxu0 0
      %1510 = vmatpush2.bf16.xpose.msra.mxu0 0
      %1511 = vmatprep.subr.bf16.mxu0 0
      %1512 = vmatpush2.bf16.xpose.msra.mxu0 0
      %1513 = vmatprep.subr.bf16.mxu0 0
      %1514 = vmatpush2.bf16.xpose.msra.mxu0 0
      %1515 = vmatprep.subr.bf16.mxu0 0
      %1516 = vmatpush2.bf16.xpose.msra.mxu0 0
      %1517 = vmatprep.subr.bf16.mxu0 0
      %1518 = vmatpush2.bf16.xpose.msra.mxu0 0
      %1519 = vmatprep.mubr.bf16.mxu0 0
      %1520 = vmatmul.mubr.bf16.gmra.mxu0 %v1482
      %v1521 = vpop.f32.mrf.mxu0
      %v1522 = vadd.f32 0.0, %v1521
      %v1523 = vpop.f32.mrf.mxu0
      %v1524 = vpop.f32.mrf.mxu0
      %v1525 = vadd.f32 0.0, %v1524
      %v1526 = vpop.f32.mrf.mxu0
      %1527 = vdwg.mxu0
      %v1528 = vsel %vm787, %v1522, -inf
      %1529 = vmax.xlane.f32.xlu0 %v1528
      %v1530 = vpop.xlane.xlu0 %1529
      %v1531 = vsel %vm787, %v1525, -inf
      %1532 = vmax.xlane.f32.xlu0 %v1531
      %v1533 = vpop.xlane.xlu0 %1532
      %v1534 = vsub.f32 %v1522, %v1530
      %v1535 = vsub.f32 %v1525, %v1533
      %v1536 = vmul.f32 %v1534, 1.442695
      %v1537 = vpow.pop %v1536
      %v1538 = vmul.f32 %v1535, 1.442695
      %v1539 = vpow.pop %v1538
      %v1540 = vsel %vm787, %v1537, 0.0
      %1541 = vadd.xlane.f32.xlu0 %v1540
      %v1542 = vpop.xlane.xlu0 %1541
      %v1543 = vsel %vm787, %v1539, 0.0
      %1544 = vadd.xlane.f32.xlu0 %v1543
      %v1545 = vpop.xlane.xlu0 %1544
      %v1546 = vrcp.pop %v1542
      %v1547 = vrcp.pop %v1545
      %v1548 = vmul.f32 %v1537, %v1546
      %v1549 = vmul.f32 %v1539, %v1547
      %v1550 = vpack.c.bf16 %v1549, %v1548
      %1551 = vrot.lane.b32.xlu0 %v738, 32
      %v1552 = vpop.permute.xlu0 %1551
      %v1554 = vsel %vm787, %v1550, 0
      %v1557 = vsel %vm814, %v1552, 0
      %1559 = vmatprep.subr.bf16.mxu0 0
      %1560 = vmatpush1.bf16.msra.mxu0 0
      %1561 = vmatprep.subr.bf16.mxu0 0
      %1562 = vmatpush1.bf16.msra.mxu0 0
      %1563 = vmatprep.subr.bf16.mxu0 0
      %1564 = vmatpush1.bf16.msra.mxu0 0
      %1565 = vmatprep.subr.bf16.mxu0 0
      %1566 = vmatpush1.bf16.msra.mxu0 0
      %1567 = vmatprep.subr.bf16.mxu0 0
      %1568 = vmatpush1.bf16.msra.mxu0 0
      %1569 = vmatprep.subr.bf16.mxu0 0
      %1570 = vmatpush1.bf16.msra.mxu0 0
      %1571 = vmatprep.subr.bf16.mxu0 0
      %1572 = vmatpush1.bf16.msra.mxu0 0
      %1573 = vmatprep.subr.bf16.mxu0 0
      %1574 = vmatpush1.bf16.msra.mxu0 %v1557
      %1575 = vmatprep.subr.bf16.mxu0 0
      %1576 = vmatpush2.bf16.msra.mxu0 0
      %1577 = vmatprep.subr.bf16.mxu0 0
      %1578 = vmatpush2.bf16.msra.mxu0 0
      %1579 = vmatprep.subr.bf16.mxu0 0
      %1580 = vmatpush2.bf16.msra.mxu0 0
      %1581 = vmatprep.subr.bf16.mxu0 0
      %1582 = vmatpush2.bf16.msra.mxu0 0
      %1583 = vmatprep.subr.bf16.mxu0 0
      %1584 = vmatpush2.bf16.msra.mxu0 0
      %1585 = vmatprep.subr.bf16.mxu0 0
      %1586 = vmatpush2.bf16.msra.mxu0 0
      %1587 = vmatprep.subr.bf16.mxu0 0
      %1588 = vmatpush2.bf16.msra.mxu0 0
      %1589 = vmatprep.subr.bf16.mxu0 0
      %1590 = vmatpush2.bf16.msra.mxu0 0
      %1591 = vmatprep.mubr.bf16.mxu0 0
      %1592 = vmatmul.mubr.bf16.gmra.mxu0 %v1554
      %v1593 = vpop.f32.mrf.mxu0
      %v1594 = vadd.f32 0.0, %v1593
      %v1595 = vpop.f32.mrf.mxu0
      %v1596 = vpop.f32.mrf.mxu0
      %v1597 = vadd.f32 0.0, %v1596
      %v1598 = vpop.f32.mrf.mxu0
      %1599 = vdwg.mxu0
      %1600 = vrot.lane.b32.xlu0 %v736, 16
      %v1601 = vpop.permute.xlu0 %1600
      %1602 = vrot.lane.b32.xlu0 %v737, 16
      %v1603 = vpop.permute.xlu0 %1602
      %v1605 = vsel %vm739, %v1601, 0
      %v1608 = vsel %vm739, %v1603, 0
      %1610 = vmatprep.subr.bf16.mxu0 0
      %1611 = vmatpush1.bf16.xpose.msra.mxu0 0
      %1612 = vmatprep.subr.bf16.mxu0 0
      %1613 = vmatpush1.bf16.xpose.msra.mxu0 0
      %1614 = vmatprep.subr.bf16.mxu0 0
      %1615 = vmatpush1.bf16.xpose.msra.mxu0 0
      %1616 = vmatprep.subr.bf16.mxu0 0
      %1617 = vmatpush1.bf16.xpose.msra.mxu0 0
      %1618 = vmatprep.subr.bf16.mxu0 0
      %1619 = vmatpush1.bf16.xpose.msra.mxu0 0
      %1620 = vmatprep.subr.bf16.mxu0 0
      %1621 = vmatpush1.bf16.xpose.msra.mxu0 0
      %1622 = vmatprep.subr.bf16.mxu0 0
      %1623 = vmatpush1.bf16.xpose.msra.mxu0 0
      %1624 = vmatprep.subr.bf16.mxu0 0
      %1625 = vmatpush1.bf16.xpose.msra.mxu0 %v1608
      %1626 = vmatprep.subr.bf16.mxu0 0
      %1627 = vmatpush2.bf16.xpose.msra.mxu0 0
      %1628 = vmatprep.subr.bf16.mxu0 0
      %1629 = vmatpush2.bf16.xpose.msra.mxu0 0
      %1630 = vmatprep.subr.bf16.mxu0 0
      %1631 = vmatpush2.bf16.xpose.msra.mxu0 0
      %1632 = vmatprep.subr.bf16.mxu0 0
      %1633 = vmatpush2.bf16.xpose.msra.mxu0 0
      %1634 = vmatprep.subr.bf16.mxu0 0
      %1635 = vmatpush2.bf16.xpose.msra.mxu0 0
      %1636 = vmatprep.subr.bf16.mxu0 0
      %1637 = vmatpush2.bf16.xpose.msra.mxu0 0
      %1638 = vmatprep.subr.bf16.mxu0 0
      %1639 = vmatpush2.bf16.xpose.msra.mxu0 0
      %1640 = vmatprep.subr.bf16.mxu0 0
      %1641 = vmatpush2.bf16.xpose.msra.mxu0 0
      %1642 = vmatprep.mubr.bf16.mxu0 0
      %1643 = vmatmul.mubr.bf16.gmra.mxu0 %v1605
      %v1644 = vpop.f32.mrf.mxu0
      %v1645 = vadd.f32 0.0, %v1644
      %v1646 = vpop.f32.mrf.mxu0
      %v1647 = vpop.f32.mrf.mxu0
      %v1648 = vadd.f32 0.0, %v1647
      %v1649 = vpop.f32.mrf.mxu0
      %1650 = vdwg.mxu0
      %v1651 = vsel %vm787, %v1645, -inf
      %1652 = vmax.xlane.f32.xlu0 %v1651
      %v1653 = vpop.xlane.xlu0 %1652
      %v1654 = vsel %vm787, %v1648, -inf
      %1655 = vmax.xlane.f32.xlu0 %v1654
      %v1656 = vpop.xlane.xlu0 %1655
      %v1657 = vsub.f32 %v1645, %v1653
      %v1658 = vsub.f32 %v1648, %v1656
      %v1659 = vmul.f32 %v1657, 1.442695
      %v1660 = vpow.pop %v1659
      %v1661 = vmul.f32 %v1658, 1.442695
      %v1662 = vpow.pop %v1661
      %v1663 = vsel %vm787, %v1660, 0.0
      %1664 = vadd.xlane.f32.xlu0 %v1663
      %v1665 = vpop.xlane.xlu0 %1664
      %v1666 = vsel %vm787, %v1662, 0.0
      %1667 = vadd.xlane.f32.xlu0 %v1666
      %v1668 = vpop.xlane.xlu0 %1667
      %v1669 = vrcp.pop %v1665
      %v1670 = vrcp.pop %v1668
      %v1671 = vmul.f32 %v1660, %v1669
      %v1672 = vmul.f32 %v1662, %v1670
      %v1673 = vpack.c.bf16 %v1672, %v1671
      %1674 = vrot.lane.b32.xlu0 %v738, 16
      %v1675 = vpop.permute.xlu0 %1674
      %v1677 = vsel %vm787, %v1673, 0
      %v1680 = vsel %vm814, %v1675, 0
      %1682 = vmatprep.subr.bf16.mxu0 0
      %1683 = vmatpush1.bf16.msra.mxu0 0
      %1684 = vmatprep.subr.bf16.mxu0 0
      %1685 = vmatpush1.bf16.msra.mxu0 0
      %1686 = vmatprep.subr.bf16.mxu0 0
      %1687 = vmatpush1.bf16.msra.mxu0 0
      %1688 = vmatprep.subr.bf16.mxu0 0
      %1689 = vmatpush1.bf16.msra.mxu0 0
      %1690 = vmatprep.subr.bf16.mxu0 0
      %1691 = vmatpush1.bf16.msra.mxu0 0
      %1692 = vmatprep.subr.bf16.mxu0 0
      %1693 = vmatpush1.bf16.msra.mxu0 0
      %1694 = vmatprep.subr.bf16.mxu0 0
      %1695 = vmatpush1.bf16.msra.mxu0 0
      %1696 = vmatprep.subr.bf16.mxu0 0
      %1697 = vmatpush1.bf16.msra.mxu0 %v1680
      %1698 = vmatprep.subr.bf16.mxu0 0
      %1699 = vmatpush2.bf16.msra.mxu0 0
      %1700 = vmatprep.subr.bf16.mxu0 0
      %1701 = vmatpush2.bf16.msra.mxu0 0
      %1702 = vmatprep.subr.bf16.mxu0 0
      %1703 = vmatpush2.bf16.msra.mxu0 0
      %1704 = vmatprep.subr.bf16.mxu0 0
      %1705 = vmatpush2.bf16.msra.mxu0 0
      %1706 = vmatprep.subr.bf16.mxu0 0
      %1707 = vmatpush2.bf16.msra.mxu0 0
      %1708 = vmatprep.subr.bf16.mxu0 0
      %1709 = vmatpush2.bf16.msra.mxu0 0
      %1710 = vmatprep.subr.bf16.mxu0 0
      %1711 = vmatpush2.bf16.msra.mxu0 0
      %1712 = vmatprep.subr.bf16.mxu0 0
      %1713 = vmatpush2.bf16.msra.mxu0 0
      %1714 = vmatprep.mubr.bf16.mxu0 0
      %1715 = vmatmul.mubr.bf16.gmra.mxu0 %v1677
      %v1716 = vpop.f32.mrf.mxu0
      %v1717 = vadd.f32 0.0, %v1716
      %v1718 = vpop.f32.mrf.mxu0
      %v1719 = vpop.f32.mrf.mxu0
      %v1720 = vadd.f32 0.0, %v1719
      %v1721 = vpop.f32.mrf.mxu0
      %1722 = vdwg.mxu0
      %1725 = vrot.lane.b32.xlu0 %v979, 16
      %v1726 = vpop.permute.xlu0 %1725
      %1727 = vrot.lane.b32.xlu0 %v982, 16
      %v1728 = vpop.permute.xlu0 %1727
      %1733 = vrot.lane.b32.xlu0 %v1102, 32
      %v1734 = vpop.permute.xlu0 %1733
      %1735 = vrot.lane.b32.xlu0 %v1105, 32
      %v1736 = vpop.permute.xlu0 %1735
      %1741 = vrot.lane.b32.xlu0 %v1225, 48
      %v1742 = vpop.permute.xlu0 %1741
      %1743 = vrot.lane.b32.xlu0 %v1228, 48
      %v1744 = vpop.permute.xlu0 %1743
      %1749 = vrot.lane.b32.xlu0 %v1348, 64
      %v1750 = vpop.permute.xlu0 %1749
      %1751 = vrot.lane.b32.xlu0 %v1351, 64
      %v1752 = vpop.permute.xlu0 %1751
      %1757 = vrot.lane.b32.xlu0 %v1471, 80
      %v1758 = vpop.permute.xlu0 %1757
      %1759 = vrot.lane.b32.xlu0 %v1474, 80
      %v1760 = vpop.permute.xlu0 %1759
      %1765 = vrot.lane.b32.xlu0 %v1594, 96
      %v1766 = vpop.permute.xlu0 %1765
      %1767 = vrot.lane.b32.xlu0 %v1597, 96
      %v1768 = vpop.permute.xlu0 %1767
      %1773 = vrot.lane.b32.xlu0 %v1717, 112
      %v1774 = vpop.permute.xlu0 %1773
      %1775 = vrot.lane.b32.xlu0 %v1720, 112
      %v1776 = vpop.permute.xlu0 %1775
      %v1779 = vsel %vm739, %v853, %v1726
      %v1780 = vsel %vm739, %v856, %v1728
      %vm1781 = vcmask 261120
      %v1782 = vsel %vm1781, %v1779, %v1734
      %v1783 = vsel %vm1781, %v1780, %v1736
      %vm1784 = vcmask 392192
      %v1785 = vsel %vm1784, %v1782, %v1742
      %v1786 = vsel %vm1784, %v1783, %v1744
      %vm1787 = vcmask 523264
      %v1788 = vsel %vm1787, %v1785, %v1750
      %v1789 = vsel %vm1787, %v1786, %v1752
      %vm1790 = vcmask 654336
      %v1791 = vsel %vm1790, %v1788, %v1758
      %v1792 = vsel %vm1790, %v1789, %v1760
      %vm1793 = vcmask 785408
      %v1794 = vsel %vm1793, %v1791, %v1766
      %v1795 = vsel %vm1793, %v1792, %v1768
      %vm1796 = vcmask 916480
      %v1797 = vsel %vm1796, %v1794, %v1774
      %v1798 = vsel %vm1796, %v1795, %v1776
      %1799 = vst [vmem:[#allocation2] sm:$0xff] %v1797
      %1800 = vst [vmem:[#allocation2 + $0x8] sm:$0xff] %v1798
      %v1801 = vld [vmem:[#allocation2] sm:$0xff]
      %v1802 = vld [vmem:[#allocation2 + $0x8] sm:$0xff]
      %v1803 = vpack.c.bf16 %v1802, %v1801
      %v1805 = vlaneseq
      %v1806 = vshrl.u32 %v1805, 7
      %v1807 = vsub.s32 0, %v1806
      %v1808 = vrot.slane %v450, %v1807
      %v1826 = vunpack.c.l.b16 %v431
      %v1827 = vunpack.c.l.b16 %v432
      %v1828 = vunpack.c.l.b16 %v433
      %v1829 = vunpack.c.l.b16 %v434
      %v1830 = vunpack.c.l.b16 %v435
      %v1831 = vunpack.c.l.b16 %v436
      %v1832 = vunpack.c.l.b16 %v437
      %v1833 = vunpack.c.l.b16 %v438
      %v1834 = vunpack.c.l.b16 %v439
      %v1835 = vunpack.c.l.b16 %v440
      %v1836 = vunpack.c.l.b16 %v441
      %v1837 = vunpack.c.l.b16 %v442
      %v1838 = vunpack.c.l.b16 %v443
      %v1839 = vunpack.c.l.b16 %v444
      %v1840 = vunpack.c.l.b16 %v445
      %v1841 = vunpack.c.l.b16 %v446
      %v1842 = vpack.c.b16 %v1827, %v1826
      %v1843 = vpack.c.b16 %v1829, %v1828
      %v1844 = vpack.c.b16 %v1831, %v1830
      %v1845 = vpack.c.b16 %v1833, %v1832
      %v1846 = vpack.c.b16 %v1835, %v1834
      %v1847 = vpack.c.b16 %v1837, %v1836
      %v1848 = vpack.c.b16 %v1839, %v1838
      %v1849 = vpack.c.b16 %v1841, %v1840
      %1858 = vmatprep.subr.bf16.mxu0 0
      %1859 = vmatpush1.bf16.msra.mxu0 %v1849
      %1860 = vmatprep.subr.bf16.mxu0 0
      %1861 = vmatpush1.bf16.msra.mxu0 %v1848
      %1862 = vmatprep.subr.bf16.mxu0 0
      %1863 = vmatpush1.bf16.msra.mxu0 %v1847
      %1864 = vmatprep.subr.bf16.mxu0 0
      %1865 = vmatpush1.bf16.msra.mxu0 %v1846
      %1866 = vmatprep.subr.bf16.mxu0 0
      %1867 = vmatpush1.bf16.msra.mxu0 %v1845
      %1868 = vmatprep.subr.bf16.mxu0 0
      %1869 = vmatpush1.bf16.msra.mxu0 %v1844
      %1870 = vmatprep.subr.bf16.mxu0 0
      %1871 = vmatpush1.bf16.msra.mxu0 %v1843
      %1872 = vmatprep.subr.bf16.mxu0 0
      %1873 = vmatpush1.bf16.msra.mxu0 %v1842
      %1874 = vmatprep.subr.bf16.mxu0 0
      %1875 = vmatpush2.bf16.msra.mxu0 0
      %1876 = vmatprep.subr.bf16.mxu0 0
      %1877 = vmatpush2.bf16.msra.mxu0 0
      %1878 = vmatprep.subr.bf16.mxu0 0
      %1879 = vmatpush2.bf16.msra.mxu0 0
      %1880 = vmatprep.subr.bf16.mxu0 0
      %1881 = vmatpush2.bf16.msra.mxu0 0
      %1882 = vmatprep.subr.bf16.mxu0 0
      %1883 = vmatpush2.bf16.msra.mxu0 0
      %1884 = vmatprep.subr.bf16.mxu0 0
      %1885 = vmatpush2.bf16.msra.mxu0 0
      %1886 = vmatprep.subr.bf16.mxu0 0
      %1887 = vmatpush2.bf16.msra.mxu0 0
      %1888 = vmatprep.subr.bf16.mxu0 0
      %1889 = vmatpush2.bf16.msra.mxu0 0
      %1890 = vmatprep.mubr.bf16.mxu0 0
      %1891 = vmatmul.mubr.bf16.gmra.mxu0 %v1803
      %v1892 = vpop.f32.mrf.mxu0
      %v1893 = vadd.f32 %v1808, %v1892
      %v1894 = vpop.f32.mrf.mxu0
      %v1895 = vpop.f32.mrf.mxu0
      %v1896 = vadd.f32 %v1808, %v1895
      %v1897 = vpop.f32.mrf.mxu0
      %1898 = vdwg.mxu0
      %1899 = vst [vmem:[%s376] sm:$0xff] %v1893
      %1900 = vst [vmem:[%s376 + $0x8] sm:$0xff] %v1896
      %p1901 = scmp.lt.s32.totalorder %s21, 1
      %s1902 = scalar_select %p1901, %s21, 1
      %s1903 = smul.addr %s1902, 2
      %s1904 = smul.addr %s1903, 8
      %s1905 = scalar_lea.vmem %s10, %s1904
      // Predicated region
      $region61: #{coattention_forward.4} parent=59 // pred_check
        %p1906 = pneg %p259
      $region62: #{coattention_forward.4} parent=59 // pred_check_branch
        %1908 = sbr.rel (%p1906) target = $region64
      $region63: #{coattention_forward.4} parent=59 // pred_region
        _
      $region64: #{coattention_forward.4} parent=59 // pred_fallthru
        _
    $region60: #{coattention_forward.4} parent=5 // pred_fallthru
      _
    %p1909 = scmp.le.s32.totalorder 2, %s16
    // Predicated region
    $region65: #{coattention_forward.4} parent=5 // pred_check
      %p1910 = pneg %p1909
    $region66: #{coattention_forward.4} parent=5 // pred_check_branch
      %1912 = sbr.rel (%p1910) target = $region68
    $region67: #{coattention_forward.4} parent=5 // pred_region
      %s1913 = ssub.s32 %s16, 2
      // Predicated region
      $region69: #{coattention_forward.4} parent=67 // pred_check
        %p1914 = pneg %p265
      $region70: #{coattention_forward.4} parent=67 // pred_check_branch
        %1916 = sbr.rel (%p1914) target = $region72
      $region71: #{coattention_forward.4} parent=67 // pred_region
        %p1917 = scmp.lt.s32.totalorder %s22, 1
        %s1918 = scalar_select %p1917, %s22, 1
        %s1919 = smul.addr %s1918, 2
        %s1920 = smul.addr %s1919, 8
        %s1921 = scalar_lea.vmem %s10, %s1920
      $region72: #{coattention_forward.4} parent=67 // pred_fallthru
        _
    $region68: #{coattention_forward.4} parent=5 // pred_fallthru
      _
  $region6: #{coattention_forward.4} parent=0 // loop_footer
    %s20 = sadd.s32 1, %s16
  $region7: #{coattention_forward.4} parent=0 // loop_footer_branch
    %15 = sbr.rel target = $region3
  $region8: #{coattention_forward.4} parent=0 // loop_exit
    _

</llo_original>
